<compile_context>
chip_gen: v7x
topology: tpu7x:2x2x1
jax: 0.10.0
libtpu: 0.0.40
codegen_flags: <defaults>
</compile_context>

<pallas_src>
import math
from functools import partial

import jax
import jax.numpy as jnp
from jax.experimental import pallas as pl
from jax.experimental.pallas import tpu as pltpu

EPS = 1e-6  # norm_layer = partial(nn.LayerNorm, eps=1e-6)


# --------------------------- hardware-aware knobs ------------------------------
_VMEM_LIMIT_CACHE = None


def _vmem_limit_bytes():
    """Generation-aware VMEM budget: ~80% of physical VMEM (leaves Mosaic
    internal-scratch headroom), capped at 112 MiB.  v5e/v6e -> ~102 MiB,
    v7x -> ~51 MiB.  Falls back to 64 MiB if the query is unavailable."""
    global _VMEM_LIMIT_CACHE
    if _VMEM_LIMIT_CACHE is None:
        limit = 64 * 1024 * 1024
        try:
            cap = int(pltpu.get_tpu_info().vmem_capacity_bytes)
            limit = max(min(int(cap * 0.80), 112 * 1024 * 1024), 32 * 1024 * 1024)
        except Exception:
            pass
        _VMEM_LIMIT_CACHE = limit
    return _VMEM_LIMIT_CACHE


def _compiler_params(semantics):
    return pltpu.CompilerParams(dimension_semantics=semantics,
                                vmem_limit_bytes=_vmem_limit_bytes())


def _supports_single_buffering():
    try:
        import inspect
        return ("pipeline_mode" in inspect.signature(pl.BlockSpec).parameters
                and hasattr(pl, "Buffered"))
    except Exception:
        return False


_SINGLE_BUF = _supports_single_buffering()


def _const_spec(arr):
    """Whole-array block, constant index map (fetched once, never revolves).
    Single-buffered when supported: double-buffering a never-changing weight
    only wastes VMEM (16-32 MB for ViT-L MLP weights)."""
    nd = arr.ndim
    idx = lambda *_args, _nd=nd: (0,) * _nd
    if _SINGLE_BUF:
        return pl.BlockSpec(arr.shape, idx, pipeline_mode=pl.Buffered(1))
    return pl.BlockSpec(arr.shape, idx)


def _seq_tile(S, D, hidden, itemsize, budget):
    """Largest token tile whose MLP/norm working set fits the VMEM budget."""
    weight_bytes = (2 * D * hidden + 8 * D + hidden) * itemsize  # single-buffered consts
    act_budget = max(budget - weight_bytes - (8 << 20), 2 << 20)
    # per-token residency: x/out blocks (double-buffered) + f32 LN/residual temps
    # + f32 hidden intermediate
    per_tok = 4 * D * itemsize + 16 * D + 8 * hidden
    max_t = max(act_budget // per_tok, 8)
    for t in (1024, 512, 256, 128, 64, 32, 16, 8):
        if t <= max_t and S % t == 0:
            return t
    return S


def _layernorm_f32(xf, w, b):
    """LayerNorm in f32 with one-pass variance E[x^2] - mu^2."""
    mu = jnp.mean(xf, axis=-1, keepdims=True)
    var = jnp.maximum(jnp.mean(xf * xf, axis=-1, keepdims=True) - mu * mu, 0.0)
    return ((xf - mu) * jax.lax.rsqrt(var + EPS) * w.astype(jnp.float32)
            + b.astype(jnp.float32))


# ----------------------------- attention phase --------------------------------
# grid = (B, H); the head axis is a reduction ("arbitrary") over the output
# projection.  Scores are per-head (S, S) only; LN'd tokens and the f32 residual
# accumulator persist in VMEM scratch across the head loop.
def _attn_kernel(x_ref, ln1w, ln1b, wq, wk, wv, bq, bk, bv, wo, bo,
                 out_ref, hn_ref, acc_ref):
    h_idx = pl.program_id(1)
    cdt = x_ref.dtype                              # MXU compute dtype (bf16-capable)

    @pl.when(h_idx == 0)
    def _():
        xf = x_ref[0].astype(jnp.float32)          # (S, D)
        hn_ref[...] = _layernorm_f32(xf, ln1w[...], ln1b[...]).astype(cdt)
        acc_ref[...] = xf + bo[...].astype(jnp.float32)   # residual + out-proj bias

    hn = hn_ref[...]                               # (S, D), cdt

    # Per-head projections; 1/sqrt(dh) is pre-folded into wq/bq by the wrapper.
    q = (jnp.dot(hn, wq[0], preferred_element_type=jnp.float32)
         + bq[0].astype(jnp.float32)).astype(cdt)            # (S, dh)
    k = (jnp.dot(hn, wk[0], preferred_element_type=jnp.float32)
         + bk[0].astype(jnp.float32)).astype(cdt)
    v = (jnp.dot(hn, wv[0], preferred_element_type=jnp.float32)
         + bv[0].astype(jnp.float32)).astype(cdt)

    s = jax.lax.dot_general(q, k, (((1,), (1,)), ((), ())),
                            preferred_element_type=jnp.float32)     # (S, S) = q @ k^T
    s = s - jnp.max(s, axis=-1, keepdims=True)
    e = jnp.exp(s)
    p = e * pl.reciprocal(jnp.sum(e, axis=-1, keepdims=True), approx=True)
    o = jnp.dot(p.astype(cdt), v, preferred_element_type=jnp.float32)       # (S, dh)
    acc_ref[...] += jnp.dot(o.astype(cdt), wo[0],
                            preferred_element_type=jnp.float32)             # (S, D)

    @pl.when(h_idx == pl.num_programs(1) - 1)
    def _():
        out_ref[0] = acc_ref[...].astype(out_ref.dtype)


# -------------------------------- MLP phase -----------------------------------
def _mlp_kernel(x_ref, ln2w, ln2b, w1, b1, w2, b2, out_ref):
    x = x_ref[0]                                    # (tS, D)
    cdt = x.dtype
    xf = x.astype(jnp.float32)
    h = _layernorm_f32(xf, ln2w[...], ln2b[...]).astype(cdt)
    m = jnp.dot(h, w1[...], preferred_element_type=jnp.float32) + b1[...].astype(jnp.float32)
    # TODO(synk): torch nn.GELU defaults to the exact erf form; the tanh
    # approximation is used here for guaranteed Mosaic lowering.
    m = jax.nn.gelu(m, approximate=True).astype(cdt)
    y = jnp.dot(m, w2[...], preferred_element_type=jnp.float32) + b2[...].astype(jnp.float32)
    out_ref[0] = (xf + y).astype(out_ref.dtype)                      # residual


# ------------------------------- final norm -----------------------------------
def _norm_kernel(x_ref, nw, nb, out_ref):
    xf = x_ref[0].astype(jnp.float32)
    out_ref[0] = _layernorm_f32(xf, nw[...], nb[...]).astype(out_ref.dtype)


# --------------------------------- wrappers ------------------------------------
def vit_attn_block(x, blk, num_heads):
    B, S, D = x.shape
    assert D % num_heads == 0, "token_dim must be divisible by num_heads"
    dh = D // num_heads
    head_w = lambda: pl.BlockSpec((1, D, dh), lambda b, h: (h, 0, 0))
    head_b = lambda: pl.BlockSpec((1, 1, dh), lambda b, h: (h, 0, 0))
    return pl.pallas_call(
        _attn_kernel,
        out_shape=jax.ShapeDtypeStruct((B, S, D), x.dtype),
        grid=(B, num_heads),
        in_specs=[pl.BlockSpec((1, S, D), lambda b, h: (b, 0, 0)),
                  _const_spec(blk["ln1_w"]), _const_spec(blk["ln1_b"]),
                  head_w(), head_w(), head_w(),
                  head_b(), head_b(), head_b(),
                  pl.BlockSpec((1, dh, D), lambda b, h: (h, 0, 0)),
                  _const_spec(blk["bo"])],
        out_specs=pl.BlockSpec((1, S, D), lambda b, h: (b, 0, 0)),
        scratch_shapes=[pltpu.VMEM((S, D), x.dtype),       # LayerNorm'd tokens
                        pltpu.VMEM((S, D), jnp.float32)],   # residual accumulator
        input_output_aliases={0: 0},
        compiler_params=_compiler_params(("parallel", "arbitrary")),
    )(x, blk["ln1_w"], blk["ln1_b"], blk["wq_h"], blk["wk_h"], blk["wv_h"],
      blk["bq_h"], blk["bk_h"], blk["bv_h"], blk["wo_h"], blk["bo"])


def vit_mlp_block(x, blk):
    B, S, D = x.shape
    Hm = blk["w1"].shape[1]
    tS = _seq_tile(S, D, Hm, x.dtype.itemsize, _vmem_limit_bytes())
    w = [blk[k] for k in ("ln2_w", "ln2_b", "w1", "b1", "w2", "b2")]
    return pl.pallas_call(
        _mlp_kernel,
        out_shape=jax.ShapeDtypeStruct((B, S, D), x.dtype),
        grid=(B, S // tS),
        in_specs=[pl.BlockSpec((1, tS, D), lambda b, t: (b, t, 0))]
                 + [_const_spec(a) for a in w],
        out_specs=pl.BlockSpec((1, tS, D), lambda b, t: (b, t, 0)),
        input_output_aliases={0: 0},
        compiler_params=_compiler_params(("parallel", "parallel")),
    )(x, *w)


def vit_final_norm(x, p):
    B, S, D = x.shape
    tS = _seq_tile(S, D, 0, x.dtype.itemsize, _vmem_limit_bytes())
    w = [p["norm_w"], p["norm_b"]]
    return pl.pallas_call(
        _norm_kernel,
        out_shape=jax.ShapeDtypeStruct((B, S, D), x.dtype),
        grid=(B, S // tS),
        in_specs=[pl.BlockSpec((1, tS, D), lambda b, t: (b, t, 0))]
                 + [_const_spec(a) for a in w],
        out_specs=pl.BlockSpec((1, tS, D), lambda b, t: (b, t, 0)),
        compiler_params=_compiler_params(("parallel", "parallel")),
    )(x, *w)


def vit_forward(x, params, *, depth, num_heads, use_mean_token=False):
    """Equivalent of ViT.forward: returns (pre_logits(token), normed_tokens)."""
    for i in range(depth):
        blk = params["blocks"][i]
        x = vit_attn_block(x, blk, num_heads)
        x = vit_mlp_block(x, blk)
    xn = vit_final_norm(x, params)
    tok = jnp.mean(xn, axis=1) if use_mean_token else xn[:, 0]
    # pre_logits (Linear + Tanh on a (B, R) tensor) stays in plain XLA so every
    # Pallas kernel output remains lane-dense.
    rep = jnp.tanh(jnp.dot(tok.astype(jnp.float32),
                           params["pre_w"].astype(jnp.float32))
                   + params["pre_b"].astype(jnp.float32))
    return rep.astype(x.dtype), xn


# ------------------------------ parameter packing -------------------------------
def pack_attention_weights(wq, bq, wk, bk, wv, bv, wo, bo, num_heads):
    """Convert (in, out)-layout attention weights to the per-head layout the
    kernel consumes and fold the 1/sqrt(dh) softmax scale into the query
    projection (free wrapper-side constant folding)."""
    D = wq.shape[0]
    dh = D // num_heads
    scale = 1.0 / math.sqrt(dh)
    dt = wq.dtype

    def split_heads(w, b, s=1.0):
        wf = w.astype(jnp.float32) * s
        bf = b.astype(jnp.float32) * s
        w_h = jnp.transpose(wf.reshape(D, num_heads, dh), (1, 0, 2)).astype(dt)  # (H,D,dh)
        b_h = bf.reshape(num_heads, 1, dh).astype(dt)                            # (H,1,dh)
        return w_h, b_h

    wq_h, bq_h = split_heads(wq, bq, scale)
    wk_h, bk_h = split_heads(wk, bk)
    wv_h, bv_h = split_heads(wv, bv)
    return {"wq_h": wq_h, "bq_h": bq_h, "wk_h": wk_h, "bk_h": bk_h,
            "wv_h": wv_h, "bv_h": bv_h,
            "wo_h": wo.reshape(num_heads, dh, D),    # (H, dh, D)
            "bo": bo}


def init_params(key, token_dim, depth, num_heads, mlp_ratio, representation_size,
                dtype=jnp.bfloat16):
    D = token_dim
    assert D % num_heads == 0
    Hm = int(D * mlp_ratio)

    def lin(k, fan_in, fan_out):
        return (jax.random.normal(k, (fan_in, fan_out), jnp.float32)
                * (1.0 / math.sqrt(fan_in))).astype(dtype)

    keys = jax.random.split(key, depth + 1)
    blocks = []
    for i in range(depth):
        ks = jax.random.split(keys[i], 6)
        attn = pack_attention_weights(
            lin(ks[0], D, D), jnp.zeros((1, D), dtype),   # q
            lin(ks[1], D, D), jnp.zeros((1, D), dtype),   # k
            lin(ks[2], D, D), jnp.zeros((1, D), dtype),   # v
            lin(ks[3], D, D), jnp.zeros((1, D), dtype),   # out proj
            num_heads)
        blk = {"ln1_w": jnp.ones((1, D), dtype), "ln1_b": jnp.zeros((1, D), dtype),
               "ln2_w": jnp.ones((1, D), dtype), "ln2_b": jnp.zeros((1, D), dtype),
               "w1": lin(ks[4], D, Hm), "b1": jnp.zeros((1, Hm), dtype),
               "w2": lin(ks[5], Hm, D), "b2": jnp.zeros((1, D), dtype)}
        blk.update(attn)
        blocks.append(blk)
    kh = jax.random.split(keys[depth], 1)[0]
    return {
        "blocks": blocks,
        "norm_w": jnp.ones((1, D), dtype), "norm_b": jnp.zeros((1, D), dtype),
        "pre_w": lin(kh, D, representation_size),
        "pre_b": jnp.zeros((1, representation_size), dtype),
    }


if __name__ == "__main__":
    key = jax.random.PRNGKey(0)
    kx, kp = jax.random.split(key)

    B, S, D = 2, 16, 128               # batch, tokens, token_dim (lane-aligned D)
    depth, num_heads, mlp_ratio = 2, 4, 4.0
    representation_size = 64

    # bf16 end-to-end (full MXU rate, halved weight/activation VMEM & DMA bytes);
    # kernels still accumulate matmuls / LN stats / softmax / residual in f32.
    dtype = jnp.bfloat16
    x = jax.random.normal(kx, (B, S, D), jnp.float32).astype(dtype)
    params = init_params(kp, D, depth, num_heads, mlp_ratio, representation_size,
                         dtype=dtype)

    fwd = jax.jit(partial(vit_forward, depth=depth, num_heads=num_heads,
                          use_mean_token=False))
    rep, tokens = fwd(x, params)
    jax.block_until_ready((rep, tokens))

    assert rep.shape == (B, representation_size)
    assert tokens.shape == (B, S, D)
    assert bool(jnp.all(jnp.isfinite(tokens.astype(jnp.float32))))
    assert bool(jnp.all(jnp.isfinite(rep.astype(jnp.float32))))
    print("KERNEL_OK")
</pallas_src>

<mosaic_0001>
module attributes {stable_mosaic.version = 11 : i64} {
  func.func @_attn_kernel(%arg0: i32, %arg1: i32, %arg2: memref<1x16x128xbf16, #tpu.memory_space<vmem>>, %arg3: memref<1x128xbf16, #tpu.memory_space<vmem>>, %arg4: memref<1x128xbf16, #tpu.memory_space<vmem>>, %arg5: memref<1x128x32xbf16, #tpu.memory_space<vmem>>, %arg6: memref<1x128x32xbf16, #tpu.memory_space<vmem>>, %arg7: memref<1x128x32xbf16, #tpu.memory_space<vmem>>, %arg8: memref<1x1x32xbf16, #tpu.memory_space<vmem>>, %arg9: memref<1x1x32xbf16, #tpu.memory_space<vmem>>, %arg10: memref<1x1x32xbf16, #tpu.memory_space<vmem>>, %arg11: memref<1x32x128xbf16, #tpu.memory_space<vmem>>, %arg12: memref<1x128xbf16, #tpu.memory_space<vmem>>, %arg13: memref<1x16x128xbf16, #tpu.memory_space<vmem>>, %arg14: memref<16x128xbf16, #tpu.memory_space<vmem>>, %arg15: memref<16x128xf32, #tpu.memory_space<vmem>>) attributes {dimension_semantics = [#tpu.dimension_semantics<parallel>, #tpu.dimension_semantics<arbitrary>], iteration_bounds = array<i64: 2, 4>, scalar_prefetch = 0 : i64, scratch_operands = 2 : i64, tpu.core_type = #tpu.core_type<tc>, window_params = [{transform_indices = @transform_0, window_bounds = array<i64: 1, 16, 128>}, {pipeline_mode = #tpu.pipeline_mode<synchronous>, transform_indices = @transform_1, window_bounds = array<i64: 1, 128>}, {pipeline_mode = #tpu.pipeline_mode<synchronous>, transform_indices = @transform_2, window_bounds = array<i64: 1, 128>}, {transform_indices = @transform_3, window_bounds = array<i64: 1, 128, 32>}, {transform_indices = @transform_4, window_bounds = array<i64: 1, 128, 32>}, {transform_indices = @transform_5, window_bounds = array<i64: 1, 128, 32>}, {transform_indices = @transform_6, window_bounds = array<i64: 1, 1, 32>}, {transform_indices = @transform_7, window_bounds = array<i64: 1, 1, 32>}, {transform_indices = @transform_8, window_bounds = array<i64: 1, 1, 32>}, {transform_indices = @transform_9, window_bounds = array<i64: 1, 32, 128>}, {pipeline_mode = #tpu.pipeline_mode<synchronous>, transform_indices = @transform_10, window_bounds = array<i64: 1, 128>}, {transform_indices = @transform_11, window_bounds = array<i64: 1, 16, 128>}]} {
    %c0_i32 = arith.constant 0 : i32
    %0 = arith.cmpi eq, %arg1, %c0_i32 : i32
    %1 = arith.extui %0 : i1 to i32
    %c0_i32_0 = arith.constant 0 : i32
    %2 = arith.cmpi ne, %1, %c0_i32_0 : i32
    scf.if %2 {
      %c0_35 = arith.constant 0 : index
      %c0_36 = arith.constant 0 : index
      %c0_37 = arith.constant 0 : index
      %54 = vector.load %arg2[%c0_35, %c0_36, %c0_37] : memref<1x16x128xbf16, #tpu.memory_space<vmem>>, vector<1x16x128xbf16>
      %55 = vector.shape_cast %54 : vector<1x16x128xbf16> to vector<16x128xbf16>
      %56 = arith.extf %55 : vector<16x128xbf16> to vector<16x128xf32>
      %c0_38 = arith.constant 0 : index
      %c0_39 = arith.constant 0 : index
      %57 = vector.load %arg3[%c0_38, %c0_39] : memref<1x128xbf16, #tpu.memory_space<vmem>>, vector<1x128xbf16>
      %c0_40 = arith.constant 0 : index
      %c0_41 = arith.constant 0 : index
      %58 = vector.load %arg4[%c0_40, %c0_41] : memref<1x128xbf16, #tpu.memory_space<vmem>>, vector<1x128xbf16>
      %cst_42 = arith.constant dense<0.000000e+00> : vector<16xf32>
      %59 = vector.multi_reduction <add>, %56, %cst_42 [1] : vector<16x128xf32> to vector<16xf32>
      %60 = vector.shape_cast %59 : vector<16xf32> to vector<16x1xf32>
      %cst_43 = arith.constant 1.280000e+02 : f32
      %61 = vector.broadcast %cst_43 : f32 to vector<16x1xf32>
      %62 = arith.divf %60, %61 : vector<16x1xf32>
      %63 = arith.mulf %56, %56 : vector<16x128xf32>
      %cst_44 = arith.constant dense<0.000000e+00> : vector<16xf32>
      %64 = vector.multi_reduction <add>, %63, %cst_44 [1] : vector<16x128xf32> to vector<16xf32>
      %65 = vector.shape_cast %64 : vector<16xf32> to vector<16x1xf32>
      %cst_45 = arith.constant 1.280000e+02 : f32
      %66 = vector.broadcast %cst_45 : f32 to vector<16x1xf32>
      %67 = arith.divf %65, %66 : vector<16x1xf32>
      %68 = arith.mulf %62, %62 : vector<16x1xf32>
      %69 = arith.subf %67, %68 : vector<16x1xf32>
      %cst_46 = arith.constant 0.000000e+00 : f32
      %70 = vector.broadcast %cst_46 : f32 to vector<16x1xf32>
      %71 = arith.maximumf %69, %70 : vector<16x1xf32>
      %72 = vector.broadcast %62 : vector<16x1xf32> to vector<16x128xf32>
      %73 = arith.subf %56, %72 : vector<16x128xf32>
      %cst_47 = arith.constant 9.99999997E-7 : f32
      %74 = vector.broadcast %cst_47 : f32 to vector<16x1xf32>
      %75 = arith.addf %71, %74 : vector<16x1xf32>
      %76 = math.rsqrt %75 : vector<16x1xf32>
      %77 = vector.broadcast %76 : vector<16x1xf32> to vector<16x128xf32>
      %78 = arith.mulf %73, %77 : vector<16x128xf32>
      %79 = arith.extf %57 : vector<1x128xbf16> to vector<1x128xf32>
      %80 = vector.broadcast %79 : vector<1x128xf32> to vector<16x128xf32>
      %81 = arith.mulf %78, %80 : vector<16x128xf32>
      %82 = arith.extf %58 : vector<1x128xbf16> to vector<1x128xf32>
      %83 = vector.broadcast %82 : vector<1x128xf32> to vector<16x128xf32>
      %84 = arith.addf %81, %83 : vector<16x128xf32>
      %85 = arith.truncf %84 : vector<16x128xf32> to vector<16x128xbf16>
      %c0_48 = arith.constant 0 : index
      %c0_49 = arith.constant 0 : index
      %86 = vector.load %arg14[%c0_48, %c0_49] : memref<16x128xbf16, #tpu.memory_space<vmem>>, vector<16x128xbf16>
      tpu.vector_store %arg14[%c0_48, %c0_49], %85 {strides = array<i32>} : memref<16x128xbf16, #tpu.memory_space<vmem>>, vector<16x128xbf16>,
      %c0_50 = arith.constant 0 : index
      %c0_51 = arith.constant 0 : index
      %87 = vector.load %arg12[%c0_50, %c0_51] : memref<1x128xbf16, #tpu.memory_space<vmem>>, vector<1x128xbf16>
      %88 = arith.extf %87 : vector<1x128xbf16> to vector<1x128xf32>
      %89 = vector.broadcast %88 : vector<1x128xf32> to vector<16x128xf32>
      %90 = arith.addf %56, %89 : vector<16x128xf32>
      %c0_52 = arith.constant 0 : index
      %c0_53 = arith.constant 0 : index
      %91 = vector.load %arg15[%c0_52, %c0_53] : memref<16x128xf32, #tpu.memory_space<vmem>>, vector<16x128xf32>
      tpu.vector_store %arg15[%c0_52, %c0_53], %90 {strides = array<i32>} : memref<16x128xf32, #tpu.memory_space<vmem>>, vector<16x128xf32>,
    } else {
    }
    %c0 = arith.constant 0 : index
    %c0_1 = arith.constant 0 : index
    %3 = vector.load %arg14[%c0, %c0_1] : memref<16x128xbf16, #tpu.memory_space<vmem>>, vector<16x128xbf16>
    %c0_2 = arith.constant 0 : index
    %c0_3 = arith.constant 0 : index
    %c0_4 = arith.constant 0 : index
    %4 = vector.load %arg5[%c0_2, %c0_3, %c0_4] : memref<1x128x32xbf16, #tpu.memory_space<vmem>>, vector<1x128x32xbf16>
    %5 = vector.shape_cast %4 : vector<1x128x32xbf16> to vector<128x32xbf16>
    %cst = arith.constant dense<0.000000e+00> : vector<16x32xf32>
    %6 = tpu.matmul %3, %5, %cst {dimension_numbers = #tpu.dot_dimension_numbers<[1], [0], [0], [1], [0, 0, 1, 1], [], []>} : vector<16x128xbf16>, vector<128x32xbf16>, vector<16x32xf32> -> vector<16x32xf32>
    %c0_5 = arith.constant 0 : index
    %c0_6 = arith.constant 0 : index
    %c0_7 = arith.constant 0 : index
    %7 = vector.load %arg8[%c0_5, %c0_6, %c0_7] : memref<1x1x32xbf16, #tpu.memory_space<vmem>>, vector<1x1x32xbf16>
    %8 = vector.shape_cast %7 : vector<1x1x32xbf16> to vector<1x32xbf16>
    %9 = arith.extf %8 : vector<1x32xbf16> to vector<1x32xf32>
    %10 = vector.broadcast %9 : vector<1x32xf32> to vector<16x32xf32>
    %11 = arith.addf %6, %10 : vector<16x32xf32>
    %12 = arith.truncf %11 : vector<16x32xf32> to vector<16x32xbf16>
    %c0_8 = arith.constant 0 : index
    %c0_9 = arith.constant 0 : index
    %c0_10 = arith.constant 0 : index
    %13 = vector.load %arg6[%c0_8, %c0_9, %c0_10] : memref<1x128x32xbf16, #tpu.memory_space<vmem>>, vector<1x128x32xbf16>
    %14 = vector.shape_cast %13 : vector<1x128x32xbf16> to vector<128x32xbf16>
    %cst_11 = arith.constant dense<0.000000e+00> : vector<16x32xf32>
    %15 = tpu.matmul %3, %14, %cst_11 {dimension_numbers = #tpu.dot_dimension_numbers<[1], [0], [0], [1], [0, 0, 1, 1], [], []>} : vector<16x128xbf16>, vector<128x32xbf16>, vector<16x32xf32> -> vector<16x32xf32>
    %c0_12 = arith.constant 0 : index
    %c0_13 = arith.constant 0 : index
    %c0_14 = arith.constant 0 : index
    %16 = vector.load %arg9[%c0_12, %c0_13, %c0_14] : memref<1x1x32xbf16, #tpu.memory_space<vmem>>, vector<1x1x32xbf16>
    %17 = vector.shape_cast %16 : vector<1x1x32xbf16> to vector<1x32xbf16>
    %18 = arith.extf %17 : vector<1x32xbf16> to vector<1x32xf32>
    %19 = vector.broadcast %18 : vector<1x32xf32> to vector<16x32xf32>
    %20 = arith.addf %15, %19 : vector<16x32xf32>
    %21 = arith.truncf %20 : vector<16x32xf32> to vector<16x32xbf16>
    %c0_15 = arith.constant 0 : index
    %c0_16 = arith.constant 0 : index
    %c0_17 = arith.constant 0 : index
    %22 = vector.load %arg7[%c0_15, %c0_16, %c0_17] : memref<1x128x32xbf16, #tpu.memory_space<vmem>>, vector<1x128x32xbf16>
    %23 = vector.shape_cast %22 : vector<1x128x32xbf16> to vector<128x32xbf16>
    %cst_18 = arith.constant dense<0.000000e+00> : vector<16x32xf32>
    %24 = tpu.matmul %3, %23, %cst_18 {dimension_numbers = #tpu.dot_dimension_numbers<[1], [0], [0], [1], [0, 0, 1, 1], [], []>} : vector<16x128xbf16>, vector<128x32xbf16>, vector<16x32xf32> -> vector<16x32xf32>
    %c0_19 = arith.constant 0 : index
    %c0_20 = arith.constant 0 : index
    %c0_21 = arith.constant 0 : index
    %25 = vector.load %arg10[%c0_19, %c0_20, %c0_21] : memref<1x1x32xbf16, #tpu.memory_space<vmem>>, vector<1x1x32xbf16>
    %26 = vector.shape_cast %25 : vector<1x1x32xbf16> to vector<1x32xbf16>
    %27 = arith.extf %26 : vector<1x32xbf16> to vector<1x32xf32>
    %28 = vector.broadcast %27 : vector<1x32xf32> to vector<16x32xf32>
    %29 = arith.addf %24, %28 : vector<16x32xf32>
    %30 = arith.truncf %29 : vector<16x32xf32> to vector<16x32xbf16>
    %cst_22 = arith.constant dense<0.000000e+00> : vector<16x16xf32>
    %31 = tpu.matmul %12, %21, %cst_22 {dimension_numbers = #tpu.dot_dimension_numbers<[1], [1], [0], [0], [0, 0, 1, 0], [], []>} : vector<16x32xbf16>, vector<16x32xbf16>, vector<16x16xf32> -> vector<16x16xf32>
    %cst_23 = arith.constant dense<0xFF800000> : vector<16xf32>
    %32 = vector.multi_reduction <maximumf>, %31, %cst_23 [1] : vector<16x16xf32> to vector<16xf32>
    %33 = vector.shape_cast %32 : vector<16xf32> to vector<16x1xf32>
    %34 = vector.broadcast %33 : vector<16x1xf32> to vector<16x16xf32>
    %35 = arith.subf %31, %34 : vector<16x16xf32>
    %36 = math.exp %35 : vector<16x16xf32>
    %cst_24 = arith.constant dense<0.000000e+00> : vector<16xf32>
    %37 = vector.multi_reduction <add>, %36, %cst_24 [1] : vector<16x16xf32> to vector<16xf32>
    %38 = vector.shape_cast %37 : vector<16xf32> to vector<16x1xf32>
    %39 = tpu.reciprocal %38 {approx = true} : vector<16x1xf32> -> vector<16x1xf32>
    %40 = vector.broadcast %39 : vector<16x1xf32> to vector<16x16xf32>
    %41 = arith.mulf %36, %40 : vector<16x16xf32>
    %42 = arith.truncf %41 : vector<16x16xf32> to vector<16x16xbf16>
    %cst_25 = arith.constant dense<0.000000e+00> : vector<16x32xf32>
    %43 = tpu.matmul %42, %30, %cst_25 {dimension_numbers = #tpu.dot_dimension_numbers<[1], [0], [0], [1], [0, 0, 1, 1], [], []>} : vector<16x16xbf16>, vector<16x32xbf16>, vector<16x32xf32> -> vector<16x32xf32>
    %c0_26 = arith.constant 0 : index
    %c0_27 = arith.constant 0 : index
    %44 = vector.load %arg15[%c0_26, %c0_27] : memref<16x128xf32, #tpu.memory_space<vmem>>, vector<16x128xf32>
    %45 = arith.truncf %43 : vector<16x32xf32> to vector<16x32xbf16>
    %c0_28 = arith.constant 0 : index
    %c0_29 = arith.constant 0 : index
    %c0_30 = arith.constant 0 : index
    %46 = vector.load %arg11[%c0_28, %c0_29, %c0_30] : memref<1x32x128xbf16, #tpu.memory_space<vmem>>, vector<1x32x128xbf16>
    %47 = vector.shape_cast %46 : vector<1x32x128xbf16> to vector<32x128xbf16>
    %cst_31 = arith.constant dense<0.000000e+00> : vector<16x128xf32>
    %48 = tpu.matmul %45, %47, %cst_31 {dimension_numbers = #tpu.dot_dimension_numbers<[1], [0], [0], [1], [0, 0, 1, 1], [], []>} : vector<16x32xbf16>, vector<32x128xbf16>, vector<16x128xf32> -> vector<16x128xf32>
    %49 = arith.addf %44, %48 : vector<16x128xf32>
    %c0_32 = arith.constant 0 : index
    %c0_33 = arith.constant 0 : index
    %50 = vector.load %arg15[%c0_32, %c0_33] : memref<16x128xf32, #tpu.memory_space<vmem>>, vector<16x128xf32>
    tpu.vector_store %arg15[%c0_32, %c0_33], %49 {strides = array<i32>} : memref<16x128xf32, #tpu.memory_space<vmem>>, vector<16x128xf32>,
    %c3_i32 = arith.constant 3 : i32
    %51 = arith.cmpi eq, %arg1, %c3_i32 : i32
    %52 = arith.extui %51 : i1 to i32
    %c0_i32_34 = arith.constant 0 : i32
    %53 = arith.cmpi ne, %52, %c0_i32_34 : i32
    scf.if %53 {
      %c0_35 = arith.constant 0 : index
      %c0_36 = arith.constant 0 : index
      %54 = vector.load %arg15[%c0_35, %c0_36] : memref<16x128xf32, #tpu.memory_space<vmem>>, vector<16x128xf32>
      %55 = arith.truncf %54 : vector<16x128xf32> to vector<16x128xbf16>
      %c0_37 = arith.constant 0 : index
      %c0_38 = arith.constant 0 : index
      %c0_39 = arith.constant 0 : index
      %56 = vector.load %arg13[%c0_37, %c0_38, %c0_39] : memref<1x16x128xbf16, #tpu.memory_space<vmem>>, vector<1x16x128xbf16>
      %57 = vector.shape_cast %56 : vector<1x16x128xbf16> to vector<16x128xbf16>
      %58 = vector.shape_cast %55 : vector<16x128xbf16> to vector<1x16x128xbf16>
      tpu.vector_store %arg13[%c0_37, %c0_38, %c0_39], %58 {strides = array<i32>} : memref<1x16x128xbf16, #tpu.memory_space<vmem>>, vector<1x16x128xbf16>,
    } else {
    }
    return
  }
  func.func @transform_0(%arg0: i32, %arg1: i32) -> (i32, i32, i32) {
    %c0_i32 = arith.constant 0 : i32
    %c0_i32_0 = arith.constant 0 : i32
    %c0_i32_1 = arith.constant 0 : i32
    return %arg0, %c0_i32, %c0_i32_0 : i32, i32, i32
  }
  func.func @transform_1(%arg0: i32, %arg1: i32) -> (i32, i32) {
    %c0_i32 = arith.constant 0 : i32
    %c0_i32_0 = arith.constant 0 : i32
    %c0_i32_1 = arith.constant 0 : i32
    return %c0_i32, %c0_i32_0 : i32, i32
  }
  func.func @transform_2(%arg0: i32, %arg1: i32) -> (i32, i32) {
    %c0_i32 = arith.constant 0 : i32
    %c0_i32_0 = arith.constant 0 : i32
    %c0_i32_1 = arith.constant 0 : i32
    return %c0_i32, %c0_i32_0 : i32, i32
  }
  func.func @transform_3(%arg0: i32, %arg1: i32) -> (i32, i32, i32) {
    %c0_i32 = arith.constant 0 : i32
    %c0_i32_0 = arith.constant 0 : i32
    %c0_i32_1 = arith.constant 0 : i32
    return %arg1, %c0_i32, %c0_i32_0 : i32, i32, i32
  }
  func.func @transform_4(%arg0: i32, %arg1: i32) -> (i32, i32, i32) {
    %c0_i32 = arith.constant 0 : i32
    %c0_i32_0 = arith.constant 0 : i32
    %c0_i32_1 = arith.constant 0 : i32
    return %arg1, %c0_i32, %c0_i32_0 : i32, i32, i32
  }
  func.func @transform_5(%arg0: i32, %arg1: i32) -> (i32, i32, i32) {
    %c0_i32 = arith.constant 0 : i32
    %c0_i32_0 = arith.constant 0 : i32
    %c0_i32_1 = arith.constant 0 : i32
    return %arg1, %c0_i32, %c0_i32_0 : i32, i32, i32
  }
  func.func @transform_6(%arg0: i32, %arg1: i32) -> (i32, i32, i32) {
    %c0_i32 = arith.constant 0 : i32
    %c0_i32_0 = arith.constant 0 : i32
    %c0_i32_1 = arith.constant 0 : i32
    return %arg1, %c0_i32, %c0_i32_0 : i32, i32, i32
  }
  func.func @transform_7(%arg0: i32, %arg1: i32) -> (i32, i32, i32) {
    %c0_i32 = arith.constant 0 : i32
    %c0_i32_0 = arith.constant 0 : i32
    %c0_i32_1 = arith.constant 0 : i32
    return %arg1, %c0_i32, %c0_i32_0 : i32, i32, i32
  }
  func.func @transform_8(%arg0: i32, %arg1: i32) -> (i32, i32, i32) {
    %c0_i32 = arith.constant 0 : i32
    %c0_i32_0 = arith.constant 0 : i32
    %c0_i32_1 = arith.constant 0 : i32
    return %arg1, %c0_i32, %c0_i32_0 : i32, i32, i32
  }
  func.func @transform_9(%arg0: i32, %arg1: i32) -> (i32, i32, i32) {
    %c0_i32 = arith.constant 0 : i32
    %c0_i32_0 = arith.constant 0 : i32
    %c0_i32_1 = arith.constant 0 : i32
    return %arg1, %c0_i32, %c0_i32_0 : i32, i32, i32
  }
  func.func @transform_10(%arg0: i32, %arg1: i32) -> (i32, i32) {
    %c0_i32 = arith.constant 0 : i32
    %c0_i32_0 = arith.constant 0 : i32
    %c0_i32_1 = arith.constant 0 : i32
    return %c0_i32, %c0_i32_0 : i32, i32
  }
  func.func @transform_11(%arg0: i32, %arg1: i32) -> (i32, i32, i32) {
    %c0_i32 = arith.constant 0 : i32
    %c0_i32_0 = arith.constant 0 : i32
    %c0_i32_1 = arith.constant 0 : i32
    return %arg0, %c0_i32, %c0_i32_0 : i32, i32, i32
  }
}

module attributes {stable_mosaic.version = 11 : i64} {
  func.func @_norm_kernel(%arg0: i32, %arg1: i32, %arg2: memref<1x16x128xbf16, #tpu.memory_space<vmem>>, %arg3: memref<1x128xbf16, #tpu.memory_space<vmem>>, %arg4: memref<1x128xbf16, #tpu.memory_space<vmem>>, %arg5: memref<1x16x128xbf16, #tpu.memory_space<vmem>>) attributes {dimension_semantics = [#tpu.dimension_semantics<parallel>, #tpu.dimension_semantics<parallel>], iteration_bounds = array<i64: 2, 1>, scalar_prefetch = 0 : i64, scratch_operands = 0 : i64, tpu.core_type = #tpu.core_type<tc>, window_params = [{transform_indices = @transform_0, window_bounds = array<i64: 1, 16, 128>}, {pipeline_mode = #tpu.pipeline_mode<synchronous>, transform_indices = @transform_1, window_bounds = array<i64: 1, 128>}, {pipeline_mode = #tpu.pipeline_mode<synchronous>, transform_indices = @transform_2, window_bounds = array<i64: 1, 128>}, {transform_indices = @transform_3, window_bounds = array<i64: 1, 16, 128>}]} {
    %c0 = arith.constant 0 : index
    %c0_0 = arith.constant 0 : index
    %c0_1 = arith.constant 0 : index
    %0 = vector.load %arg2[%c0, %c0_0, %c0_1] : memref<1x16x128xbf16, #tpu.memory_space<vmem>>, vector<1x16x128xbf16>
    %1 = vector.shape_cast %0 : vector<1x16x128xbf16> to vector<16x128xbf16>
    %2 = arith.extf %1 : vector<16x128xbf16> to vector<16x128xf32>
    %c0_2 = arith.constant 0 : index
    %c0_3 = arith.constant 0 : index
    %3 = vector.load %arg3[%c0_2, %c0_3] : memref<1x128xbf16, #tpu.memory_space<vmem>>, vector<1x128xbf16>
    %c0_4 = arith.constant 0 : index
    %c0_5 = arith.constant 0 : index
    %4 = vector.load %arg4[%c0_4, %c0_5] : memref<1x128xbf16, #tpu.memory_space<vmem>>, vector<1x128xbf16>
    %cst = arith.constant dense<0.000000e+00> : vector<16xf32>
    %5 = vector.multi_reduction <add>, %2, %cst [1] : vector<16x128xf32> to vector<16xf32>
    %6 = vector.shape_cast %5 : vector<16xf32> to vector<16x1xf32>
    %cst_6 = arith.constant 1.280000e+02 : f32
    %7 = vector.broadcast %cst_6 : f32 to vector<16x1xf32>
    %8 = arith.divf %6, %7 : vector<16x1xf32>
    %9 = arith.mulf %2, %2 : vector<16x128xf32>
    %cst_7 = arith.constant dense<0.000000e+00> : vector<16xf32>
    %10 = vector.multi_reduction <add>, %9, %cst_7 [1] : vector<16x128xf32> to vector<16xf32>
    %11 = vector.shape_cast %10 : vector<16xf32> to vector<16x1xf32>
    %cst_8 = arith.constant 1.280000e+02 : f32
    %12 = vector.broadcast %cst_8 : f32 to vector<16x1xf32>
    %13 = arith.divf %11, %12 : vector<16x1xf32>
    %14 = arith.mulf %8, %8 : vector<16x1xf32>
    %15 = arith.subf %13, %14 : vector<16x1xf32>
    %cst_9 = arith.constant 0.000000e+00 : f32
    %16 = vector.broadcast %cst_9 : f32 to vector<16x1xf32>
    %17 = arith.maximumf %15, %16 : vector<16x1xf32>
    %18 = vector.broadcast %8 : vector<16x1xf32> to vector<16x128xf32>
    %19 = arith.subf %2, %18 : vector<16x128xf32>
    %cst_10 = arith.constant 9.99999997E-7 : f32
    %20 = vector.broadcast %cst_10 : f32 to vector<16x1xf32>
    %21 = arith.addf %17, %20 : vector<16x1xf32>
    %22 = math.rsqrt %21 : vector<16x1xf32>
    %23 = vector.broadcast %22 : vector<16x1xf32> to vector<16x128xf32>
    %24 = arith.mulf %19, %23 : vector<16x128xf32>
    %25 = arith.extf %3 : vector<1x128xbf16> to vector<1x128xf32>
    %26 = vector.broadcast %25 : vector<1x128xf32> to vector<16x128xf32>
    %27 = arith.mulf %24, %26 : vector<16x128xf32>
    %28 = arith.extf %4 : vector<1x128xbf16> to vector<1x128xf32>
    %29 = vector.broadcast %28 : vector<1x128xf32> to vector<16x128xf32>
    %30 = arith.addf %27, %29 : vector<16x128xf32>
    %31 = arith.truncf %30 : vector<16x128xf32> to vector<16x128xbf16>
    %c0_11 = arith.constant 0 : index
    %c0_12 = arith.constant 0 : index
    %c0_13 = arith.constant 0 : index
    %32 = vector.load %arg5[%c0_11, %c0_12, %c0_13] : memref<1x16x128xbf16, #tpu.memory_space<vmem>>, vector<1x16x128xbf16>
    %33 = vector.shape_cast %32 : vector<1x16x128xbf16> to vector<16x128xbf16>
    %34 = vector.shape_cast %31 : vector<16x128xbf16> to vector<1x16x128xbf16>
    tpu.vector_store %arg5[%c0_11, %c0_12, %c0_13], %34 {strides = array<i32>} : memref<1x16x128xbf16, #tpu.memory_space<vmem>>, vector<1x16x128xbf16>,
    return
  }
  func.func @transform_0(%arg0: i32, %arg1: i32) -> (i32, i32, i32) {
    %c0_i32 = arith.constant 0 : i32
    %c0_i32_0 = arith.constant 0 : i32
    return %arg0, %arg1, %c0_i32 : i32, i32, i32
  }
  func.func @transform_1(%arg0: i32, %arg1: i32) -> (i32, i32) {
    %c0_i32 = arith.constant 0 : i32
    %c0_i32_0 = arith.constant 0 : i32
    %c0_i32_1 = arith.constant 0 : i32
    return %c0_i32, %c0_i32_0 : i32, i32
  }
  func.func @transform_2(%arg0: i32, %arg1: i32) -> (i32, i32) {
    %c0_i32 = arith.constant 0 : i32
    %c0_i32_0 = arith.constant 0 : i32
    %c0_i32_1 = arith.constant 0 : i32
    return %c0_i32, %c0_i32_0 : i32, i32
  }
  func.func @transform_3(%arg0: i32, %arg1: i32) -> (i32, i32, i32) {
    %c0_i32 = arith.constant 0 : i32
    %c0_i32_0 = arith.constant 0 : i32
    return %arg0, %arg1, %c0_i32 : i32, i32, i32
  }
}

module attributes {stable_mosaic.version = 11 : i64} {
  func.func @_mlp_kernel(%arg0: i32, %arg1: i32, %arg2: memref<1x16x128xbf16, #tpu.memory_space<vmem>>, %arg3: memref<1x128xbf16, #tpu.memory_space<vmem>>, %arg4: memref<1x128xbf16, #tpu.memory_space<vmem>>, %arg5: memref<128x512xbf16, #tpu.memory_space<vmem>>, %arg6: memref<1x512xbf16, #tpu.memory_space<vmem>>, %arg7: memref<512x128xbf16, #tpu.memory_space<vmem>>, %arg8: memref<1x128xbf16, #tpu.memory_space<vmem>>, %arg9: memref<1x16x128xbf16, #tpu.memory_space<vmem>>) attributes {dimension_semantics = [#tpu.dimension_semantics<parallel>, #tpu.dimension_semantics<parallel>], iteration_bounds = array<i64: 2, 1>, scalar_prefetch = 0 : i64, scratch_operands = 0 : i64, tpu.core_type = #tpu.core_type<tc>, window_params = [{transform_indices = @transform_0, window_bounds = array<i64: 1, 16, 128>}, {pipeline_mode = #tpu.pipeline_mode<synchronous>, transform_indices = @transform_1, window_bounds = array<i64: 1, 128>}, {pipeline_mode = #tpu.pipeline_mode<synchronous>, transform_indices = @transform_2, window_bounds = array<i64: 1, 128>}, {pipeline_mode = #tpu.pipeline_mode<synchronous>, transform_indices = @transform_3, window_bounds = array<i64: 128, 512>}, {pipeline_mode = #tpu.pipeline_mode<synchronous>, transform_indices = @transform_4, window_bounds = array<i64: 1, 512>}, {pipeline_mode = #tpu.pipeline_mode<synchronous>, transform_indices = @transform_5, window_bounds = array<i64: 512, 128>}, {pipeline_mode = #tpu.pipeline_mode<synchronous>, transform_indices = @transform_6, window_bounds = array<i64: 1, 128>}, {transform_indices = @transform_7, window_bounds = array<i64: 1, 16, 128>}]} {
    %c0 = arith.constant 0 : index
    %c0_0 = arith.constant 0 : index
    %c0_1 = arith.constant 0 : index
    %0 = vector.load %arg2[%c0, %c0_0, %c0_1] : memref<1x16x128xbf16, #tpu.memory_space<vmem>>, vector<1x16x128xbf16>
    %1 = vector.shape_cast %0 : vector<1x16x128xbf16> to vector<16x128xbf16>
    %2 = arith.extf %1 : vector<16x128xbf16> to vector<16x128xf32>
    %c0_2 = arith.constant 0 : index
    %c0_3 = arith.constant 0 : index
    %3 = vector.load %arg3[%c0_2, %c0_3] : memref<1x128xbf16, #tpu.memory_space<vmem>>, vector<1x128xbf16>
    %c0_4 = arith.constant 0 : index
    %c0_5 = arith.constant 0 : index
    %4 = vector.load %arg4[%c0_4, %c0_5] : memref<1x128xbf16, #tpu.memory_space<vmem>>, vector<1x128xbf16>
    %cst = arith.constant dense<0.000000e+00> : vector<16xf32>
    %5 = vector.multi_reduction <add>, %2, %cst [1] : vector<16x128xf32> to vector<16xf32>
    %6 = vector.shape_cast %5 : vector<16xf32> to vector<16x1xf32>
    %cst_6 = arith.constant 1.280000e+02 : f32
    %7 = vector.broadcast %cst_6 : f32 to vector<16x1xf32>
    %8 = arith.divf %6, %7 : vector<16x1xf32>
    %9 = arith.mulf %2, %2 : vector<16x128xf32>
    %cst_7 = arith.constant dense<0.000000e+00> : vector<16xf32>
    %10 = vector.multi_reduction <add>, %9, %cst_7 [1] : vector<16x128xf32> to vector<16xf32>
    %11 = vector.shape_cast %10 : vector<16xf32> to vector<16x1xf32>
    %cst_8 = arith.constant 1.280000e+02 : f32
    %12 = vector.broadcast %cst_8 : f32 to vector<16x1xf32>
    %13 = arith.divf %11, %12 : vector<16x1xf32>
    %14 = arith.mulf %8, %8 : vector<16x1xf32>
    %15 = arith.subf %13, %14 : vector<16x1xf32>
    %cst_9 = arith.constant 0.000000e+00 : f32
    %16 = vector.broadcast %cst_9 : f32 to vector<16x1xf32>
    %17 = arith.maximumf %15, %16 : vector<16x1xf32>
    %18 = vector.broadcast %8 : vector<16x1xf32> to vector<16x128xf32>
    %19 = arith.subf %2, %18 : vector<16x128xf32>
    %cst_10 = arith.constant 9.99999997E-7 : f32
    %20 = vector.broadcast %cst_10 : f32 to vector<16x1xf32>
    %21 = arith.addf %17, %20 : vector<16x1xf32>
    %22 = math.rsqrt %21 : vector<16x1xf32>
    %23 = vector.broadcast %22 : vector<16x1xf32> to vector<16x128xf32>
    %24 = arith.mulf %19, %23 : vector<16x128xf32>
    %25 = arith.extf %3 : vector<1x128xbf16> to vector<1x128xf32>
    %26 = vector.broadcast %25 : vector<1x128xf32> to vector<16x128xf32>
    %27 = arith.mulf %24, %26 : vector<16x128xf32>
    %28 = arith.extf %4 : vector<1x128xbf16> to vector<1x128xf32>
    %29 = vector.broadcast %28 : vector<1x128xf32> to vector<16x128xf32>
    %30 = arith.addf %27, %29 : vector<16x128xf32>
    %31 = arith.truncf %30 : vector<16x128xf32> to vector<16x128xbf16>
    %c0_11 = arith.constant 0 : index
    %c0_12 = arith.constant 0 : index
    %32 = vector.load %arg5[%c0_11, %c0_12] : memref<128x512xbf16, #tpu.memory_space<vmem>>, vector<128x512xbf16>
    %cst_13 = arith.constant dense<0.000000e+00> : vector<16x512xf32>
    %33 = tpu.matmul %31, %32, %cst_13 {dimension_numbers = #tpu.dot_dimension_numbers<[1], [0], [0], [1], [0, 0, 1, 1], [], []>} : vector<16x128xbf16>, vector<128x512xbf16>, vector<16x512xf32> -> vector<16x512xf32>
    %c0_14 = arith.constant 0 : index
    %c0_15 = arith.constant 0 : index
    %34 = vector.load %arg6[%c0_14, %c0_15] : memref<1x512xbf16, #tpu.memory_space<vmem>>, vector<1x512xbf16>
    %35 = arith.extf %34 : vector<1x512xbf16> to vector<1x512xf32>
    %36 = vector.broadcast %35 : vector<1x512xf32> to vector<16x512xf32>
    %37 = arith.addf %33, %36 : vector<16x512xf32>
    %38 = arith.mulf %37, %37 : vector<16x512xf32>
    %39 = arith.mulf %37, %38 : vector<16x512xf32>
    %cst_16 = arith.constant 4.471500e-02 : f32
    %40 = vector.broadcast %cst_16 : f32 to vector<16x512xf32>
    %41 = arith.mulf %40, %39 : vector<16x512xf32>
    %42 = arith.addf %37, %41 : vector<16x512xf32>
    %cst_17 = arith.constant 0.797884583 : f32
    %43 = vector.broadcast %cst_17 : f32 to vector<16x512xf32>
    %44 = arith.mulf %43, %42 : vector<16x512xf32>
    %45 = math.tanh %44 : vector<16x512xf32>
    %cst_18 = arith.constant 1.000000e+00 : f32
    %46 = vector.broadcast %cst_18 : f32 to vector<16x512xf32>
    %47 = arith.addf %46, %45 : vector<16x512xf32>
    %cst_19 = arith.constant 5.000000e-01 : f32
    %48 = vector.broadcast %cst_19 : f32 to vector<16x512xf32>
    %49 = arith.mulf %48, %47 : vector<16x512xf32>
    %50 = arith.mulf %37, %49 : vector<16x512xf32>
    %51 = arith.truncf %50 : vector<16x512xf32> to vector<16x512xbf16>
    %c0_20 = arith.constant 0 : index
    %c0_21 = arith.constant 0 : index
    %52 = vector.load %arg7[%c0_20, %c0_21] : memref<512x128xbf16, #tpu.memory_space<vmem>>, vector<512x128xbf16>
    %cst_22 = arith.constant dense<0.000000e+00> : vector<16x128xf32>
    %53 = tpu.matmul %51, %52, %cst_22 {dimension_numbers = #tpu.dot_dimension_numbers<[1], [0], [0], [1], [0, 0, 1, 1], [], []>} : vector<16x512xbf16>, vector<512x128xbf16>, vector<16x128xf32> -> vector<16x128xf32>
    %c0_23 = arith.constant 0 : index
    %c0_24 = arith.constant 0 : index
    %54 = vector.load %arg8[%c0_23, %c0_24] : memref<1x128xbf16, #tpu.memory_space<vmem>>, vector<1x128xbf16>
    %55 = arith.extf %54 : vector<1x128xbf16> to vector<1x128xf32>
    %56 = vector.broadcast %55 : vector<1x128xf32> to vector<16x128xf32>
    %57 = arith.addf %53, %56 : vector<16x128xf32>
    %58 = arith.addf %2, %57 : vector<16x128xf32>
    %59 = arith.truncf %58 : vector<16x128xf32> to vector<16x128xbf16>
    %c0_25 = arith.constant 0 : index
    %c0_26 = arith.constant 0 : index
    %c0_27 = arith.constant 0 : index
    %60 = vector.load %arg9[%c0_25, %c0_26, %c0_27] : memref<1x16x128xbf16, #tpu.memory_space<vmem>>, vector<1x16x128xbf16>
    %61 = vector.shape_cast %60 : vector<1x16x128xbf16> to vector<16x128xbf16>
    %62 = vector.shape_cast %59 : vector<16x128xbf16> to vector<1x16x128xbf16>
    tpu.vector_store %arg9[%c0_25, %c0_26, %c0_27], %62 {strides = array<i32>} : memref<1x16x128xbf16, #tpu.memory_space<vmem>>, vector<1x16x128xbf16>,
    return
  }
  func.func @transform_0(%arg0: i32, %arg1: i32) -> (i32, i32, i32) {
    %c0_i32 = arith.constant 0 : i32
    %c0_i32_0 = arith.constant 0 : i32
    return %arg0, %arg1, %c0_i32 : i32, i32, i32
  }
  func.func @transform_1(%arg0: i32, %arg1: i32) -> (i32, i32) {
    %c0_i32 = arith.constant 0 : i32
    %c0_i32_0 = arith.constant 0 : i32
    %c0_i32_1 = arith.constant 0 : i32
    return %c0_i32, %c0_i32_0 : i32, i32
  }
  func.func @transform_2(%arg0: i32, %arg1: i32) -> (i32, i32) {
    %c0_i32 = arith.constant 0 : i32
    %c0_i32_0 = arith.constant 0 : i32
    %c0_i32_1 = arith.constant 0 : i32
    return %c0_i32, %c0_i32_0 : i32, i32
  }
  func.func @transform_3(%arg0: i32, %arg1: i32) -> (i32, i32) {
    %c0_i32 = arith.constant 0 : i32
    %c0_i32_0 = arith.constant 0 : i32
    %c0_i32_1 = arith.constant 0 : i32
    return %c0_i32, %c0_i32_0 : i32, i32
  }
  func.func @transform_4(%arg0: i32, %arg1: i32) -> (i32, i32) {
    %c0_i32 = arith.constant 0 : i32
    %c0_i32_0 = arith.constant 0 : i32
    %c0_i32_1 = arith.constant 0 : i32
    return %c0_i32, %c0_i32_0 : i32, i32
  }
  func.func @transform_5(%arg0: i32, %arg1: i32) -> (i32, i32) {
    %c0_i32 = arith.constant 0 : i32
    %c0_i32_0 = arith.constant 0 : i32
    %c0_i32_1 = arith.constant 0 : i32
    return %c0_i32, %c0_i32_0 : i32, i32
  }
  func.func @transform_6(%arg0: i32, %arg1: i32) -> (i32, i32) {
    %c0_i32 = arith.constant 0 : i32
    %c0_i32_0 = arith.constant 0 : i32
    %c0_i32_1 = arith.constant 0 : i32
    return %c0_i32, %c0_i32_0 : i32, i32
  }
  func.func @transform_7(%arg0: i32, %arg1: i32) -> (i32, i32, i32) {
    %c0_i32 = arith.constant 0 : i32
    %c0_i32_0 = arith.constant 0 : i32
    return %arg0, %arg1, %c0_i32 : i32, i32, i32
  }
}

</mosaic_0001>

<llo_original>
// kernel: vit_forward.9
$region0: #{vit_forward.9}
  #allocation0 [shape = 'u32[]', space=smem, size = 0x4, offset = 0x4, fixed_abs, tag = 'smem constant byte address 0x4 - core index']
  #allocation1 [shape = 'u32[144,128]{1,0:T(1,128)}', space=vmem, size = 0x12000, scoped, tag = 'internal scratch']
  %s0 = inlined_call_operand.hbm [shape: bf16[2,16,128], index: 0, kind: input, shape index: {}]
  %s1 = inlined_call_operand.hbm [shape: bf16[1,128], index: 1, kind: input, shape index: {}]
  %s2 = inlined_call_operand.hbm [shape: bf16[1,128], index: 2, kind: input, shape index: {}]
  %s3 = inlined_call_operand.hbm [shape: bf16[2,16,128], index: 3, kind: output, shape index: {}]
  %s4 = sld [smem:[#allocation0]]
  $region57: #{vit_forward.9} parent=0
    _
  %s6 = ssub.s32 1, %s4
  %s7 = scalar_select 0, %s6, %s4
  $region1: #{vit_forward.9} parent=0
    #allocation2 [shape = 'u8[8192]{0}', space=vmem, size = 0x2000, scoped, tag = 'input window, operand 0']
    #allocation3 [shape = 's32[2]{0}', space=sflag, size = 0x8, scoped, tag = 'scoped memory for vit_forward.9']
    #allocation4 [shape = 's32[2]{0}', space=sflag, size = 0x8, scoped, tag = 'scoped memory for vit_forward.9']
    #allocation5 [shape = 'u8[512]{0}', space=vmem, size = 0x400, scoped, tag = 'input window, operand 1, single buffered']
    #allocation6 [shape = 's32[1]{0}', space=sflag, size = 0x4, scoped, tag = 'scoped memory for vit_forward.9']
    #allocation7 [shape = 'u8[512]{0}', space=vmem, size = 0x400, scoped, tag = 'input window, operand 2, single buffered']
    #allocation8 [shape = 'u8[8192]{0}', space=vmem, size = 0x2000, scoped, tag = 'output window, operand 0']
    %8 = vsyncpa [#allocation3], 0
    %s9 = scalar_lea.sflag [#allocation3], 1
    %10 = vsyncpa %s9, 0
    %11 = vsyncpa [#allocation6], 0
    %12 = vsyncpa [#allocation4], 0
    %s13 = scalar_lea.sflag [#allocation4], 1
    %14 = vsyncpa %s13, 0
    loop: start=0, step=1, limit=4
    $region2: #{vit_forward.9} parent=1 // loop_pre_header
      _
    $region3: #{vit_forward.9} parent=1 // loop_header
      %s16 = sphi 0, %s20
      %p17 = scmp.ge.s32.totalorder %s16, 4
      %s23 = sphi 0, %s35
      %s24 = sphi 0, %s31
      %s25 = sphi 0, %s23
      %s26 = sphi 0, %s24
      %s27 = sphi 0, %s25
      %s28 = sphi 0, %s26
      %s40 = sphi 0, %s42
      %s43 = sphi 0, %s40
      %s44 = sphi 0, %s43
      %s60 = sphi 0, %s44
      %s64 = sphi 0, %s64
      %s66 = sphi 0, %s64
      %s67 = sphi 0, %s66
      %s81 = sphi 0, %s67
      %s85 = sphi 0, %s85
      %s87 = sphi 0, %s85
      %s88 = sphi 0, %s87
      %s102 = sphi 0, %s88
      %s110 = sphi 0, %s112
      %s113 = sphi 0, %s110
      %s114 = sphi 0, %s113
      %s130 = sphi 0, %s114
    $region4: #{vit_forward.9} parent=1 // loop_header_branch
      %19 = sbr.rel (%p17) target = $region8
    $region5: #{vit_forward.9} parent=1 // loop_body
      %s21 = ssub.s32 %s16, 1
      %s22 = ssub.s32 %s16, 2
      %s29 = sadd.s32 1, %s24
      %p30 = scmp.ge.s32.totalorder %s29, 1
      %s31 = scalar_select %p30, 0, %s29
      %s32 = sadd.s32 1, %s23
      %s33 = scalar_select %p30, %s32, %s23
      %p34 = scmp.ge.s32.totalorder %s33, 2
      %s35 = scalar_select %p34, 0, %s33
      %s36 = ssub.s32 %s23, %s35
      %s37 = ssub.s32 %s24, %s31
      %s38 = sor.u32 %s36, %s37
      %p39 = scmp.eq.s32.totalorder %s38, 0
      %s41 = sadd.s32 %s40, 1
      %s42 = scalar_select %p39, %s40, %s41
      %p45 = pneg %p39
      %p46 = scmp.eq.s32.totalorder %s16, 1
      %p47 = por %p45, %p46
      %p48 = scmp.ne.s32.totalorder %s40, %s43
      %p49 = scmp.eq.s32.totalorder %s16, 0
      %p50 = por %p48, %p49
      %p51 = scmp.ne.s32.totalorder %s40, %s43
      %p52 = scmp.eq.s32.totalorder %s21, 1
      %p53 = por %p51, %p52
      %p54 = scmp.ne.s32.totalorder %s43, %s44
      %p55 = scmp.eq.s32.totalorder %s21, 0
      %p56 = por %p54, %p55
      %p57 = scmp.ne.s32.totalorder %s43, %s44
      %p58 = scmp.eq.s32.totalorder %s22, 1
      %p59 = por %p57, %p58
      %p61 = scmp.ne.s32.totalorder %s44, %s60
      %p62 = scmp.eq.s32.totalorder %s22, 0
      %p63 = por %p61, %p62
      %s65 = sadd.s32 %s64, 1
      %p68 = scmp.eq.s32.totalorder %s16, 1
      %p69 = scmp.ne.s32.totalorder %s64, %s66
      %p70 = scmp.eq.s32.totalorder %s16, 0
      %p71 = por %p69, %p70
      %p72 = scmp.ne.s32.totalorder %s64, %s66
      %p73 = scmp.eq.s32.totalorder %s21, 1
      %p74 = por %p72, %p73
      %p75 = scmp.ne.s32.totalorder %s66, %s67
      %p76 = scmp.eq.s32.totalorder %s21, 0
      %p77 = por %p75, %p76
      %p78 = scmp.ne.s32.totalorder %s66, %s67
      %p79 = scmp.eq.s32.totalorder %s22, 1
      %p80 = por %p78, %p79
      %p82 = scmp.ne.s32.totalorder %s67, %s81
      %p83 = scmp.eq.s32.totalorder %s22, 0
      %p84 = por %p82, %p83
      %s86 = sadd.s32 %s85, 1
      %p89 = scmp.eq.s32.totalorder %s16, 1
      %p90 = scmp.ne.s32.totalorder %s85, %s87
      %p91 = scmp.eq.s32.totalorder %s16, 0
      %p92 = por %p90, %p91
      %p93 = scmp.ne.s32.totalorder %s85, %s87
      %p94 = scmp.eq.s32.totalorder %s21, 1
      %p95 = por %p93, %p94
      %p96 = scmp.ne.s32.totalorder %s87, %s88
      %p97 = scmp.eq.s32.totalorder %s21, 0
      %p98 = por %p96, %p97
      %p99 = scmp.ne.s32.totalorder %s87, %s88
      %p100 = scmp.eq.s32.totalorder %s22, 1
      %p101 = por %p99, %p100
      %p103 = scmp.ne.s32.totalorder %s88, %s102
      %p104 = scmp.eq.s32.totalorder %s22, 0
      %p105 = por %p103, %p104
      %s106 = ssub.s32 %s23, %s35
      %s107 = ssub.s32 %s24, %s31
      %s108 = sor.u32 %s106, %s107
      %p109 = scmp.eq.s32.totalorder %s108, 0
      %s111 = sadd.s32 %s110, 1
      %s112 = scalar_select %p109, %s110, %s111
      %p115 = pneg %p109
      %p116 = scmp.eq.s32.totalorder %s16, 1
      %p117 = por %p115, %p116
      %p118 = scmp.ne.s32.totalorder %s110, %s113
      %p119 = scmp.eq.s32.totalorder %s16, 0
      %p120 = por %p118, %p119
      %p121 = scmp.ne.s32.totalorder %s110, %s113
      %p122 = scmp.eq.s32.totalorder %s21, 1
      %p123 = por %p121, %p122
      %p124 = scmp.ne.s32.totalorder %s113, %s114
      %p125 = scmp.eq.s32.totalorder %s21, 0
      %p126 = por %p124, %p125
      %p127 = scmp.ne.s32.totalorder %s113, %s114
      %p128 = scmp.eq.s32.totalorder %s22, 1
      %p129 = por %p127, %p128
      %p131 = scmp.ne.s32.totalorder %s114, %s130
      %p132 = scmp.eq.s32.totalorder %s22, 0
      %p133 = por %p131, %p132
      %p134 = scmp.le.s32.totalorder 1, %s16
      %p135 = scmp.lt.s32.totalorder %s16, 3
      %p136 = pnand %p134, %p135
      %p137 = pneg %p136
      // Predicated region
      $region9: #{vit_forward.9} parent=5 // pred_check
        _
      $region10: #{vit_forward.9} parent=5 // pred_check_branch
        %139 = sbr.rel (%p136) target = $region12
      $region11: #{vit_forward.9} parent=5 // pred_region
        %s140 = ssub.s32 %s16, 1
        // Predicated region
        $region13: #{vit_forward.9} parent=11 // pred_check
          %p141 = pneg %p77
        $region14: #{vit_forward.9} parent=11 // pred_check_branch
          %143 = sbr.rel (%p141) target = $region16
        $region15: #{vit_forward.9} parent=11 // pred_region
          %s145 = ssub.s32 16, 16
          %146 = vsyncadd [#allocation6], %s145
          %s148 = sshll.u32 [#allocation5], 4
          %s149 = int_to_ptr.vmem [resolvable:$true] %s148
          %151 = dma.hbm_to_vmem [thread:$0]  %s1, 16, %s149, [#allocation6]
        $region16: #{vit_forward.9} parent=11 // pred_fallthru
          _
        // Predicated region
        $region17: #{vit_forward.9} parent=11 // pred_check
          %p152 = pneg %p98
        $region18: #{vit_forward.9} parent=11 // pred_check_branch
          %154 = sbr.rel (%p152) target = $region20
        $region19: #{vit_forward.9} parent=11 // pred_region
          %s156 = ssub.s32 16, 16
          %157 = vsyncadd [#allocation6], %s156
          %s159 = sshll.u32 [#allocation7], 4
          %s160 = int_to_ptr.vmem [resolvable:$true] %s159
          %162 = dma.hbm_to_vmem [thread:$0]  %s2, 16, %s160, [#allocation6]
        $region20: #{vit_forward.9} parent=11 // pred_fallthru
          _
      $region12: #{vit_forward.9} parent=5 // pred_fallthru
        _
      %p163 = scmp.lt.s32.totalorder %s16, 2
      // Predicated region
      $region21: #{vit_forward.9} parent=5 // pred_check
        %p164 = pneg %p163
      $region22: #{vit_forward.9} parent=5 // pred_check_branch
        %166 = sbr.rel (%p164) target = $region24
      $region23: #{vit_forward.9} parent=5 // pred_region
        // Predicated region
        $region25: #{vit_forward.9} parent=23 // pred_check
          %p167 = pneg %p50
        $region26: #{vit_forward.9} parent=23 // pred_check_branch
          %169 = sbr.rel (%p167) target = $region28
        $region27: #{vit_forward.9} parent=23 // pred_region
          %s170 = sand.u32 %s40, 1
          %s171 = scalar_lea.sflag [#allocation3], %s170
          %s172 = sand.u32 %s40, 1
          %s173 = smul.addr %s172, 8
          %s174 = scalar_lea.vmem [#allocation2], %s173
          %s175 = smul.u32 2, %s24
          %s177 = ssub.s32 128, 128
          %178 = vsyncadd %s171, %s177
          %s179 = smul.addr %s23, 2
          %s180 = sadd.s32 %s175, %s179
          %s181 = smul.addr %s180, 64
          %s182 = scalar_lea.hbm %s0, %s181
          %s183 = sshll.u32 %s174, 4
          %s184 = int_to_ptr.vmem [resolvable:$true] %s183
          %189 = dma.hbm_to_vmem [thread:$0]  %s182, 128, %s184, %s171, 64, 64, 4
        $region28: #{vit_forward.9} parent=23 // pred_fallthru
          _
      $region24: #{vit_forward.9} parent=5 // pred_fallthru
        _
      %p190 = scmp.le.s32.totalorder 1, %s16
      %p191 = scmp.lt.s32.totalorder %s16, 3
      %p192 = pnand %p190, %p191
      %p193 = pneg %p192
      // Predicated region
      $region29: #{vit_forward.9} parent=5 // pred_check
        _
      $region30: #{vit_forward.9} parent=5 // pred_check_branch
        %195 = sbr.rel (%p192) target = $region32
      $region31: #{vit_forward.9} parent=5 // pred_region
        %s196 = ssub.s32 %s16, 1
        %s197 = sand.u32 %s43, 1
        %s198 = scalar_lea.sflag [#allocation3], %s197
        %s199 = sand.u32 %s43, 1
        %s200 = smul.addr %s199, 8
        %s201 = scalar_lea.vmem [#allocation2], %s200
        // Predicated region
        $region33: #{vit_forward.9} parent=31 // pred_check
          %p202 = pneg %p56
        $region34: #{vit_forward.9} parent=31 // pred_check_branch
          %204 = sbr.rel (%p202) target = $region36
        $region35: #{vit_forward.9} parent=31 // pred_region
          %205 = dma.done %s198, 128
        $region36: #{vit_forward.9} parent=31 // pred_fallthru
          _
        // Predicated region
        $region37: #{vit_forward.9} parent=31 // pred_check
          %p206 = pneg %p77
        $region38: #{vit_forward.9} parent=31 // pred_check_branch
          %208 = sbr.rel (%p206) target = $region40
        $region39: #{vit_forward.9} parent=31 // pred_region
          %209 = dma.done [#allocation6], 16
        $region40: #{vit_forward.9} parent=31 // pred_fallthru
          _
        // Predicated region
        $region41: #{vit_forward.9} parent=31 // pred_check
          %p210 = pneg %p98
        $region42: #{vit_forward.9} parent=31 // pred_check_branch
          %212 = sbr.rel (%p210) target = $region44
        $region43: #{vit_forward.9} parent=31 // pred_region
          %213 = dma.done [#allocation6], 16
        $region44: #{vit_forward.9} parent=31 // pred_fallthru
          _
        %s214 = sand.u32 %s43, 1
        %s215 = scalar_lea.sflag [#allocation3], %s214
        %s216 = sand.u32 %s43, 1
        %s217 = smul.addr %s216, 8
        %s218 = scalar_lea.vmem [#allocation2], %s217
        %p219 = pneg %p56
        %p220 = pneg %p53
        %p221 = pneg %p77
        %p222 = pneg %p74
        %p223 = pneg %p98
        %p224 = pneg %p95
        %p225 = pneg %p126
        %p226 = pneg %p123
        %s227 = sand.u32 %s113, 1
        %s228 = scalar_lea.sflag [#allocation4], %s227
        %s229 = sand.u32 %s113, 1
        %s230 = smul.addr %s229, 8
        %s231 = scalar_lea.vmem [#allocation8], %s230
        %s232 = smul.u32 2, %s26
        %s233 = smul.u32 2, %s26
        %v234 = vld [vmem:[%s201] sm:$0xf]
        %v235 = vld [vmem:[%s201 + $0x4] sm:$0xf]
        %v236 = vunpack.c.l.bf16 %v234
        %v237 = vunpack.c.l.bf16 %v235
        %v238 = vld [vmem:[#allocation5] sm:$0x1]
        %v239 = vld [vmem:[#allocation7] sm:$0x1]
        %240 = vadd.xlane.f32.xlu0 %v236
        %v241 = vpop.xlane.xlu0 %240
        %242 = vadd.xlane.f32.xlu0 %v237
        %v243 = vpop.xlane.xlu0 %242
        %v244 = vrcp.pop 128.0
        %v245 = vmul.f32 %v241, %v244
        %v246 = vmul.f32 %v243, %v244
        %v247 = vmul.f32 %v236, %v236
        %v248 = vmul.f32 %v237, %v237
        %249 = vadd.xlane.f32.xlu0 %v247
        %v250 = vpop.xlane.xlu0 %249
        %251 = vadd.xlane.f32.xlu0 %v248
        %v252 = vpop.xlane.xlu0 %251
        %v253 = vmul.f32 %v250, %v244
        %v254 = vmul.f32 %v252, %v244
        %v255 = vmul.f32 %v245, %v245
        %v256 = vmul.f32 %v246, %v246
        %v257 = vsub.f32 %v253, %v255
        %v258 = vsub.f32 %v254, %v256
        %v259 = vmax.f32 %v257, 0.0
        %v260 = vmax.f32 %v258, 0.0
        %v261 = vsub.f32 %v236, %v245
        %v262 = vsub.f32 %v237, %v246
        %v263 = vadd.f32 %v259, 1e-06
        %v264 = vadd.f32 %v260, 1e-06
        %v265 = vrsqrt.pop %v263
        %v266 = vrsqrt.pop %v264
        %v267 = vmul.f32 %v261, %v265
        %v268 = vmul.f32 %v262, %v266
        %v269 = vunpack.c.l.bf16 %v238
        %v270 = vlaneseq
        %v271 = vshrl.u32 %v270, 7
        %v272 = vsub.s32 0, %v271
        %v273 = vrot.slane %v269, %v272
        %v274 = vmul.f32 %v267, %v273
        %v275 = vmul.f32 %v268, %v273
        %v276 = vunpack.c.l.bf16 %v239
        %v277 = vlaneseq
        %v278 = vshrl.u32 %v277, 7
        %v279 = vsub.s32 0, %v278
        %v280 = vrot.slane %v276, %v279
        %v281 = vadd.f32 %v274, %v280
        %v282 = vadd.f32 %v275, %v280
        %v283 = vpack.c.bf16 %v282, %v281
        %v285 = vunpack.c.l.b16 %v283
        %v286 = vunpack.c.h.b16 %v283
        %v287 = vpack.c.b16 %v285, %v285
        %v288 = vpack.c.b16 %v286, %v286
        %291 = vst [vmem:[%s231] sm:$0xf] %v287
        %292 = vst [vmem:[%s231 + $0x4] sm:$0xf] %v288
        %s293 = sand.u32 %s113, 1
        %s294 = scalar_lea.sflag [#allocation4], %s293
        %s295 = sand.u32 %s113, 1
        %s296 = smul.addr %s295, 8
        %s297 = scalar_lea.vmem [#allocation8], %s296
        // Predicated region
        $region45: #{vit_forward.9} parent=31 // pred_check
          %p298 = pneg %p123
        $region46: #{vit_forward.9} parent=31 // pred_check_branch
          %300 = sbr.rel (%p298) target = $region48
        $region47: #{vit_forward.9} parent=31 // pred_region
          %s301 = smul.u32 2, %s26
          %s303 = ssub.s32 128, 128
          %304 = vsyncadd %s294, %s303
          %s305 = smul.addr %s25, 2
          %s306 = sadd.s32 %s301, %s305
          %s307 = smul.addr %s306, 64
          %s308 = scalar_lea.hbm %s3, %s307
          %s309 = sshll.u32 %s297, 4
          %s310 = int_to_ptr.vmem [resolvable:$true] %s309
          %315 = dma.vmem_to_hbm [thread:$0]  %s310, 128, %s308, %s294, 64, 64, 4
        $region48: #{vit_forward.9} parent=31 // pred_fallthru
          _
      $region32: #{vit_forward.9} parent=5 // pred_fallthru
        _
      %p316 = scmp.le.s32.totalorder 2, %s16
      // Predicated region
      $region49: #{vit_forward.9} parent=5 // pred_check
        %p317 = pneg %p316
      $region50: #{vit_forward.9} parent=5 // pred_check_branch
        %319 = sbr.rel (%p317) target = $region52
      $region51: #{vit_forward.9} parent=5 // pred_region
        %s320 = ssub.s32 %s16, 2
        // Predicated region
        $region53: #{vit_forward.9} parent=51 // pred_check
          %p321 = pneg %p129
        $region54: #{vit_forward.9} parent=51 // pred_check_branch
          %323 = sbr.rel (%p321) target = $region56
        $region55: #{vit_forward.9} parent=51 // pred_region
          %s324 = sand.u32 %s114, 1
          %s325 = scalar_lea.sflag [#allocation4], %s324
          %s326 = sand.u32 %s114, 1
          %s327 = smul.addr %s326, 8
          %s328 = scalar_lea.vmem [#allocation8], %s327
          %329 = dma.done %s325, 128
        $region56: #{vit_forward.9} parent=51 // pred_fallthru
          _
      $region52: #{vit_forward.9} parent=5 // pred_fallthru
        _
    $region6: #{vit_forward.9} parent=1 // loop_footer
      %s20 = sadd.s32 1, %s16
    $region7: #{vit_forward.9} parent=1 // loop_footer_branch
      %15 = sbr.rel target = $region3
    $region8: #{vit_forward.9} parent=1 // loop_exit
      _
    %330 = vsyncpa [#allocation3], 1
    %s331 = scalar_lea.sflag [#allocation3], 1
    %332 = vsyncpa %s331, 1
    %333 = vsyncpa [#allocation6], 1
    %334 = vsyncpa [#allocation4], 1
    %s335 = scalar_lea.sflag [#allocation4], 1
    %336 = vsyncpa %s335, 1

// kernel: vit_forward.5
$region0: #{vit_forward.5}
  #allocation0 [shape = 'u32[]', space=smem, size = 0x4, offset = 0x4, fixed_abs, tag = 'smem constant byte address 0x4 - core index']
  #allocation1 [shape = 'u32[144,128]{1,0:T(1,128)}', space=vmem, size = 0x12000, scoped, tag = 'internal scratch']
  #allocation2 [shape = 'bf16[16,128]{1,0:T(16,128)(2,1)}', space=vmem, size = 0x1000, scoped, tag = 'scratch operand']
  #allocation3 [shape = 'f32[16,128]{1,0:T(8,128)}', space=vmem, size = 0x2000, scoped, tag = 'scratch operand']
  %s0 = inlined_call_operand.hbm [shape: bf16[2,16,128], index: 0, kind: input, shape index: {}, may-alias: {0,11}]
  %s1 = inlined_call_operand.hbm [shape: bf16[1,128], index: 1, kind: input, shape index: {}]
  %s2 = inlined_call_operand.hbm [shape: bf16[1,128], index: 2, kind: input, shape index: {}]
  %s3 = inlined_call_operand.hbm [shape: bf16[4,128,32], index: 3, kind: input, shape index: {}]
  %s4 = inlined_call_operand.hbm [shape: bf16[4,128,32], index: 4, kind: input, shape index: {}]
  %s5 = inlined_call_operand.hbm [shape: bf16[4,128,32], index: 5, kind: input, shape index: {}]
  %s6 = inlined_call_operand.hbm [shape: bf16[4,1,32], index: 6, kind: input, shape index: {}]
  %s7 = inlined_call_operand.hbm [shape: bf16[4,1,32], index: 7, kind: input, shape index: {}]
  %s8 = inlined_call_operand.hbm [shape: bf16[4,1,32], index: 8, kind: input, shape index: {}]
  %s9 = inlined_call_operand.hbm [shape: bf16[4,32,128], index: 9, kind: input, shape index: {}]
  %s10 = inlined_call_operand.hbm [shape: bf16[1,128], index: 10, kind: input, shape index: {}]
  %s11 = inlined_call_operand.hbm [shape: bf16[2,16,128], index: 11, kind: output, shape index: {}, may-alias: {0,11}]
  %s12 = sld [smem:[#allocation0]]
  $region129: #{vit_forward.5} parent=0
    _
  %s14 = ssub.s32 1, %s12
  %s15 = scalar_select 0, %s14, %s12
  $region1: #{vit_forward.5} parent=0
    #allocation4 [shape = 'u8[8192]{0}', space=vmem, size = 0x2000, scoped, tag = 'input window, operand 0']
    #allocation5 [shape = 's32[2]{0}', space=sflag, size = 0x8, scoped, tag = 'scoped memory for vit_forward.5']
    #allocation6 [shape = 's32[2]{0}', space=sflag, size = 0x8, scoped, tag = 'scoped memory for vit_forward.5']
    #allocation7 [shape = 'u8[512]{0}', space=vmem, size = 0x400, scoped, tag = 'input window, operand 1, single buffered']
    #allocation8 [shape = 's32[1]{0}', space=sflag, size = 0x4, scoped, tag = 'scoped memory for vit_forward.5']
    #allocation9 [shape = 'u8[512]{0}', space=vmem, size = 0x400, scoped, tag = 'input window, operand 2, single buffered']
    #allocation10 [shape = 'u8[65536]{0}', space=vmem, size = 0x10000, scoped, tag = 'input window, operand 3']
    #allocation11 [shape = 's32[2]{0}', space=sflag, size = 0x8, scoped, tag = 'scoped memory for vit_forward.5']
    #allocation12 [shape = 'u8[65536]{0}', space=vmem, size = 0x10000, scoped, tag = 'input window, operand 4']
    #allocation13 [shape = 'u8[65536]{0}', space=vmem, size = 0x10000, scoped, tag = 'input window, operand 5']
    #allocation14 [shape = 's32[2]{0}', space=sflag, size = 0x8, scoped, tag = 'scoped memory for vit_forward.5']
    #allocation15 [shape = 'u8[1024]{0}', space=vmem, size = 0x400, scoped, tag = 'input window, operand 6']
    #allocation16 [shape = 'u8[1024]{0}', space=vmem, size = 0x400, scoped, tag = 'input window, operand 7']
    #allocation17 [shape = 's32[2]{0}', space=sflag, size = 0x8, scoped, tag = 'scoped memory for vit_forward.5']
    #allocation18 [shape = 'u8[1024]{0}', space=vmem, size = 0x400, scoped, tag = 'input window, operand 8']
    #allocation19 [shape = 'u8[16384]{0}', space=vmem, size = 0x4000, scoped, tag = 'input window, operand 9']
    #allocation20 [shape = 's32[2]{0}', space=sflag, size = 0x8, scoped, tag = 'scoped memory for vit_forward.5']
    #allocation21 [shape = 'u8[512]{0}', space=vmem, size = 0x400, scoped, tag = 'input window, operand 10, single buffered']
    #allocation22 [shape = 'u8[8192]{0}', space=vmem, size = 0x2000, scoped, tag = 'output window, operand 0']
    %16 = vsyncpa [#allocation5], 0
    %s17 = scalar_lea.sflag [#allocation5], 1
    %18 = vsyncpa %s17, 0
    %19 = vsyncpa [#allocation8], 0
    %20 = vsyncpa [#allocation11], 0
    %s21 = scalar_lea.sflag [#allocation11], 1
    %22 = vsyncpa %s21, 0
    %23 = vsyncpa [#allocation14], 0
    %s24 = scalar_lea.sflag [#allocation14], 1
    %25 = vsyncpa %s24, 0
    %26 = vsyncpa [#allocation17], 0
    %s27 = scalar_lea.sflag [#allocation17], 1
    %28 = vsyncpa %s27, 0
    %29 = vsyncpa [#allocation20], 0
    %s30 = scalar_lea.sflag [#allocation20], 1
    %31 = vsyncpa %s30, 0
    %32 = vsyncpa [#allocation6], 0
    %s33 = scalar_lea.sflag [#allocation6], 1
    %34 = vsyncpa %s33, 0
    loop: start=0, step=1, limit=10
    $region2: #{vit_forward.5} parent=1 // loop_pre_header
      _
    $region3: #{vit_forward.5} parent=1 // loop_header
      %s36 = sphi 0, %s40
      %p37 = scmp.ge.s32.totalorder %s36, 10
      %s43 = sphi 0, %s55
      %s44 = sphi 0, %s51
      %s45 = sphi 0, %s43
      %s46 = sphi 0, %s44
      %s47 = sphi 0, %s45
      %s48 = sphi 0, %s46
      %s58 = sphi 0, %s60
      %s61 = sphi 0, %s58
      %s62 = sphi 0, %s61
      %s78 = sphi 0, %s62
      %s82 = sphi 0, %s82
      %s84 = sphi 0, %s82
      %s85 = sphi 0, %s84
      %s99 = sphi 0, %s85
      %s103 = sphi 0, %s103
      %s105 = sphi 0, %s103
      %s106 = sphi 0, %s105
      %s120 = sphi 0, %s106
      %s126 = sphi 0, %s128
      %s129 = sphi 0, %s126
      %s130 = sphi 0, %s129
      %s146 = sphi 0, %s130
      %s152 = sphi 0, %s154
      %s155 = sphi 0, %s152
      %s156 = sphi 0, %s155
      %s172 = sphi 0, %s156
      %s178 = sphi 0, %s180
      %s181 = sphi 0, %s178
      %s182 = sphi 0, %s181
      %s198 = sphi 0, %s182
      %s204 = sphi 0, %s206
      %s207 = sphi 0, %s204
      %s208 = sphi 0, %s207
      %s224 = sphi 0, %s208
      %s230 = sphi 0, %s232
      %s233 = sphi 0, %s230
      %s234 = sphi 0, %s233
      %s250 = sphi 0, %s234
      %s256 = sphi 0, %s258
      %s259 = sphi 0, %s256
      %s260 = sphi 0, %s259
      %s276 = sphi 0, %s260
      %s282 = sphi 0, %s284
      %s285 = sphi 0, %s282
      %s286 = sphi 0, %s285
      %s302 = sphi 0, %s286
      %s306 = sphi 0, %s306
      %s308 = sphi 0, %s306
      %s309 = sphi 0, %s308
      %s323 = sphi 0, %s309
      %s329 = sphi 0, %s331
      %s332 = sphi 0, %s329
      %s333 = sphi 0, %s332
      %s349 = sphi 0, %s333
    $region4: #{vit_forward.5} parent=1 // loop_header_branch
      %39 = sbr.rel (%p37) target = $region8
    $region5: #{vit_forward.5} parent=1 // loop_body
      %s41 = ssub.s32 %s36, 1
      %s42 = ssub.s32 %s36, 2
      %s49 = sadd.s32 1, %s44
      %p50 = scmp.ge.s32.totalorder %s49, 4
      %s51 = scalar_select %p50, 0, %s49
      %s52 = sadd.s32 1, %s43
      %s53 = scalar_select %p50, %s52, %s43
      %p54 = scmp.ge.s32.totalorder %s53, 2
      %s55 = scalar_select %p54, 0, %s53
      %s56 = ssub.s32 %s43, %s55
      %p57 = scmp.eq.s32.totalorder %s56, 0
      %s59 = sadd.s32 %s58, 1
      %s60 = scalar_select %p57, %s58, %s59
      %p63 = pneg %p57
      %p64 = scmp.eq.s32.totalorder %s36, 7
      %p65 = por %p63, %p64
      %p66 = scmp.ne.s32.totalorder %s58, %s61
      %p67 = scmp.eq.s32.totalorder %s36, 0
      %p68 = por %p66, %p67
      %p69 = scmp.ne.s32.totalorder %s58, %s61
      %p70 = scmp.eq.s32.totalorder %s41, 7
      %p71 = por %p69, %p70
      %p72 = scmp.ne.s32.totalorder %s61, %s62
      %p73 = scmp.eq.s32.totalorder %s41, 0
      %p74 = por %p72, %p73
      %p75 = scmp.ne.s32.totalorder %s61, %s62
      %p76 = scmp.eq.s32.totalorder %s42, 7
      %p77 = por %p75, %p76
      %p79 = scmp.ne.s32.totalorder %s62, %s78
      %p80 = scmp.eq.s32.totalorder %s42, 0
      %p81 = por %p79, %p80
      %s83 = sadd.s32 %s82, 1
      %p86 = scmp.eq.s32.totalorder %s36, 7
      %p87 = scmp.ne.s32.totalorder %s82, %s84
      %p88 = scmp.eq.s32.totalorder %s36, 0
      %p89 = por %p87, %p88
      %p90 = scmp.ne.s32.totalorder %s82, %s84
      %p91 = scmp.eq.s32.totalorder %s41, 7
      %p92 = por %p90, %p91
      %p93 = scmp.ne.s32.totalorder %s84, %s85
      %p94 = scmp.eq.s32.totalorder %s41, 0
      %p95 = por %p93, %p94
      %p96 = scmp.ne.s32.totalorder %s84, %s85
      %p97 = scmp.eq.s32.totalorder %s42, 7
      %p98 = por %p96, %p97
      %p100 = scmp.ne.s32.totalorder %s85, %s99
      %p101 = scmp.eq.s32.totalorder %s42, 0
      %p102 = por %p100, %p101
      %s104 = sadd.s32 %s103, 1
      %p107 = scmp.eq.s32.totalorder %s36, 7
      %p108 = scmp.ne.s32.totalorder %s103, %s105
      %p109 = scmp.eq.s32.totalorder %s36, 0
      %p110 = por %p108, %p109
      %p111 = scmp.ne.s32.totalorder %s103, %s105
      %p112 = scmp.eq.s32.totalorder %s41, 7
      %p113 = por %p111, %p112
      %p114 = scmp.ne.s32.totalorder %s105, %s106
      %p115 = scmp.eq.s32.totalorder %s41, 0
      %p116 = por %p114, %p115
      %p117 = scmp.ne.s32.totalorder %s105, %s106
      %p118 = scmp.eq.s32.totalorder %s42, 7
      %p119 = por %p117, %p118
      %p121 = scmp.ne.s32.totalorder %s106, %s120
      %p122 = scmp.eq.s32.totalorder %s42, 0
      %p123 = por %p121, %p122
      %s124 = ssub.s32 %s44, %s51
      %p125 = scmp.eq.s32.totalorder %s124, 0
      %s127 = sadd.s32 %s126, 1
      %s128 = scalar_select %p125, %s126, %s127
      %p131 = pneg %p125
      %p132 = scmp.eq.s32.totalorder %s36, 7
      %p133 = por %p131, %p132
      %p134 = scmp.ne.s32.totalorder %s126, %s129
      %p135 = scmp.eq.s32.totalorder %s36, 0
      %p136 = por %p134, %p135
      %p137 = scmp.ne.s32.totalorder %s126, %s129
      %p138 = scmp.eq.s32.totalorder %s41, 7
      %p139 = por %p137, %p138
      %p140 = scmp.ne.s32.totalorder %s129, %s130
      %p141 = scmp.eq.s32.totalorder %s41, 0
      %p142 = por %p140, %p141
      %p143 = scmp.ne.s32.totalorder %s129, %s130
      %p144 = scmp.eq.s32.totalorder %s42, 7
      %p145 = por %p143, %p144
      %p147 = scmp.ne.s32.totalorder %s130, %s146
      %p148 = scmp.eq.s32.totalorder %s42, 0
      %p149 = por %p147, %p148
      %s150 = ssub.s32 %s44, %s51
      %p151 = scmp.eq.s32.totalorder %s150, 0
      %s153 = sadd.s32 %s152, 1
      %s154 = scalar_select %p151, %s152, %s153
      %p157 = pneg %p151
      %p158 = scmp.eq.s32.totalorder %s36, 7
      %p159 = por %p157, %p158
      %p160 = scmp.ne.s32.totalorder %s152, %s155
      %p161 = scmp.eq.s32.totalorder %s36, 0
      %p162 = por %p160, %p161
      %p163 = scmp.ne.s32.totalorder %s152, %s155
      %p164 = scmp.eq.s32.totalorder %s41, 7
      %p165 = por %p163, %p164
      %p166 = scmp.ne.s32.totalorder %s155, %s156
      %p167 = scmp.eq.s32.totalorder %s41, 0
      %p168 = por %p166, %p167
      %p169 = scmp.ne.s32.totalorder %s155, %s156
      %p170 = scmp.eq.s32.totalorder %s42, 7
      %p171 = por %p169, %p170
      %p173 = scmp.ne.s32.totalorder %s156, %s172
      %p174 = scmp.eq.s32.totalorder %s42, 0
      %p175 = por %p173, %p174
      %s176 = ssub.s32 %s44, %s51
      %p177 = scmp.eq.s32.totalorder %s176, 0
      %s179 = sadd.s32 %s178, 1
      %s180 = scalar_select %p177, %s178, %s179
      %p183 = pneg %p177
      %p184 = scmp.eq.s32.totalorder %s36, 7
      %p185 = por %p183, %p184
      %p186 = scmp.ne.s32.totalorder %s178, %s181
      %p187 = scmp.eq.s32.totalorder %s36, 0
      %p188 = por %p186, %p187
      %p189 = scmp.ne.s32.totalorder %s178, %s181
      %p190 = scmp.eq.s32.totalorder %s41, 7
      %p191 = por %p189, %p190
      %p192 = scmp.ne.s32.totalorder %s181, %s182
      %p193 = scmp.eq.s32.totalorder %s41, 0
      %p194 = por %p192, %p193
      %p195 = scmp.ne.s32.totalorder %s181, %s182
      %p196 = scmp.eq.s32.totalorder %s42, 7
      %p197 = por %p195, %p196
      %p199 = scmp.ne.s32.totalorder %s182, %s198
      %p200 = scmp.eq.s32.totalorder %s42, 0
      %p201 = por %p199, %p200
      %s202 = ssub.s32 %s44, %s51
      %p203 = scmp.eq.s32.totalorder %s202, 0
      %s205 = sadd.s32 %s204, 1
      %s206 = scalar_select %p203, %s204, %s205
      %p209 = pneg %p203
      %p210 = scmp.eq.s32.totalorder %s36, 7
      %p211 = por %p209, %p210
      %p212 = scmp.ne.s32.totalorder %s204, %s207
      %p213 = scmp.eq.s32.totalorder %s36, 0
      %p214 = por %p212, %p213
      %p215 = scmp.ne.s32.totalorder %s204, %s207
      %p216 = scmp.eq.s32.totalorder %s41, 7
      %p217 = por %p215, %p216
      %p218 = scmp.ne.s32.totalorder %s207, %s208
      %p219 = scmp.eq.s32.totalorder %s41, 0
      %p220 = por %p218, %p219
      %p221 = scmp.ne.s32.totalorder %s207, %s208
      %p222 = scmp.eq.s32.totalorder %s42, 7
      %p223 = por %p221, %p222
      %p225 = scmp.ne.s32.totalorder %s208, %s224
      %p226 = scmp.eq.s32.totalorder %s42, 0
      %p227 = por %p225, %p226
      %s228 = ssub.s32 %s44, %s51
      %p229 = scmp.eq.s32.totalorder %s228, 0
      %s231 = sadd.s32 %s230, 1
      %s232 = scalar_select %p229, %s230, %s231
      %p235 = pneg %p229
      %p236 = scmp.eq.s32.totalorder %s36, 7
      %p237 = por %p235, %p236
      %p238 = scmp.ne.s32.totalorder %s230, %s233
      %p239 = scmp.eq.s32.totalorder %s36, 0
      %p240 = por %p238, %p239
      %p241 = scmp.ne.s32.totalorder %s230, %s233
      %p242 = scmp.eq.s32.totalorder %s41, 7
      %p243 = por %p241, %p242
      %p244 = scmp.ne.s32.totalorder %s233, %s234
      %p245 = scmp.eq.s32.totalorder %s41, 0
      %p246 = por %p244, %p245
      %p247 = scmp.ne.s32.totalorder %s233, %s234
      %p248 = scmp.eq.s32.totalorder %s42, 7
      %p249 = por %p247, %p248
      %p251 = scmp.ne.s32.totalorder %s234, %s250
      %p252 = scmp.eq.s32.totalorder %s42, 0
      %p253 = por %p251, %p252
      %s254 = ssub.s32 %s44, %s51
      %p255 = scmp.eq.s32.totalorder %s254, 0
      %s257 = sadd.s32 %s256, 1
      %s258 = scalar_select %p255, %s256, %s257
      %p261 = pneg %p255
      %p262 = scmp.eq.s32.totalorder %s36, 7
      %p263 = por %p261, %p262
      %p264 = scmp.ne.s32.totalorder %s256, %s259
      %p265 = scmp.eq.s32.totalorder %s36, 0
      %p266 = por %p264, %p265
      %p267 = scmp.ne.s32.totalorder %s256, %s259
      %p268 = scmp.eq.s32.totalorder %s41, 7
      %p269 = por %p267, %p268
      %p270 = scmp.ne.s32.totalorder %s259, %s260
      %p271 = scmp.eq.s32.totalorder %s41, 0
      %p272 = por %p270, %p271
      %p273 = scmp.ne.s32.totalorder %s259, %s260
      %p274 = scmp.eq.s32.totalorder %s42, 7
      %p275 = por %p273, %p274
      %p277 = scmp.ne.s32.totalorder %s260, %s276
      %p278 = scmp.eq.s32.totalorder %s42, 0
      %p279 = por %p277, %p278
      %s280 = ssub.s32 %s44, %s51
      %p281 = scmp.eq.s32.totalorder %s280, 0
      %s283 = sadd.s32 %s282, 1
      %s284 = scalar_select %p281, %s282, %s283
      %p287 = pneg %p281
      %p288 = scmp.eq.s32.totalorder %s36, 7
      %p289 = por %p287, %p288
      %p290 = scmp.ne.s32.totalorder %s282, %s285
      %p291 = scmp.eq.s32.totalorder %s36, 0
      %p292 = por %p290, %p291
      %p293 = scmp.ne.s32.totalorder %s282, %s285
      %p294 = scmp.eq.s32.totalorder %s41, 7
      %p295 = por %p293, %p294
      %p296 = scmp.ne.s32.totalorder %s285, %s286
      %p297 = scmp.eq.s32.totalorder %s41, 0
      %p298 = por %p296, %p297
      %p299 = scmp.ne.s32.totalorder %s285, %s286
      %p300 = scmp.eq.s32.totalorder %s42, 7
      %p301 = por %p299, %p300
      %p303 = scmp.ne.s32.totalorder %s286, %s302
      %p304 = scmp.eq.s32.totalorder %s42, 0
      %p305 = por %p303, %p304
      %s307 = sadd.s32 %s306, 1
      %p310 = scmp.eq.s32.totalorder %s36, 7
      %p311 = scmp.ne.s32.totalorder %s306, %s308
      %p312 = scmp.eq.s32.totalorder %s36, 0
      %p313 = por %p311, %p312
      %p314 = scmp.ne.s32.totalorder %s306, %s308
      %p315 = scmp.eq.s32.totalorder %s41, 7
      %p316 = por %p314, %p315
      %p317 = scmp.ne.s32.totalorder %s308, %s309
      %p318 = scmp.eq.s32.totalorder %s41, 0
      %p319 = por %p317, %p318
      %p320 = scmp.ne.s32.totalorder %s308, %s309
      %p321 = scmp.eq.s32.totalorder %s42, 7
      %p322 = por %p320, %p321
      %p324 = scmp.ne.s32.totalorder %s309, %s323
      %p325 = scmp.eq.s32.totalorder %s42, 0
      %p326 = por %p324, %p325
      %s327 = ssub.s32 %s43, %s55
      %p328 = scmp.eq.s32.totalorder %s327, 0
      %s330 = sadd.s32 %s329, 1
      %s331 = scalar_select %p328, %s329, %s330
      %p334 = pneg %p328
      %p335 = scmp.eq.s32.totalorder %s36, 7
      %p336 = por %p334, %p335
      %p337 = scmp.ne.s32.totalorder %s329, %s332
      %p338 = scmp.eq.s32.totalorder %s36, 0
      %p339 = por %p337, %p338
      %p340 = scmp.ne.s32.totalorder %s329, %s332
      %p341 = scmp.eq.s32.totalorder %s41, 7
      %p342 = por %p340, %p341
      %p343 = scmp.ne.s32.totalorder %s332, %s333
      %p344 = scmp.eq.s32.totalorder %s41, 0
      %p345 = por %p343, %p344
      %p346 = scmp.ne.s32.totalorder %s332, %s333
      %p347 = scmp.eq.s32.totalorder %s42, 7
      %p348 = por %p346, %p347
      %p350 = scmp.ne.s32.totalorder %s333, %s349
      %p351 = scmp.eq.s32.totalorder %s42, 0
      %p352 = por %p350, %p351
      %p353 = scmp.le.s32.totalorder 1, %s36
      %p354 = scmp.lt.s32.totalorder %s36, 9
      %p355 = pnand %p353, %p354
      %p356 = pneg %p355
      // Predicated region
      $region9: #{vit_forward.5} parent=5 // pred_check
        _
      $region10: #{vit_forward.5} parent=5 // pred_check_branch
        %358 = sbr.rel (%p355) target = $region12
      $region11: #{vit_forward.5} parent=5 // pred_region
        %s359 = ssub.s32 %s36, 1
        // Predicated region
        $region13: #{vit_forward.5} parent=11 // pred_check
          %p360 = pneg %p95
        $region14: #{vit_forward.5} parent=11 // pred_check_branch
          %362 = sbr.rel (%p360) target = $region16
        $region15: #{vit_forward.5} parent=11 // pred_region
          %s364 = ssub.s32 16, 16
          %365 = vsyncadd [#allocation8], %s364
          %s367 = sshll.u32 [#allocation7], 4
          %s368 = int_to_ptr.vmem [resolvable:$true] %s367
          %370 = dma.hbm_to_vmem [thread:$0]  %s1, 16, %s368, [#allocation8]
        $region16: #{vit_forward.5} parent=11 // pred_fallthru
          _
        // Predicated region
        $region17: #{vit_forward.5} parent=11 // pred_check
          %p371 = pneg %p116
        $region18: #{vit_forward.5} parent=11 // pred_check_branch
          %373 = sbr.rel (%p371) target = $region20
        $region19: #{vit_forward.5} parent=11 // pred_region
          %s375 = ssub.s32 16, 16
          %376 = vsyncadd [#allocation8], %s375
          %s378 = sshll.u32 [#allocation9], 4
          %s379 = int_to_ptr.vmem [resolvable:$true] %s378
          %381 = dma.hbm_to_vmem [thread:$0]  %s2, 16, %s379, [#allocation8]
        $region20: #{vit_forward.5} parent=11 // pred_fallthru
          _
        // Predicated region
        $region21: #{vit_forward.5} parent=11 // pred_check
          %p382 = pneg %p319
        $region22: #{vit_forward.5} parent=11 // pred_check_branch
          %384 = sbr.rel (%p382) target = $region24
        $region23: #{vit_forward.5} parent=11 // pred_region
          %s386 = ssub.s32 16, 16
          %387 = vsyncadd [#allocation20], %s386
          %s389 = sshll.u32 [#allocation21], 4
          %s390 = int_to_ptr.vmem [resolvable:$true] %s389
          %392 = dma.hbm_to_vmem [thread:$0]  %s10, 16, %s390, [#allocation20]
        $region24: #{vit_forward.5} parent=11 // pred_fallthru
          _
      $region12: #{vit_forward.5} parent=5 // pred_fallthru
        _
      %p393 = scmp.lt.s32.totalorder %s36, 8
      // Predicated region
      $region25: #{vit_forward.5} parent=5 // pred_check
        %p394 = pneg %p393
      $region26: #{vit_forward.5} parent=5 // pred_check_branch
        %396 = sbr.rel (%p394) target = $region28
      $region27: #{vit_forward.5} parent=5 // pred_region
        // Predicated region
        $region29: #{vit_forward.5} parent=27 // pred_check
          %p397 = pneg %p68
        $region30: #{vit_forward.5} parent=27 // pred_check_branch
          %399 = sbr.rel (%p397) target = $region32
        $region31: #{vit_forward.5} parent=27 // pred_region
          %s400 = sand.u32 %s58, 1
          %s401 = scalar_lea.sflag [#allocation5], %s400
          %s402 = sand.u32 %s58, 1
          %s403 = smul.addr %s402, 8
          %s404 = scalar_lea.vmem [#allocation4], %s403
          %s406 = ssub.s32 128, 128
          %407 = vsyncadd %s401, %s406
          %s408 = smul.addr %s43, 2
          %s409 = smul.addr %s408, 64
          %s410 = scalar_lea.hbm %s0, %s409
          %s411 = sshll.u32 %s404, 4
          %s412 = int_to_ptr.vmem [resolvable:$true] %s411
          %417 = dma.hbm_to_vmem [thread:$0]  %s410, 128, %s412, %s401, 64, 64, 4
        $region32: #{vit_forward.5} parent=27 // pred_fallthru
          _
        // Predicated region
        $region33: #{vit_forward.5} parent=27 // pred_check
          %p418 = pneg %p136
        $region34: #{vit_forward.5} parent=27 // pred_check_branch
          %420 = sbr.rel (%p418) target = $region36
        $region35: #{vit_forward.5} parent=27 // pred_region
          %s421 = sand.u32 %s36, 1
          %s422 = scalar_lea.sflag [#allocation11], %s421
          %s423 = sand.u32 %s126, 1
          %s424 = smul.addr %s423, 64
          %s425 = scalar_lea.vmem [#allocation10], %s424
          %s427 = ssub.s32 1024, 1024
          %428 = vsyncadd %s422, %s427
          %s429 = smul.addr %s44, 16
          %s430 = smul.addr %s429, 64
          %s431 = scalar_lea.hbm %s3, %s430
          %s432 = sshll.u32 %s425, 4
          %s433 = int_to_ptr.vmem [resolvable:$true] %s432
          %438 = dma.hbm_to_vmem [thread:$0]  %s431, 1024, %s433, %s422, 64, 64, 4
        $region36: #{vit_forward.5} parent=27 // pred_fallthru
          _
        // Predicated region
        $region37: #{vit_forward.5} parent=27 // pred_check
          %p439 = pneg %p162
        $region38: #{vit_forward.5} parent=27 // pred_check_branch
          %441 = sbr.rel (%p439) target = $region40
        $region39: #{vit_forward.5} parent=27 // pred_region
          %s442 = sand.u32 %s36, 1
          %s443 = scalar_lea.sflag [#allocation11], %s442
          %s444 = sand.u32 %s152, 1
          %s445 = smul.addr %s444, 64
          %s446 = scalar_lea.vmem [#allocation12], %s445
          %s448 = ssub.s32 1024, 1024
          %449 = vsyncadd %s443, %s448
          %s450 = smul.addr %s44, 16
          %s451 = smul.addr %s450, 64
          %s452 = scalar_lea.hbm %s4, %s451
          %s453 = sshll.u32 %s446, 4
          %s454 = int_to_ptr.vmem [resolvable:$true] %s453
          %459 = dma.hbm_to_vmem [thread:$0]  %s452, 1024, %s454, %s443, 64, 64, 4
        $region40: #{vit_forward.5} parent=27 // pred_fallthru
          _
        // Predicated region
        $region41: #{vit_forward.5} parent=27 // pred_check
          %p460 = pneg %p188
        $region42: #{vit_forward.5} parent=27 // pred_check_branch
          %462 = sbr.rel (%p460) target = $region44
        $region43: #{vit_forward.5} parent=27 // pred_region
          %s463 = sand.u32 %s36, 1
          %s464 = scalar_lea.sflag [#allocation14], %s463
          %s465 = sand.u32 %s178, 1
          %s466 = smul.addr %s465, 64
          %s467 = scalar_lea.vmem [#allocation13], %s466
          %s469 = ssub.s32 1024, 1024
          %470 = vsyncadd %s464, %s469
          %s471 = smul.addr %s44, 16
          %s472 = smul.addr %s471, 64
          %s473 = scalar_lea.hbm %s5, %s472
          %s474 = sshll.u32 %s467, 4
          %s475 = int_to_ptr.vmem [resolvable:$true] %s474
          %480 = dma.hbm_to_vmem [thread:$0]  %s473, 1024, %s475, %s464, 64, 64, 4
        $region44: #{vit_forward.5} parent=27 // pred_fallthru
          _
        // Predicated region
        $region45: #{vit_forward.5} parent=27 // pred_check
          %p481 = pneg %p214
        $region46: #{vit_forward.5} parent=27 // pred_check_branch
          %483 = sbr.rel (%p481) target = $region48
        $region47: #{vit_forward.5} parent=27 // pred_region
          %s484 = sand.u32 %s36, 1
          %s485 = scalar_lea.sflag [#allocation14], %s484
          %s486 = sand.u32 %s204, 1
          %s487 = scalar_lea.vmem [#allocation15], %s486
          %s489 = ssub.s32 16, 16
          %490 = vsyncadd %s485, %s489
          %s491 = smul.addr %s44, 16
          %s492 = scalar_lea.hbm %s6, %s491
          %s494 = sshll.u32 %s487, 4
          %s495 = int_to_ptr.vmem [resolvable:$true] %s494
          %497 = dma.hbm_to_vmem [thread:$0]  %s492, 16, %s495, %s485
        $region48: #{vit_forward.5} parent=27 // pred_fallthru
          _
        // Predicated region
        $region49: #{vit_forward.5} parent=27 // pred_check
          %p498 = pneg %p240
        $region50: #{vit_forward.5} parent=27 // pred_check_branch
          %500 = sbr.rel (%p498) target = $region52
        $region51: #{vit_forward.5} parent=27 // pred_region
          %s501 = sand.u32 %s36, 1
          %s502 = scalar_lea.sflag [#allocation17], %s501
          %s503 = sand.u32 %s230, 1
          %s504 = scalar_lea.vmem [#allocation16], %s503
          %s506 = ssub.s32 16, 16
          %507 = vsyncadd %s502, %s506
          %s508 = smul.addr %s44, 16
          %s509 = scalar_lea.hbm %s7, %s508
          %s511 = sshll.u32 %s504, 4
          %s512 = int_to_ptr.vmem [resolvable:$true] %s511
          %514 = dma.hbm_to_vmem [thread:$0]  %s509, 16, %s512, %s502
        $region52: #{vit_forward.5} parent=27 // pred_fallthru
          _
        // Predicated region
        $region53: #{vit_forward.5} parent=27 // pred_check
          %p515 = pneg %p266
        $region54: #{vit_forward.5} parent=27 // pred_check_branch
          %517 = sbr.rel (%p515) target = $region56
        $region55: #{vit_forward.5} parent=27 // pred_region
          %s518 = sand.u32 %s36, 1
          %s519 = scalar_lea.sflag [#allocation17], %s518
          %s520 = sand.u32 %s256, 1
          %s521 = scalar_lea.vmem [#allocation18], %s520
          %s523 = ssub.s32 16, 16
          %524 = vsyncadd %s519, %s523
          %s525 = smul.addr %s44, 16
          %s526 = scalar_lea.hbm %s8, %s525
          %s528 = sshll.u32 %s521, 4
          %s529 = int_to_ptr.vmem [resolvable:$true] %s528
          %531 = dma.hbm_to_vmem [thread:$0]  %s526, 16, %s529, %s519
        $region56: #{vit_forward.5} parent=27 // pred_fallthru
          _
        // Predicated region
        $region57: #{vit_forward.5} parent=27 // pred_check
          %p532 = pneg %p292
        $region58: #{vit_forward.5} parent=27 // pred_check_branch
          %534 = sbr.rel (%p532) target = $region60
        $region59: #{vit_forward.5} parent=27 // pred_region
          %s535 = sand.u32 %s36, 1
          %s536 = scalar_lea.sflag [#allocation20], %s535
          %s537 = sand.u32 %s282, 1
          %s538 = smul.addr %s537, 16
          %s539 = scalar_lea.vmem [#allocation19], %s538
          %s541 = ssub.s32 256, 256
          %542 = vsyncadd %s536, %s541
          %s543 = smul.addr %s44, 4
          %s544 = smul.addr %s543, 64
          %s545 = scalar_lea.hbm %s9, %s544
          %s546 = sshll.u32 %s539, 4
          %s547 = int_to_ptr.vmem [resolvable:$true] %s546
          %552 = dma.hbm_to_vmem [thread:$0]  %s545, 256, %s547, %s536, 64, 64, 4
        $region60: #{vit_forward.5} parent=27 // pred_fallthru
          _
      $region28: #{vit_forward.5} parent=5 // pred_fallthru
        _
      %p553 = scmp.le.s32.totalorder 1, %s36
      %p554 = scmp.lt.s32.totalorder %s36, 9
      %p555 = pnand %p553, %p554
      %p556 = pneg %p555
      // Predicated region
      $region61: #{vit_forward.5} parent=5 // pred_check
        _
      $region62: #{vit_forward.5} parent=5 // pred_check_branch
        %558 = sbr.rel (%p555) target = $region64
      $region63: #{vit_forward.5} parent=5 // pred_region
        %s559 = ssub.s32 %s36, 1
        %s560 = sand.u32 %s61, 1
        %s561 = scalar_lea.sflag [#allocation5], %s560
        %s562 = sand.u32 %s61, 1
        %s563 = smul.addr %s562, 8
        %s564 = scalar_lea.vmem [#allocation4], %s563
        // Predicated region
        $region65: #{vit_forward.5} parent=63 // pred_check
          %p565 = pneg %p74
        $region66: #{vit_forward.5} parent=63 // pred_check_branch
          %567 = sbr.rel (%p565) target = $region68
        $region67: #{vit_forward.5} parent=63 // pred_region
          %568 = dma.done %s561, 128
        $region68: #{vit_forward.5} parent=63 // pred_fallthru
          _
        // Predicated region
        $region69: #{vit_forward.5} parent=63 // pred_check
          %p569 = pneg %p95
        $region70: #{vit_forward.5} parent=63 // pred_check_branch
          %571 = sbr.rel (%p569) target = $region72
        $region71: #{vit_forward.5} parent=63 // pred_region
          %572 = dma.done [#allocation8], 16
        $region72: #{vit_forward.5} parent=63 // pred_fallthru
          _
        // Predicated region
        $region73: #{vit_forward.5} parent=63 // pred_check
          %p573 = pneg %p116
        $region74: #{vit_forward.5} parent=63 // pred_check_branch
          %575 = sbr.rel (%p573) target = $region76
        $region75: #{vit_forward.5} parent=63 // pred_region
          %576 = dma.done [#allocation8], 16
        $region76: #{vit_forward.5} parent=63 // pred_fallthru
          _
        %s577 = sand.u32 %s41, 1
        %s578 = scalar_lea.sflag [#allocation11], %s577
        %s579 = sand.u32 %s129, 1
        %s580 = smul.addr %s579, 64
        %s581 = scalar_lea.vmem [#allocation10], %s580
        // Predicated region
        $region77: #{vit_forward.5} parent=63 // pred_check
          %p582 = pneg %p142
        $region78: #{vit_forward.5} parent=63 // pred_check_branch
          %584 = sbr.rel (%p582) target = $region80
        $region79: #{vit_forward.5} parent=63 // pred_region
          %585 = dma.done %s578, 1024
        $region80: #{vit_forward.5} parent=63 // pred_fallthru
          _
        %s586 = sand.u32 %s41, 1
        %s587 = scalar_lea.sflag [#allocation11], %s586
        %s588 = sand.u32 %s155, 1
        %s589 = smul.addr %s588, 64
        %s590 = scalar_lea.vmem [#allocation12], %s589
        // Predicated region
        $region81: #{vit_forward.5} parent=63 // pred_check
          %p591 = pneg %p168
        $region82: #{vit_forward.5} parent=63 // pred_check_branch
          %593 = sbr.rel (%p591) target = $region84
        $region83: #{vit_forward.5} parent=63 // pred_region
          %594 = dma.done %s587, 1024
        $region84: #{vit_forward.5} parent=63 // pred_fallthru
          _
        %s595 = sand.u32 %s41, 1
        %s596 = scalar_lea.sflag [#allocation14], %s595
        %s597 = sand.u32 %s181, 1
        %s598 = smul.addr %s597, 64
        %s599 = scalar_lea.vmem [#allocation13], %s598
        // Predicated region
        $region85: #{vit_forward.5} parent=63 // pred_check
          %p600 = pneg %p194
        $region86: #{vit_forward.5} parent=63 // pred_check_branch
          %602 = sbr.rel (%p600) target = $region88
        $region87: #{vit_forward.5} parent=63 // pred_region
          %603 = dma.done %s596, 1024
        $region88: #{vit_forward.5} parent=63 // pred_fallthru
          _
        %s604 = sand.u32 %s41, 1
        %s605 = scalar_lea.sflag [#allocation14], %s604
        %s606 = sand.u32 %s207, 1
        %s607 = scalar_lea.vmem [#allocation15], %s606
        // Predicated region
        $region89: #{vit_forward.5} parent=63 // pred_check
          %p608 = pneg %p220
        $region90: #{vit_forward.5} parent=63 // pred_check_branch
          %610 = sbr.rel (%p608) target = $region92
        $region91: #{vit_forward.5} parent=63 // pred_region
          %611 = dma.done %s605, 16
        $region92: #{vit_forward.5} parent=63 // pred_fallthru
          _
        %s612 = sand.u32 %s41, 1
        %s613 = scalar_lea.sflag [#allocation17], %s612
        %s614 = sand.u32 %s233, 1
        %s615 = scalar_lea.vmem [#allocation16], %s614
        // Predicated region
        $region93: #{vit_forward.5} parent=63 // pred_check
          %p616 = pneg %p246
        $region94: #{vit_forward.5} parent=63 // pred_check_branch
          %618 = sbr.rel (%p616) target = $region96
        $region95: #{vit_forward.5} parent=63 // pred_region
          %619 = dma.done %s613, 16
        $region96: #{vit_forward.5} parent=63 // pred_fallthru
          _
        %s620 = sand.u32 %s41, 1
        %s621 = scalar_lea.sflag [#allocation17], %s620
        %s622 = sand.u32 %s259, 1
        %s623 = scalar_lea.vmem [#allocation18], %s622
        // Predicated region
        $region97: #{vit_forward.5} parent=63 // pred_check
          %p624 = pneg %p272
        $region98: #{vit_forward.5} parent=63 // pred_check_branch
          %626 = sbr.rel (%p624) target = $region100
        $region99: #{vit_forward.5} parent=63 // pred_region
          %627 = dma.done %s621, 16
        $region100: #{vit_forward.5} parent=63 // pred_fallthru
          _
        %s628 = sand.u32 %s41, 1
        %s629 = scalar_lea.sflag [#allocation20], %s628
        %s630 = sand.u32 %s285, 1
        %s631 = smul.addr %s630, 16
        %s632 = scalar_lea.vmem [#allocation19], %s631
        // Predicated region
        $region101: #{vit_forward.5} parent=63 // pred_check
          %p633 = pneg %p298
        $region102: #{vit_forward.5} parent=63 // pred_check_branch
          %635 = sbr.rel (%p633) target = $region104
        $region103: #{vit_forward.5} parent=63 // pred_region
          %636 = dma.done %s629, 256
        $region104: #{vit_forward.5} parent=63 // pred_fallthru
          _
        // Predicated region
        $region105: #{vit_forward.5} parent=63 // pred_check
          %p637 = pneg %p319
        $region106: #{vit_forward.5} parent=63 // pred_check_branch
          %639 = sbr.rel (%p637) target = $region108
        $region107: #{vit_forward.5} parent=63 // pred_region
          %640 = dma.done [#allocation20], 16
        $region108: #{vit_forward.5} parent=63 // pred_fallthru
          _
        %s641 = sand.u32 %s61, 1
        %s642 = scalar_lea.sflag [#allocation5], %s641
        %s643 = sand.u32 %s61, 1
        %s644 = smul.addr %s643, 8
        %s645 = scalar_lea.vmem [#allocation4], %s644
        %p646 = pneg %p74
        %p647 = pneg %p71
        %p648 = pneg %p95
        %p649 = pneg %p92
        %p650 = pneg %p116
        %p651 = pneg %p113
        %s652 = sand.u32 %s41, 1
        %s653 = scalar_lea.sflag [#allocation11], %s652
        %s654 = sand.u32 %s129, 1
        %s655 = smul.addr %s654, 64
        %s656 = scalar_lea.vmem [#allocation10], %s655
        %p657 = pneg %p142
        %p658 = pneg %p139
        %s659 = sand.u32 %s41, 1
        %s660 = scalar_lea.sflag [#allocation11], %s659
        %s661 = sand.u32 %s155, 1
        %s662 = smul.addr %s661, 64
        %s663 = scalar_lea.vmem [#allocation12], %s662
        %p664 = pneg %p168
        %p665 = pneg %p165
        %s666 = sand.u32 %s41, 1
        %s667 = scalar_lea.sflag [#allocation14], %s666
        %s668 = sand.u32 %s181, 1
        %s669 = smul.addr %s668, 64
        %s670 = scalar_lea.vmem [#allocation13], %s669
        %p671 = pneg %p194
        %p672 = pneg %p191
        %s673 = sand.u32 %s41, 1
        %s674 = scalar_lea.sflag [#allocation14], %s673
        %s675 = sand.u32 %s207, 1
        %s676 = scalar_lea.vmem [#allocation15], %s675
        %p677 = pneg %p220
        %p678 = pneg %p217
        %s679 = sand.u32 %s41, 1
        %s680 = scalar_lea.sflag [#allocation17], %s679
        %s681 = sand.u32 %s233, 1
        %s682 = scalar_lea.vmem [#allocation16], %s681
        %p683 = pneg %p246
        %p684 = pneg %p243
        %s685 = sand.u32 %s41, 1
        %s686 = scalar_lea.sflag [#allocation17], %s685
        %s687 = sand.u32 %s259, 1
        %s688 = scalar_lea.vmem [#allocation18], %s687
        %p689 = pneg %p272
        %p690 = pneg %p269
        %s691 = sand.u32 %s41, 1
        %s692 = scalar_lea.sflag [#allocation20], %s691
        %s693 = sand.u32 %s285, 1
        %s694 = smul.addr %s693, 16
        %s695 = scalar_lea.vmem [#allocation19], %s694
        %p696 = pneg %p298
        %p697 = pneg %p295
        %p698 = pneg %p319
        %p699 = pneg %p316
        %p700 = pneg %p345
        %p701 = pneg %p342
        %s702 = sand.u32 %s332, 1
        %s703 = scalar_lea.sflag [#allocation6], %s702
        %s704 = sand.u32 %s332, 1
        %s705 = smul.addr %s704, 8
        %s706 = scalar_lea.vmem [#allocation22], %s705
        %p708 = scmp.eq.s32.totalorder %s46, 0
        // Predicated region
        $region109: #{vit_forward.5} parent=63 // pred_check
          %p709 = pneg %p708
        $region110: #{vit_forward.5} parent=63 // pred_check_branch
          %711 = sbr.rel (%p709) target = $region112
        $region111: #{vit_forward.5} parent=63 // pred_region
          %v712 = vld [vmem:[%s564] sm:$0xf]
          %v713 = vld [vmem:[%s564 + $0x4] sm:$0xf]
          %v714 = vunpack.c.l.bf16 %v712
          %v715 = vunpack.c.l.bf16 %v713
          %v716 = vld [vmem:[#allocation7] sm:$0x1]
          %v717 = vld [vmem:[#allocation9] sm:$0x1]
          %718 = vadd.xlane.f32.xlu0 %v714
          %v719 = vpop.xlane.xlu0 %718
          %720 = vadd.xlane.f32.xlu0 %v715
          %v721 = vpop.xlane.xlu0 %720
          %v722 = vrcp.pop 128.0
          %v723 = vmul.f32 %v719, %v722
          %v724 = vmul.f32 %v721, %v722
          %v725 = vmul.f32 %v714, %v714
          %v726 = vmul.f32 %v715, %v715
          %727 = vadd.xlane.f32.xlu0 %v725
          %v728 = vpop.xlane.xlu0 %727
          %729 = vadd.xlane.f32.xlu0 %v726
          %v730 = vpop.xlane.xlu0 %729
          %v731 = vmul.f32 %v728, %v722
          %v732 = vmul.f32 %v730, %v722
          %v733 = vmul.f32 %v723, %v723
          %v734 = vmul.f32 %v724, %v724
          %v735 = vsub.f32 %v731, %v733
          %v736 = vsub.f32 %v732, %v734
          %v737 = vmax.f32 %v735, 0.0
          %v738 = vmax.f32 %v736, 0.0
          %v739 = vsub.f32 %v714, %v723
          %v740 = vsub.f32 %v715, %v724
          %v741 = vadd.f32 %v737, 1e-06
          %v742 = vadd.f32 %v738, 1e-06
          %v743 = vrsqrt.pop %v741
          %v744 = vrsqrt.pop %v742
          %v745 = vmul.f32 %v739, %v743
          %v746 = vmul.f32 %v740, %v744
          %v747 = vunpack.c.l.bf16 %v716
          %v748 = vlaneseq
          %v749 = vshrl.u32 %v748, 7
          %v750 = vsub.s32 0, %v749
          %v751 = vrot.slane %v747, %v750
          %v752 = vmul.f32 %v745, %v751
          %v753 = vmul.f32 %v746, %v751
          %v754 = vunpack.c.l.bf16 %v717
          %v755 = vlaneseq
          %v756 = vshrl.u32 %v755, 7
          %v757 = vsub.s32 0, %v756
          %v758 = vrot.slane %v754, %v757
          %v759 = vadd.f32 %v752, %v758
          %v760 = vadd.f32 %v753, %v758
          %v761 = vpack.c.bf16 %v760, %v759
          %762 = vst [vmem:[#allocation2] sm:$0xff] %v761
          %v763 = vld [vmem:[#allocation21] sm:$0x1]
          %v764 = vunpack.c.l.bf16 %v763
          %v765 = vlaneseq
          %v766 = vshrl.u32 %v765, 7
          %v767 = vsub.s32 0, %v766
          %v768 = vrot.slane %v764, %v767
          %v769 = vadd.f32 %v714, %v768
          %v770 = vadd.f32 %v715, %v768
          %771 = vst [vmem:[#allocation3] sm:$0xff] %v769
          %772 = vst [vmem:[#allocation3 + $0x8] sm:$0xff] %v770
        $region112: #{vit_forward.5} parent=63 // pred_fallthru
          _
        %v773 = vld [vmem:[#allocation2] sm:$0xff]
        %v774 = vld [vmem:[%s581] sm:$0xf]
        %v775 = vld [vmem:[%s581 + $0x4] sm:$0xf]
        %v776 = vld [vmem:[%s581 + $0x8] sm:$0xf]
        %v777 = vld [vmem:[%s581 + $0xc] sm:$0xf]
        %v778 = vld [vmem:[%s581 + $0x10] sm:$0xf]
        %v779 = vld [vmem:[%s581 + $0x14] sm:$0xf]
        %v780 = vld [vmem:[%s581 + $0x18] sm:$0xf]
        %v781 = vld [vmem:[%s581 + $0x1c] sm:$0xf]
        %v782 = vld [vmem:[%s581 + $0x20] sm:$0xf]
        %v783 = vld [vmem:[%s581 + $0x24] sm:$0xf]
        %v784 = vld [vmem:[%s581 + $0x28] sm:$0xf]
        %v785 = vld [vmem:[%s581 + $0x2c] sm:$0xf]
        %v786 = vld [vmem:[%s581 + $0x30] sm:$0xf]
        %v787 = vld [vmem:[%s581 + $0x34] sm:$0xf]
        %v788 = vld [vmem:[%s581 + $0x38] sm:$0xf]
        %v789 = vld [vmem:[%s581 + $0x3c] sm:$0xf]
        %v790 = vld [vmem:[%s607] sm:$0x1]
        %v791 = vunpack.c.l.bf16 %v790
        %v792 = vlaneseq
        %v793 = vshrl.u32 %v792, 7
        %v794 = vsub.s32 0, %v793
        %v795 = vrot.slane %v791, %v794
        %v812 = vunpack.c.l.b16 %v774
        %v813 = vunpack.c.l.b16 %v775
        %v814 = vunpack.c.l.b16 %v776
        %v815 = vunpack.c.l.b16 %v777
        %v816 = vunpack.c.l.b16 %v778
        %v817 = vunpack.c.l.b16 %v779
        %v818 = vunpack.c.l.b16 %v780
        %v819 = vunpack.c.l.b16 %v781
        %v820 = vunpack.c.l.b16 %v782
        %v821 = vunpack.c.l.b16 %v783
        %v822 = vunpack.c.l.b16 %v784
        %v823 = vunpack.c.l.b16 %v785
        %v824 = vunpack.c.l.b16 %v786
        %v825 = vunpack.c.l.b16 %v787
        %v826 = vunpack.c.l.b16 %v788
        %v827 = vunpack.c.l.b16 %v789
        %v828 = vpack.c.b16 %v813, %v812
        %v829 = vpack.c.b16 %v815, %v814
        %v830 = vpack.c.b16 %v817, %v816
        %v831 = vpack.c.b16 %v819, %v818
        %v832 = vpack.c.b16 %v821, %v820
        %v833 = vpack.c.b16 %v823, %v822
        %v834 = vpack.c.b16 %v825, %v824
        %v835 = vpack.c.b16 %v827, %v826
        %844 = vmatprep.subr.bf16.mxu0 0
        %845 = vmatpush1.bf16.msra.mxu0 %v828
        %846 = vmatprep.subr.bf16.mxu0 0
        %847 = vmatpush1.bf16.msra.mxu0 %v829
        %848 = vmatprep.subr.bf16.mxu0 0
        %849 = vmatpush1.bf16.msra.mxu0 %v830
        %850 = vmatprep.subr.bf16.mxu0 0
        %851 = vmatpush1.bf16.msra.mxu0 %v831
        %852 = vmatprep.subr.bf16.mxu0 0
        %853 = vmatpush1.bf16.msra.mxu0 %v832
        %854 = vmatprep.subr.bf16.mxu0 0
        %855 = vmatpush1.bf16.msra.mxu0 %v833
        %856 = vmatprep.subr.bf16.mxu0 0
        %857 = vmatpush1.bf16.msra.mxu0 %v834
        %858 = vmatprep.subr.bf16.mxu0 0
        %859 = vmatpush1.bf16.msra.mxu0 %v835
        %860 = vmatprep.subr.bf16.mxu0 0
        %861 = vmatpush1.bf16.msra.mxu0 0
        %862 = vmatprep.subr.bf16.mxu0 0
        %863 = vmatpush1.bf16.msra.mxu0 0
        %864 = vmatprep.subr.bf16.mxu0 0
        %865 = vmatpush1.bf16.msra.mxu0 0
        %866 = vmatprep.subr.bf16.mxu0 0
        %867 = vmatpush1.bf16.msra.mxu0 0
        %868 = vmatprep.subr.bf16.mxu0 0
        %869 = vmatpush1.bf16.msra.mxu0 0
        %870 = vmatprep.subr.bf16.mxu0 0
        %871 = vmatpush1.bf16.msra.mxu0 0
        %872 = vmatprep.subr.bf16.mxu0 0
        %873 = vmatpush1.bf16.msra.mxu0 0
        %874 = vmatprep.subr.bf16.mxu0 0
        %875 = vmatpush1.bf16.msra.mxu0 0
        %876 = vmatprep.mubr.bf16.mxu0 0
        %877 = vmatmul.mubr.bf16.gmra.mrb[0].mxu0 %v773
        %v878 = vpop.f32.mrb[0].mxu0
        %v879 = vadd.f32 %v795, %v878
        %v880 = vpop.f32.mrb[0].mxu0
        %v881 = vpop.f32.mrb[0].mxu0
        %v882 = vadd.f32 %v795, %v881
        %v883 = vpop.f32.mrb[0].mxu0
        %884 = vdwg.mxu0
        %v885 = vpack.c.bf16 %v882, %v879
        %v886 = vld [vmem:[%s590] sm:$0xf]
        %v887 = vld [vmem:[%s590 + $0x4] sm:$0xf]
        %v888 = vld [vmem:[%s590 + $0x8] sm:$0xf]
        %v889 = vld [vmem:[%s590 + $0xc] sm:$0xf]
        %v890 = vld [vmem:[%s590 + $0x10] sm:$0xf]
        %v891 = vld [vmem:[%s590 + $0x14] sm:$0xf]
        %v892 = vld [vmem:[%s590 + $0x18] sm:$0xf]
        %v893 = vld [vmem:[%s590 + $0x1c] sm:$0xf]
        %v894 = vld [vmem:[%s590 + $0x20] sm:$0xf]
        %v895 = vld [vmem:[%s590 + $0x24] sm:$0xf]
        %v896 = vld [vmem:[%s590 + $0x28] sm:$0xf]
        %v897 = vld [vmem:[%s590 + $0x2c] sm:$0xf]
        %v898 = vld [vmem:[%s590 + $0x30] sm:$0xf]
        %v899 = vld [vmem:[%s590 + $0x34] sm:$0xf]
        %v900 = vld [vmem:[%s590 + $0x38] sm:$0xf]
        %v901 = vld [vmem:[%s590 + $0x3c] sm:$0xf]
        %v902 = vld [vmem:[%s615] sm:$0x1]
        %v903 = vunpack.c.l.bf16 %v902
        %v904 = vlaneseq
        %v905 = vshrl.u32 %v904, 7
        %v906 = vsub.s32 0, %v905
        %v907 = vrot.slane %v903, %v906
        %v924 = vunpack.c.l.b16 %v886
        %v925 = vunpack.c.l.b16 %v887
        %v926 = vunpack.c.l.b16 %v888
        %v927 = vunpack.c.l.b16 %v889
        %v928 = vunpack.c.l.b16 %v890
        %v929 = vunpack.c.l.b16 %v891
        %v930 = vunpack.c.l.b16 %v892
        %v931 = vunpack.c.l.b16 %v893
        %v932 = vunpack.c.l.b16 %v894
        %v933 = vunpack.c.l.b16 %v895
        %v934 = vunpack.c.l.b16 %v896
        %v935 = vunpack.c.l.b16 %v897
        %v936 = vunpack.c.l.b16 %v898
        %v937 = vunpack.c.l.b16 %v899
        %v938 = vunpack.c.l.b16 %v900
        %v939 = vunpack.c.l.b16 %v901
        %v940 = vpack.c.b16 %v925, %v924
        %v941 = vpack.c.b16 %v927, %v926
        %v942 = vpack.c.b16 %v929, %v928
        %v943 = vpack.c.b16 %v931, %v930
        %v944 = vpack.c.b16 %v933, %v932
        %v945 = vpack.c.b16 %v935, %v934
        %v946 = vpack.c.b16 %v937, %v936
        %v947 = vpack.c.b16 %v939, %v938
        %956 = vmatprep.subr.bf16.mxu0 0
        %957 = vmatpush1.bf16.msra.mxu0 %v940
        %958 = vmatprep.subr.bf16.mxu0 0
        %959 = vmatpush1.bf16.msra.mxu0 %v941
        %960 = vmatprep.subr.bf16.mxu0 0
        %961 = vmatpush1.bf16.msra.mxu0 %v942
        %962 = vmatprep.subr.bf16.mxu0 0
        %963 = vmatpush1.bf16.msra.mxu0 %v943
        %964 = vmatprep.subr.bf16.mxu0 0
        %965 = vmatpush1.bf16.msra.mxu0 %v944
        %966 = vmatprep.subr.bf16.mxu0 0
        %967 = vmatpush1.bf16.msra.mxu0 %v945
        %968 = vmatprep.subr.bf16.mxu0 0
        %969 = vmatpush1.bf16.msra.mxu0 %v946
        %970 = vmatprep.subr.bf16.mxu0 0
        %971 = vmatpush1.bf16.msra.mxu0 %v947
        %972 = vmatprep.subr.bf16.mxu0 0
        %973 = vmatpush1.bf16.msra.mxu0 0
        %974 = vmatprep.subr.bf16.mxu0 0
        %975 = vmatpush1.bf16.msra.mxu0 0
        %976 = vmatprep.subr.bf16.mxu0 0
        %977 = vmatpush1.bf16.msra.mxu0 0
        %978 = vmatprep.subr.bf16.mxu0 0
        %979 = vmatpush1.bf16.msra.mxu0 0
        %980 = vmatprep.subr.bf16.mxu0 0
        %981 = vmatpush1.bf16.msra.mxu0 0
        %982 = vmatprep.subr.bf16.mxu0 0
        %983 = vmatpush1.bf16.msra.mxu0 0
        %984 = vmatprep.subr.bf16.mxu0 0
        %985 = vmatpush1.bf16.msra.mxu0 0
        %986 = vmatprep.subr.bf16.mxu0 0
        %987 = vmatpush1.bf16.msra.mxu0 0
        %988 = vmatprep.mubr.bf16.mxu0 0
        %989 = vmatmul.mubr.bf16.gmra.mrb[0].mxu0 %v773
        %v990 = vpop.f32.mrb[0].mxu0
        %v991 = vadd.f32 %v907, %v990
        %v992 = vpop.f32.mrb[0].mxu0
        %v993 = vpop.f32.mrb[0].mxu0
        %v994 = vadd.f32 %v907, %v993
        %v995 = vpop.f32.mrb[0].mxu0
        %996 = vdwg.mxu0
        %v997 = vpack.c.bf16 %v994, %v991
        %v998 = vld [vmem:[%s599] sm:$0xf]
        %v999 = vld [vmem:[%s599 + $0x4] sm:$0xf]
        %v1000 = vld [vmem:[%s599 + $0x8] sm:$0xf]
        %v1001 = vld [vmem:[%s599 + $0xc] sm:$0xf]
        %v1002 = vld [vmem:[%s599 + $0x10] sm:$0xf]
        %v1003 = vld [vmem:[%s599 + $0x14] sm:$0xf]
        %v1004 = vld [vmem:[%s599 + $0x18] sm:$0xf]
        %v1005 = vld [vmem:[%s599 + $0x1c] sm:$0xf]
        %v1006 = vld [vmem:[%s599 + $0x20] sm:$0xf]
        %v1007 = vld [vmem:[%s599 + $0x24] sm:$0xf]
        %v1008 = vld [vmem:[%s599 + $0x28] sm:$0xf]
        %v1009 = vld [vmem:[%s599 + $0x2c] sm:$0xf]
        %v1010 = vld [vmem:[%s599 + $0x30] sm:$0xf]
        %v1011 = vld [vmem:[%s599 + $0x34] sm:$0xf]
        %v1012 = vld [vmem:[%s599 + $0x38] sm:$0xf]
        %v1013 = vld [vmem:[%s599 + $0x3c] sm:$0xf]
        %v1014 = vld [vmem:[%s623] sm:$0x1]
        %v1015 = vunpack.c.l.bf16 %v1014
        %v1016 = vlaneseq
        %v1017 = vshrl.u32 %v1016, 7
        %v1018 = vsub.s32 0, %v1017
        %v1019 = vrot.slane %v1015, %v1018
        %v1036 = vunpack.c.l.b16 %v998
        %v1037 = vunpack.c.l.b16 %v999
        %v1038 = vunpack.c.l.b16 %v1000
        %v1039 = vunpack.c.l.b16 %v1001
        %v1040 = vunpack.c.l.b16 %v1002
        %v1041 = vunpack.c.l.b16 %v1003
        %v1042 = vunpack.c.l.b16 %v1004
        %v1043 = vunpack.c.l.b16 %v1005
        %v1044 = vunpack.c.l.b16 %v1006
        %v1045 = vunpack.c.l.b16 %v1007
        %v1046 = vunpack.c.l.b16 %v1008
        %v1047 = vunpack.c.l.b16 %v1009
        %v1048 = vunpack.c.l.b16 %v1010
        %v1049 = vunpack.c.l.b16 %v1011
        %v1050 = vunpack.c.l.b16 %v1012
        %v1051 = vunpack.c.l.b16 %v1013
        %v1052 = vpack.c.b16 %v1037, %v1036
        %v1053 = vpack.c.b16 %v1039, %v1038
        %v1054 = vpack.c.b16 %v1041, %v1040
        %v1055 = vpack.c.b16 %v1043, %v1042
        %v1056 = vpack.c.b16 %v1045, %v1044
        %v1057 = vpack.c.b16 %v1047, %v1046
        %v1058 = vpack.c.b16 %v1049, %v1048
        %v1059 = vpack.c.b16 %v1051, %v1050
        %1068 = vmatprep.subr.bf16.mxu0 0
        %1069 = vmatpush1.bf16.msra.mxu0 %v1052
        %1070 = vmatprep.subr.bf16.mxu0 0
        %1071 = vmatpush1.bf16.msra.mxu0 %v1053
        %1072 = vmatprep.subr.bf16.mxu0 0
        %1073 = vmatpush1.bf16.msra.mxu0 %v1054
        %1074 = vmatprep.subr.bf16.mxu0 0
        %1075 = vmatpush1.bf16.msra.mxu0 %v1055
        %1076 = vmatprep.subr.bf16.mxu0 0
        %1077 = vmatpush1.bf16.msra.mxu0 %v1056
        %1078 = vmatprep.subr.bf16.mxu0 0
        %1079 = vmatpush1.bf16.msra.mxu0 %v1057
        %1080 = vmatprep.subr.bf16.mxu0 0
        %1081 = vmatpush1.bf16.msra.mxu0 %v1058
        %1082 = vmatprep.subr.bf16.mxu0 0
        %1083 = vmatpush1.bf16.msra.mxu0 %v1059
        %1084 = vmatprep.subr.bf16.mxu0 0
        %1085 = vmatpush1.bf16.msra.mxu0 0
        %1086 = vmatprep.subr.bf16.mxu0 0
        %1087 = vmatpush1.bf16.msra.mxu0 0
        %1088 = vmatprep.subr.bf16.mxu0 0
        %1089 = vmatpush1.bf16.msra.mxu0 0
        %1090 = vmatprep.subr.bf16.mxu0 0
        %1091 = vmatpush1.bf16.msra.mxu0 0
        %1092 = vmatprep.subr.bf16.mxu0 0
        %1093 = vmatpush1.bf16.msra.mxu0 0
        %1094 = vmatprep.subr.bf16.mxu0 0
        %1095 = vmatpush1.bf16.msra.mxu0 0
        %1096 = vmatprep.subr.bf16.mxu0 0
        %1097 = vmatpush1.bf16.msra.mxu0 0
        %1098 = vmatprep.subr.bf16.mxu0 0
        %1099 = vmatpush1.bf16.msra.mxu0 0
        %1100 = vmatprep.mubr.bf16.mxu0 0
        %1101 = vmatmul.mubr.bf16.gmra.mrb[0].mxu0 %v773
        %v1102 = vpop.f32.mrb[0].mxu0
        %v1103 = vadd.f32 %v1019, %v1102
        %v1104 = vpop.f32.mrb[0].mxu0
        %v1105 = vpop.f32.mrb[0].mxu0
        %v1106 = vadd.f32 %v1019, %v1105
        %v1107 = vpop.f32.mrb[0].mxu0
        %1108 = vdwg.mxu0
        %v1109 = vpack.c.bf16 %v1106, %v1103
        %vm1110 = vcmask 261120
        %v1112 = vsel %vm1110, %v885, 0
        %v1115 = vsel %vm1110, %v997, 0
        %1117 = vmatprep.subr.bf16.mxu0 0
        %1118 = vmatpush1.bf16.xpose.msra.mxu0 %v1115
        %1119 = vmatprep.subr.bf16.mxu0 0
        %1120 = vmatpush1.bf16.xpose.msra.mxu0 0
        %1121 = vmatprep.subr.bf16.mxu0 0
        %1122 = vmatpush1.bf16.xpose.msra.mxu0 0
        %1123 = vmatprep.subr.bf16.mxu0 0
        %1124 = vmatpush1.bf16.xpose.msra.mxu0 0
        %1125 = vmatprep.subr.bf16.mxu0 0
        %1126 = vmatpush1.bf16.xpose.msra.mxu0 0
        %1127 = vmatprep.subr.bf16.mxu0 0
        %1128 = vmatpush1.bf16.xpose.msra.mxu0 0
        %1129 = vmatprep.subr.bf16.mxu0 0
        %1130 = vmatpush1.bf16.xpose.msra.mxu0 0
        %1131 = vmatprep.subr.bf16.mxu0 0
        %1132 = vmatpush1.bf16.xpose.msra.mxu0 0
        %1133 = vmatprep.subr.bf16.mxu0 0
        %1134 = vmatpush1.bf16.xpose.msra.mxu0 0
        %1135 = vmatprep.subr.bf16.mxu0 0
        %1136 = vmatpush1.bf16.xpose.msra.mxu0 0
        %1137 = vmatprep.subr.bf16.mxu0 0
        %1138 = vmatpush1.bf16.xpose.msra.mxu0 0
        %1139 = vmatprep.subr.bf16.mxu0 0
        %1140 = vmatpush1.bf16.xpose.msra.mxu0 0
        %1141 = vmatprep.subr.bf16.mxu0 0
        %1142 = vmatpush1.bf16.xpose.msra.mxu0 0
        %1143 = vmatprep.subr.bf16.mxu0 0
        %1144 = vmatpush1.bf16.xpose.msra.mxu0 0
        %1145 = vmatprep.subr.bf16.mxu0 0
        %1146 = vmatpush1.bf16.xpose.msra.mxu0 0
        %1147 = vmatprep.subr.bf16.mxu0 0
        %1148 = vmatpush1.bf16.xpose.msra.mxu0 0
        %1149 = vmatprep.mubr.bf16.mxu0 0
        %1150 = vmatmul.mubr.bf16.gmra.mrb[0].mxu0 %v1112
        %v1151 = vpop.f32.mrb[0].mxu0
        %v1152 = vadd.f32 0.0, %v1151
        %v1153 = vpop.f32.mrb[0].mxu0
        %v1154 = vpop.f32.mrb[0].mxu0
        %v1155 = vadd.f32 0.0, %v1154
        %v1156 = vpop.f32.mrb[0].mxu0
        %1157 = vdwg.mxu0
        %vm1158 = vcmask 130048
        %v1159 = vsel %vm1158, %v1152, -inf
        %1160 = vmax.xlane.f32.xlu0 %v1159
        %v1161 = vpop.xlane.xlu0 %1160
        %v1162 = vsel %vm1158, %v1155, -inf
        %1163 = vmax.xlane.f32.xlu0 %v1162
        %v1164 = vpop.xlane.xlu0 %1163
        %v1165 = vsub.f32 %v1152, %v1161
        %v1166 = vsub.f32 %v1155, %v1164
        %v1167 = vmul.f32 %v1165, 1.442695
        %v1168 = vpow.pop %v1167
        %v1169 = vmul.f32 %v1166, 1.442695
        %v1170 = vpow.pop %v1169
        %v1171 = vsel %vm1158, %v1168, 0.0
        %1172 = vadd.xlane.f32.xlu0 %v1171
        %v1173 = vpop.xlane.xlu0 %1172
        %v1174 = vsel %vm1158, %v1170, 0.0
        %1175 = vadd.xlane.f32.xlu0 %v1174
        %v1176 = vpop.xlane.xlu0 %1175
        %v1177 = vrcp.pop %v1173
        %v1178 = vrcp.pop %v1176
        %v1179 = vmul.f32 %v1168, %v1177
        %v1180 = vmul.f32 %v1170, %v1178
        %v1181 = vpack.c.bf16 %v1180, %v1179
        %v1183 = vsel %vm1158, %v1181, 0
        %1185 = vmatprep.subr.bf16.mxu0 0
        %1186 = vmatpush1.bf16.msra.mxu0 %v1109
        %1187 = vmatprep.subr.bf16.mxu0 0
        %1188 = vmatpush1.bf16.msra.mxu0 0
        %1189 = vmatprep.subr.bf16.mxu0 0
        %1190 = vmatpush1.bf16.msra.mxu0 0
        %1191 = vmatprep.subr.bf16.mxu0 0
        %1192 = vmatpush1.bf16.msra.mxu0 0
        %1193 = vmatprep.subr.bf16.mxu0 0
        %1194 = vmatpush1.bf16.msra.mxu0 0
        %1195 = vmatprep.subr.bf16.mxu0 0
        %1196 = vmatpush1.bf16.msra.mxu0 0
        %1197 = vmatprep.subr.bf16.mxu0 0
        %1198 = vmatpush1.bf16.msra.mxu0 0
        %1199 = vmatprep.subr.bf16.mxu0 0
        %1200 = vmatpush1.bf16.msra.mxu0 0
        %1201 = vmatprep.subr.bf16.mxu0 0
        %1202 = vmatpush1.bf16.msra.mxu0 0
        %1203 = vmatprep.subr.bf16.mxu0 0
        %1204 = vmatpush1.bf16.msra.mxu0 0
        %1205 = vmatprep.subr.bf16.mxu0 0
        %1206 = vmatpush1.bf16.msra.mxu0 0
        %1207 = vmatprep.subr.bf16.mxu0 0
        %1208 = vmatpush1.bf16.msra.mxu0 0
        %1209 = vmatprep.subr.bf16.mxu0 0
        %1210 = vmatpush1.bf16.msra.mxu0 0
        %1211 = vmatprep.subr.bf16.mxu0 0
        %1212 = vmatpush1.bf16.msra.mxu0 0
        %1213 = vmatprep.subr.bf16.mxu0 0
        %1214 = vmatpush1.bf16.msra.mxu0 0
        %1215 = vmatprep.subr.bf16.mxu0 0
        %1216 = vmatpush1.bf16.msra.mxu0 0
        %1217 = vmatprep.mubr.bf16.mxu0 0
        %1218 = vmatmul.mubr.bf16.gmra.mrb[0].mxu0 %v1183
        %v1219 = vpop.f32.mrb[0].mxu0
        %v1220 = vadd.f32 0.0, %v1219
        %v1221 = vpop.f32.mrb[0].mxu0
        %v1222 = vpop.f32.mrb[0].mxu0
        %v1223 = vadd.f32 0.0, %v1222
        %v1224 = vpop.f32.mrb[0].mxu0
        %1225 = vdwg.mxu0
        %v1226 = vld [vmem:[#allocation3] sm:$0xff]
        %v1227 = vld [vmem:[#allocation3 + $0x8] sm:$0xff]
        %v1228 = vpack.c.bf16 %v1223, %v1220
        %v1229 = vld [vmem:[%s632] sm:$0xf]
        %v1230 = vld [vmem:[%s632 + $0x4] sm:$0xf]
        %v1231 = vld [vmem:[%s632 + $0x8] sm:$0xf]
        %v1232 = vld [vmem:[%s632 + $0xc] sm:$0xf]
        %v1237 = vunpack.c.l.b16 %v1229
        %v1238 = vunpack.c.l.b16 %v1230
        %v1239 = vunpack.c.l.b16 %v1231
        %v1240 = vunpack.c.l.b16 %v1232
        %v1241 = vpack.c.b16 %v1238, %v1237
        %v1242 = vpack.c.b16 %v1240, %v1239
        %v1246 = vsel %vm1110, %v1228, 0
        %1248 = vmatprep.subr.bf16.mxu0 0
        %1249 = vmatpush1.bf16.msra.mxu0 %v1241
        %1250 = vmatprep.subr.bf16.mxu0 0
        %1251 = vmatpush1.bf16.msra.mxu0 %v1242
        %1252 = vmatprep.subr.bf16.mxu0 0
        %1253 = vmatpush1.bf16.msra.mxu0 0
        %1254 = vmatprep.subr.bf16.mxu0 0
        %1255 = vmatpush1.bf16.msra.mxu0 0
        %1256 = vmatprep.subr.bf16.mxu0 0
        %1257 = vmatpush1.bf16.msra.mxu0 0
        %1258 = vmatprep.subr.bf16.mxu0 0
        %1259 = vmatpush1.bf16.msra.mxu0 0
        %1260 = vmatprep.subr.bf16.mxu0 0
        %1261 = vmatpush1.bf16.msra.mxu0 0
        %1262 = vmatprep.subr.bf16.mxu0 0
        %1263 = vmatpush1.bf16.msra.mxu0 0
        %1264 = vmatprep.subr.bf16.mxu0 0
        %1265 = vmatpush1.bf16.msra.mxu0 0
        %1266 = vmatprep.subr.bf16.mxu0 0
        %1267 = vmatpush1.bf16.msra.mxu0 0
        %1268 = vmatprep.subr.bf16.mxu0 0
        %1269 = vmatpush1.bf16.msra.mxu0 0
        %1270 = vmatprep.subr.bf16.mxu0 0
        %1271 = vmatpush1.bf16.msra.mxu0 0
        %1272 = vmatprep.subr.bf16.mxu0 0
        %1273 = vmatpush1.bf16.msra.mxu0 0
        %1274 = vmatprep.subr.bf16.mxu0 0
        %1275 = vmatpush1.bf16.msra.mxu0 0
        %1276 = vmatprep.subr.bf16.mxu0 0
        %1277 = vmatpush1.bf16.msra.mxu0 0
        %1278 = vmatprep.subr.bf16.mxu0 0
        %1279 = vmatpush1.bf16.msra.mxu0 0
        %1280 = vmatprep.mubr.bf16.mxu0 0
        %1281 = vmatmul.mubr.bf16.gmra.mrb[0].mxu0 %v1246
        %v1282 = vpop.f32.mrb[0].mxu0
        %v1283 = vadd.f32 0.0, %v1282
        %v1284 = vpop.f32.mrb[0].mxu0
        %v1285 = vpop.f32.mrb[0].mxu0
        %v1286 = vadd.f32 0.0, %v1285
        %v1287 = vpop.f32.mrb[0].mxu0
        %1288 = vdwg.mxu0
        %v1289 = vadd.f32 %v1226, %v1283
        %v1290 = vadd.f32 %v1227, %v1286
        %1291 = vst [vmem:[#allocation3] sm:$0xff] %v1289
        %1292 = vst [vmem:[#allocation3 + $0x8] sm:$0xff] %v1290
        %p1293 = scmp.eq.s32.totalorder %s46, 3
        // Predicated region
        $region113: #{vit_forward.5} parent=63 // pred_check
          %p1294 = pneg %p1293
        $region114: #{vit_forward.5} parent=63 // pred_check_branch
          %1296 = sbr.rel (%p1294) target = $region116
        $region115: #{vit_forward.5} parent=63 // pred_region
          %v1297 = vld [vmem:[#allocation3] sm:$0xff]
          %v1298 = vld [vmem:[#allocation3 + $0x8] sm:$0xff]
          %v1299 = vpack.c.bf16 %v1298, %v1297
          %v1301 = vunpack.c.l.b16 %v1299
          %v1302 = vunpack.c.h.b16 %v1299
          %v1303 = vpack.c.b16 %v1301, %v1301
          %v1304 = vpack.c.b16 %v1302, %v1302
          %1307 = vst [vmem:[%s706] sm:$0xf] %v1303
          %1308 = vst [vmem:[%s706 + $0x4] sm:$0xf] %v1304
        $region116: #{vit_forward.5} parent=63 // pred_fallthru
          _
        %s1309 = sand.u32 %s332, 1
        %s1310 = scalar_lea.sflag [#allocation6], %s1309
        %s1311 = sand.u32 %s332, 1
        %s1312 = smul.addr %s1311, 8
        %s1313 = scalar_lea.vmem [#allocation22], %s1312
        // Predicated region
        $region117: #{vit_forward.5} parent=63 // pred_check
          %p1314 = pneg %p342
        $region118: #{vit_forward.5} parent=63 // pred_check_branch
          %1316 = sbr.rel (%p1314) target = $region120
        $region119: #{vit_forward.5} parent=63 // pred_region
          %s1318 = ssub.s32 128, 128
          %1319 = vsyncadd %s1310, %s1318
          %s1320 = smul.addr %s45, 2
          %s1321 = smul.addr %s1320, 64
          %s1322 = scalar_lea.hbm %s11, %s1321
          %s1323 = sshll.u32 %s1313, 4
          %s1324 = int_to_ptr.vmem [resolvable:$true] %s1323
          %1329 = dma.vmem_to_hbm [thread:$0]  %s1324, 128, %s1322, %s1310, 64, 64, 4
        $region120: #{vit_forward.5} parent=63 // pred_fallthru
          _
      $region64: #{vit_forward.5} parent=5 // pred_fallthru
        _
      %p1330 = scmp.le.s32.totalorder 2, %s36
      // Predicated region
      $region121: #{vit_forward.5} parent=5 // pred_check
        %p1331 = pneg %p1330
      $region122: #{vit_forward.5} parent=5 // pred_check_branch
        %1333 = sbr.rel (%p1331) target = $region124
      $region123: #{vit_forward.5} parent=5 // pred_region
        %s1334 = ssub.s32 %s36, 2
        // Predicated region
        $region125: #{vit_forward.5} parent=123 // pred_check
          %p1335 = pneg %p348
        $region126: #{vit_forward.5} parent=123 // pred_check_branch
          %1337 = sbr.rel (%p1335) target = $region128
        $region127: #{vit_forward.5} parent=123 // pred_region
          %s1338 = sand.u32 %s333, 1
          %s1339 = scalar_lea.sflag [#allocation6], %s1338
          %s1340 = sand.u32 %s333, 1
          %s1341 = smul.addr %s1340, 8
          %s1342 = scalar_lea.vmem [#allocation22], %s1341
          %1343 = dma.done %s1339, 128
        $region128: #{vit_forward.5} parent=123 // pred_fallthru
          _
      $region124: #{vit_forward.5} parent=5 // pred_fallthru
        _
    $region6: #{vit_forward.5} parent=1 // loop_footer
      %s40 = sadd.s32 1, %s36
    $region7: #{vit_forward.5} parent=1 // loop_footer_branch
      %35 = sbr.rel target = $region3
    $region8: #{vit_forward.5} parent=1 // loop_exit
      _
    %1344 = vsyncpa [#allocation5], 1
    %s1345 = scalar_lea.sflag [#allocation5], 1
    %1346 = vsyncpa %s1345, 1
    %1347 = vsyncpa [#allocation8], 1
    %1348 = vsyncpa [#allocation11], 1
    %s1349 = scalar_lea.sflag [#allocation11], 1
    %1350 = vsyncpa %s1349, 1
    %1351 = vsyncpa [#allocation14], 1
    %s1352 = scalar_lea.sflag [#allocation14], 1
    %1353 = vsyncpa %s1352, 1
    %1354 = vsyncpa [#allocation17], 1
    %s1355 = scalar_lea.sflag [#allocation17], 1
    %1356 = vsyncpa %s1355, 1
    %1357 = vsyncpa [#allocation20], 1
    %s1358 = scalar_lea.sflag [#allocation20], 1
    %1359 = vsyncpa %s1358, 1
    %1360 = vsyncpa [#allocation6], 1
    %s1361 = scalar_lea.sflag [#allocation6], 1
    %1362 = vsyncpa %s1361, 1

// kernel: vit_forward.6
$region0: #{vit_forward.6}
  #allocation0 [shape = 'u32[]', space=smem, size = 0x4, offset = 0x4, fixed_abs, tag = 'smem constant byte address 0x4 - core index']
  #allocation1 [shape = 'u32[144,128]{1,0:T(1,128)}', space=vmem, size = 0x12000, scoped, tag = 'internal scratch']
  %s0 = inlined_call_operand.hbm [shape: bf16[2,16,128], index: 0, kind: input, shape index: {}, may-alias: {0,7}]
  %s1 = inlined_call_operand.hbm [shape: bf16[1,128], index: 1, kind: input, shape index: {}]
  %s2 = inlined_call_operand.hbm [shape: bf16[1,128], index: 2, kind: input, shape index: {}]
  %s3 = inlined_call_operand.hbm [shape: bf16[128,512], index: 3, kind: input, shape index: {}]
  %s4 = inlined_call_operand.hbm [shape: bf16[1,512], index: 4, kind: input, shape index: {}]
  %s5 = inlined_call_operand.hbm [shape: bf16[512,128], index: 5, kind: input, shape index: {}]
  %s6 = inlined_call_operand.hbm [shape: bf16[1,128], index: 6, kind: input, shape index: {}]
  %s7 = inlined_call_operand.hbm [shape: bf16[2,16,128], index: 7, kind: output, shape index: {}, may-alias: {0,7}]
  %s8 = sld [smem:[#allocation0]]
  $region89: #{vit_forward.6} parent=0
    _
  %s10 = ssub.s32 1, %s8
  %s11 = scalar_select 0, %s10, %s8
  $region1: #{vit_forward.6} parent=0
    #allocation2 [shape = 'u8[8192]{0}', space=vmem, size = 0x2000, scoped, tag = 'input window, operand 0']
    #allocation3 [shape = 's32[2]{0}', space=sflag, size = 0x8, scoped, tag = 'scoped memory for vit_forward.6']
    #allocation4 [shape = 's32[2]{0}', space=sflag, size = 0x8, scoped, tag = 'scoped memory for vit_forward.6']
    #allocation5 [shape = 'u8[512]{0}', space=vmem, size = 0x400, scoped, tag = 'input window, operand 1, single buffered']
    #allocation6 [shape = 's32[1]{0}', space=sflag, size = 0x4, scoped, tag = 'scoped memory for vit_forward.6']
    #allocation7 [shape = 'u8[512]{0}', space=vmem, size = 0x400, scoped, tag = 'input window, operand 2, single buffered']
    #allocation8 [shape = 'u8[131072]{0}', space=vmem, size = 0x20000, scoped, tag = 'input window, operand 3, single buffered']
    #allocation9 [shape = 's32[1]{0}', space=sflag, size = 0x4, scoped, tag = 'scoped memory for vit_forward.6']
    #allocation10 [shape = 'u8[2048]{0}', space=vmem, size = 0x800, scoped, tag = 'input window, operand 4, single buffered']
    #allocation11 [shape = 'u8[131072]{0}', space=vmem, size = 0x20000, scoped, tag = 'input window, operand 5, single buffered']
    #allocation12 [shape = 's32[1]{0}', space=sflag, size = 0x4, scoped, tag = 'scoped memory for vit_forward.6']
    #allocation13 [shape = 'u8[512]{0}', space=vmem, size = 0x400, scoped, tag = 'input window, operand 6, single buffered']
    #allocation14 [shape = 'u8[8192]{0}', space=vmem, size = 0x2000, scoped, tag = 'output window, operand 0']
    %12 = vsyncpa [#allocation3], 0
    %s13 = scalar_lea.sflag [#allocation3], 1
    %14 = vsyncpa %s13, 0
    %15 = vsyncpa [#allocation6], 0
    %16 = vsyncpa [#allocation9], 0
    %17 = vsyncpa [#allocation12], 0
    %18 = vsyncpa [#allocation4], 0
    %s19 = scalar_lea.sflag [#allocation4], 1
    %20 = vsyncpa %s19, 0
    loop: start=0, step=1, limit=4
    $region2: #{vit_forward.6} parent=1 // loop_pre_header
      _
    $region3: #{vit_forward.6} parent=1 // loop_header
      %s22 = sphi 0, %s26
      %p23 = scmp.ge.s32.totalorder %s22, 4
      %s29 = sphi 0, %s41
      %s30 = sphi 0, %s37
      %s31 = sphi 0, %s29
      %s32 = sphi 0, %s30
      %s33 = sphi 0, %s31
      %s34 = sphi 0, %s32
      %s46 = sphi 0, %s48
      %s49 = sphi 0, %s46
      %s50 = sphi 0, %s49
      %s66 = sphi 0, %s50
      %s70 = sphi 0, %s70
      %s72 = sphi 0, %s70
      %s73 = sphi 0, %s72
      %s87 = sphi 0, %s73
      %s91 = sphi 0, %s91
      %s93 = sphi 0, %s91
      %s94 = sphi 0, %s93
      %s108 = sphi 0, %s94
      %s112 = sphi 0, %s112
      %s114 = sphi 0, %s112
      %s115 = sphi 0, %s114
      %s129 = sphi 0, %s115
      %s133 = sphi 0, %s133
      %s135 = sphi 0, %s133
      %s136 = sphi 0, %s135
      %s150 = sphi 0, %s136
      %s154 = sphi 0, %s154
      %s156 = sphi 0, %s154
      %s157 = sphi 0, %s156
      %s171 = sphi 0, %s157
      %s175 = sphi 0, %s175
      %s177 = sphi 0, %s175
      %s178 = sphi 0, %s177
      %s192 = sphi 0, %s178
      %s200 = sphi 0, %s202
      %s203 = sphi 0, %s200
      %s204 = sphi 0, %s203
      %s220 = sphi 0, %s204
    $region4: #{vit_forward.6} parent=1 // loop_header_branch
      %25 = sbr.rel (%p23) target = $region8
    $region5: #{vit_forward.6} parent=1 // loop_body
      %s27 = ssub.s32 %s22, 1
      %s28 = ssub.s32 %s22, 2
      %s35 = sadd.s32 1, %s30
      %p36 = scmp.ge.s32.totalorder %s35, 1
      %s37 = scalar_select %p36, 0, %s35
      %s38 = sadd.s32 1, %s29
      %s39 = scalar_select %p36, %s38, %s29
      %p40 = scmp.ge.s32.totalorder %s39, 2
      %s41 = scalar_select %p40, 0, %s39
      %s42 = ssub.s32 %s29, %s41
      %s43 = ssub.s32 %s30, %s37
      %s44 = sor.u32 %s42, %s43
      %p45 = scmp.eq.s32.totalorder %s44, 0
      %s47 = sadd.s32 %s46, 1
      %s48 = scalar_select %p45, %s46, %s47
      %p51 = pneg %p45
      %p52 = scmp.eq.s32.totalorder %s22, 1
      %p53 = por %p51, %p52
      %p54 = scmp.ne.s32.totalorder %s46, %s49
      %p55 = scmp.eq.s32.totalorder %s22, 0
      %p56 = por %p54, %p55
      %p57 = scmp.ne.s32.totalorder %s46, %s49
      %p58 = scmp.eq.s32.totalorder %s27, 1
      %p59 = por %p57, %p58
      %p60 = scmp.ne.s32.totalorder %s49, %s50
      %p61 = scmp.eq.s32.totalorder %s27, 0
      %p62 = por %p60, %p61
      %p63 = scmp.ne.s32.totalorder %s49, %s50
      %p64 = scmp.eq.s32.totalorder %s28, 1
      %p65 = por %p63, %p64
      %p67 = scmp.ne.s32.totalorder %s50, %s66
      %p68 = scmp.eq.s32.totalorder %s28, 0
      %p69 = por %p67, %p68
      %s71 = sadd.s32 %s70, 1
      %p74 = scmp.eq.s32.totalorder %s22, 1
      %p75 = scmp.ne.s32.totalorder %s70, %s72
      %p76 = scmp.eq.s32.totalorder %s22, 0
      %p77 = por %p75, %p76
      %p78 = scmp.ne.s32.totalorder %s70, %s72
      %p79 = scmp.eq.s32.totalorder %s27, 1
      %p80 = por %p78, %p79
      %p81 = scmp.ne.s32.totalorder %s72, %s73
      %p82 = scmp.eq.s32.totalorder %s27, 0
      %p83 = por %p81, %p82
      %p84 = scmp.ne.s32.totalorder %s72, %s73
      %p85 = scmp.eq.s32.totalorder %s28, 1
      %p86 = por %p84, %p85
      %p88 = scmp.ne.s32.totalorder %s73, %s87
      %p89 = scmp.eq.s32.totalorder %s28, 0
      %p90 = por %p88, %p89
      %s92 = sadd.s32 %s91, 1
      %p95 = scmp.eq.s32.totalorder %s22, 1
      %p96 = scmp.ne.s32.totalorder %s91, %s93
      %p97 = scmp.eq.s32.totalorder %s22, 0
      %p98 = por %p96, %p97
      %p99 = scmp.ne.s32.totalorder %s91, %s93
      %p100 = scmp.eq.s32.totalorder %s27, 1
      %p101 = por %p99, %p100
      %p102 = scmp.ne.s32.totalorder %s93, %s94
      %p103 = scmp.eq.s32.totalorder %s27, 0
      %p104 = por %p102, %p103
      %p105 = scmp.ne.s32.totalorder %s93, %s94
      %p106 = scmp.eq.s32.totalorder %s28, 1
      %p107 = por %p105, %p106
      %p109 = scmp.ne.s32.totalorder %s94, %s108
      %p110 = scmp.eq.s32.totalorder %s28, 0
      %p111 = por %p109, %p110
      %s113 = sadd.s32 %s112, 1
      %p116 = scmp.eq.s32.totalorder %s22, 1
      %p117 = scmp.ne.s32.totalorder %s112, %s114
      %p118 = scmp.eq.s32.totalorder %s22, 0
      %p119 = por %p117, %p118
      %p120 = scmp.ne.s32.totalorder %s112, %s114
      %p121 = scmp.eq.s32.totalorder %s27, 1
      %p122 = por %p120, %p121
      %p123 = scmp.ne.s32.totalorder %s114, %s115
      %p124 = scmp.eq.s32.totalorder %s27, 0
      %p125 = por %p123, %p124
      %p126 = scmp.ne.s32.totalorder %s114, %s115
      %p127 = scmp.eq.s32.totalorder %s28, 1
      %p128 = por %p126, %p127
      %p130 = scmp.ne.s32.totalorder %s115, %s129
      %p131 = scmp.eq.s32.totalorder %s28, 0
      %p132 = por %p130, %p131
      %s134 = sadd.s32 %s133, 1
      %p137 = scmp.eq.s32.totalorder %s22, 1
      %p138 = scmp.ne.s32.totalorder %s133, %s135
      %p139 = scmp.eq.s32.totalorder %s22, 0
      %p140 = por %p138, %p139
      %p141 = scmp.ne.s32.totalorder %s133, %s135
      %p142 = scmp.eq.s32.totalorder %s27, 1
      %p143 = por %p141, %p142
      %p144 = scmp.ne.s32.totalorder %s135, %s136
      %p145 = scmp.eq.s32.totalorder %s27, 0
      %p146 = por %p144, %p145
      %p147 = scmp.ne.s32.totalorder %s135, %s136
      %p148 = scmp.eq.s32.totalorder %s28, 1
      %p149 = por %p147, %p148
      %p151 = scmp.ne.s32.totalorder %s136, %s150
      %p152 = scmp.eq.s32.totalorder %s28, 0
      %p153 = por %p151, %p152
      %s155 = sadd.s32 %s154, 1
      %p158 = scmp.eq.s32.totalorder %s22, 1
      %p159 = scmp.ne.s32.totalorder %s154, %s156
      %p160 = scmp.eq.s32.totalorder %s22, 0
      %p161 = por %p159, %p160
      %p162 = scmp.ne.s32.totalorder %s154, %s156
      %p163 = scmp.eq.s32.totalorder %s27, 1
      %p164 = por %p162, %p163
      %p165 = scmp.ne.s32.totalorder %s156, %s157
      %p166 = scmp.eq.s32.totalorder %s27, 0
      %p167 = por %p165, %p166
      %p168 = scmp.ne.s32.totalorder %s156, %s157
      %p169 = scmp.eq.s32.totalorder %s28, 1
      %p170 = por %p168, %p169
      %p172 = scmp.ne.s32.totalorder %s157, %s171
      %p173 = scmp.eq.s32.totalorder %s28, 0
      %p174 = por %p172, %p173
      %s176 = sadd.s32 %s175, 1
      %p179 = scmp.eq.s32.totalorder %s22, 1
      %p180 = scmp.ne.s32.totalorder %s175, %s177
      %p181 = scmp.eq.s32.totalorder %s22, 0
      %p182 = por %p180, %p181
      %p183 = scmp.ne.s32.totalorder %s175, %s177
      %p184 = scmp.eq.s32.totalorder %s27, 1
      %p185 = por %p183, %p184
      %p186 = scmp.ne.s32.totalorder %s177, %s178
      %p187 = scmp.eq.s32.totalorder %s27, 0
      %p188 = por %p186, %p187
      %p189 = scmp.ne.s32.totalorder %s177, %s178
      %p190 = scmp.eq.s32.totalorder %s28, 1
      %p191 = por %p189, %p190
      %p193 = scmp.ne.s32.totalorder %s178, %s192
      %p194 = scmp.eq.s32.totalorder %s28, 0
      %p195 = por %p193, %p194
      %s196 = ssub.s32 %s29, %s41
      %s197 = ssub.s32 %s30, %s37
      %s198 = sor.u32 %s196, %s197
      %p199 = scmp.eq.s32.totalorder %s198, 0
      %s201 = sadd.s32 %s200, 1
      %s202 = scalar_select %p199, %s200, %s201
      %p205 = pneg %p199
      %p206 = scmp.eq.s32.totalorder %s22, 1
      %p207 = por %p205, %p206
      %p208 = scmp.ne.s32.totalorder %s200, %s203
      %p209 = scmp.eq.s32.totalorder %s22, 0
      %p210 = por %p208, %p209
      %p211 = scmp.ne.s32.totalorder %s200, %s203
      %p212 = scmp.eq.s32.totalorder %s27, 1
      %p213 = por %p211, %p212
      %p214 = scmp.ne.s32.totalorder %s203, %s204
      %p215 = scmp.eq.s32.totalorder %s27, 0
      %p216 = por %p214, %p215
      %p217 = scmp.ne.s32.totalorder %s203, %s204
      %p218 = scmp.eq.s32.totalorder %s28, 1
      %p219 = por %p217, %p218
      %p221 = scmp.ne.s32.totalorder %s204, %s220
      %p222 = scmp.eq.s32.totalorder %s28, 0
      %p223 = por %p221, %p222
      %p224 = scmp.le.s32.totalorder 1, %s22
      %p225 = scmp.lt.s32.totalorder %s22, 3
      %p226 = pnand %p224, %p225
      %p227 = pneg %p226
      // Predicated region
      $region9: #{vit_forward.6} parent=5 // pred_check
        _
      $region10: #{vit_forward.6} parent=5 // pred_check_branch
        %229 = sbr.rel (%p226) target = $region12
      $region11: #{vit_forward.6} parent=5 // pred_region
        %s230 = ssub.s32 %s22, 1
        // Predicated region
        $region13: #{vit_forward.6} parent=11 // pred_check
          %p231 = pneg %p83
        $region14: #{vit_forward.6} parent=11 // pred_check_branch
          %233 = sbr.rel (%p231) target = $region16
        $region15: #{vit_forward.6} parent=11 // pred_region
          %s235 = ssub.s32 16, 16
          %236 = vsyncadd [#allocation6], %s235
          %s238 = sshll.u32 [#allocation5], 4
          %s239 = int_to_ptr.vmem [resolvable:$true] %s238
          %241 = dma.hbm_to_vmem [thread:$0]  %s1, 16, %s239, [#allocation6]
        $region16: #{vit_forward.6} parent=11 // pred_fallthru
          _
        // Predicated region
        $region17: #{vit_forward.6} parent=11 // pred_check
          %p242 = pneg %p104
        $region18: #{vit_forward.6} parent=11 // pred_check_branch
          %244 = sbr.rel (%p242) target = $region20
        $region19: #{vit_forward.6} parent=11 // pred_region
          %s246 = ssub.s32 16, 16
          %247 = vsyncadd [#allocation6], %s246
          %s249 = sshll.u32 [#allocation7], 4
          %s250 = int_to_ptr.vmem [resolvable:$true] %s249
          %252 = dma.hbm_to_vmem [thread:$0]  %s2, 16, %s250, [#allocation6]
        $region20: #{vit_forward.6} parent=11 // pred_fallthru
          _
        // Predicated region
        $region21: #{vit_forward.6} parent=11 // pred_check
          %p253 = pneg %p125
        $region22: #{vit_forward.6} parent=11 // pred_check_branch
          %255 = sbr.rel (%p253) target = $region24
        $region23: #{vit_forward.6} parent=11 // pred_region
          %s257 = ssub.s32 4096, 4096
          %258 = vsyncadd [#allocation9], %s257
          %s259 = sshll.u32 [#allocation8], 4
          %s260 = int_to_ptr.vmem [resolvable:$true] %s259
          %265 = dma.hbm_to_vmem [thread:$0]  %s3, 4096, %s260, [#allocation9], 256, 256, 16
        $region24: #{vit_forward.6} parent=11 // pred_fallthru
          _
        // Predicated region
        $region25: #{vit_forward.6} parent=11 // pred_check
          %p266 = pneg %p146
        $region26: #{vit_forward.6} parent=11 // pred_check_branch
          %268 = sbr.rel (%p266) target = $region28
        $region27: #{vit_forward.6} parent=11 // pred_region
          %s270 = ssub.s32 64, 64
          %271 = vsyncadd [#allocation9], %s270
          %s273 = sshll.u32 [#allocation10], 4
          %s274 = int_to_ptr.vmem [resolvable:$true] %s273
          %276 = dma.hbm_to_vmem [thread:$0]  %s4, 64, %s274, [#allocation9]
        $region28: #{vit_forward.6} parent=11 // pred_fallthru
          _
        // Predicated region
        $region29: #{vit_forward.6} parent=11 // pred_check
          %p277 = pneg %p167
        $region30: #{vit_forward.6} parent=11 // pred_check_branch
          %279 = sbr.rel (%p277) target = $region32
        $region31: #{vit_forward.6} parent=11 // pred_region
          %s281 = ssub.s32 4096, 4096
          %282 = vsyncadd [#allocation12], %s281
          %s283 = sshll.u32 [#allocation11], 4
          %s284 = int_to_ptr.vmem [resolvable:$true] %s283
          %289 = dma.hbm_to_vmem [thread:$0]  %s5, 4096, %s284, [#allocation12], 64, 64, 4
        $region32: #{vit_forward.6} parent=11 // pred_fallthru
          _
        // Predicated region
        $region33: #{vit_forward.6} parent=11 // pred_check
          %p290 = pneg %p188
        $region34: #{vit_forward.6} parent=11 // pred_check_branch
          %292 = sbr.rel (%p290) target = $region36
        $region35: #{vit_forward.6} parent=11 // pred_region
          %s294 = ssub.s32 16, 16
          %295 = vsyncadd [#allocation12], %s294
          %s297 = sshll.u32 [#allocation13], 4
          %s298 = int_to_ptr.vmem [resolvable:$true] %s297
          %300 = dma.hbm_to_vmem [thread:$0]  %s6, 16, %s298, [#allocation12]
        $region36: #{vit_forward.6} parent=11 // pred_fallthru
          _
      $region12: #{vit_forward.6} parent=5 // pred_fallthru
        _
      %p301 = scmp.lt.s32.totalorder %s22, 2
      // Predicated region
      $region37: #{vit_forward.6} parent=5 // pred_check
        %p302 = pneg %p301
      $region38: #{vit_forward.6} parent=5 // pred_check_branch
        %304 = sbr.rel (%p302) target = $region40
      $region39: #{vit_forward.6} parent=5 // pred_region
        // Predicated region
        $region41: #{vit_forward.6} parent=39 // pred_check
          %p305 = pneg %p56
        $region42: #{vit_forward.6} parent=39 // pred_check_branch
          %307 = sbr.rel (%p305) target = $region44
        $region43: #{vit_forward.6} parent=39 // pred_region
          %s308 = sand.u32 %s46, 1
          %s309 = scalar_lea.sflag [#allocation3], %s308
          %s310 = sand.u32 %s46, 1
          %s311 = smul.addr %s310, 8
          %s312 = scalar_lea.vmem [#allocation2], %s311
          %s313 = smul.u32 2, %s30
          %s315 = ssub.s32 128, 128
          %316 = vsyncadd %s309, %s315
          %s317 = smul.addr %s29, 2
          %s318 = sadd.s32 %s313, %s317
          %s319 = smul.addr %s318, 64
          %s320 = scalar_lea.hbm %s0, %s319
          %s321 = sshll.u32 %s312, 4
          %s322 = int_to_ptr.vmem [resolvable:$true] %s321
          %327 = dma.hbm_to_vmem [thread:$0]  %s320, 128, %s322, %s309, 64, 64, 4
        $region44: #{vit_forward.6} parent=39 // pred_fallthru
          _
      $region40: #{vit_forward.6} parent=5 // pred_fallthru
        _
      %p328 = scmp.le.s32.totalorder 1, %s22
      %p329 = scmp.lt.s32.totalorder %s22, 3
      %p330 = pnand %p328, %p329
      %p331 = pneg %p330
      // Predicated region
      $region45: #{vit_forward.6} parent=5 // pred_check
        _
      $region46: #{vit_forward.6} parent=5 // pred_check_branch
        %333 = sbr.rel (%p330) target = $region48
      $region47: #{vit_forward.6} parent=5 // pred_region
        %s334 = ssub.s32 %s22, 1
        %s335 = sand.u32 %s49, 1
        %s336 = scalar_lea.sflag [#allocation3], %s335
        %s337 = sand.u32 %s49, 1
        %s338 = smul.addr %s337, 8
        %s339 = scalar_lea.vmem [#allocation2], %s338
        // Predicated region
        $region49: #{vit_forward.6} parent=47 // pred_check
          %p340 = pneg %p62
        $region50: #{vit_forward.6} parent=47 // pred_check_branch
          %342 = sbr.rel (%p340) target = $region52
        $region51: #{vit_forward.6} parent=47 // pred_region
          %343 = dma.done %s336, 128
        $region52: #{vit_forward.6} parent=47 // pred_fallthru
          _
        // Predicated region
        $region53: #{vit_forward.6} parent=47 // pred_check
          %p344 = pneg %p83
        $region54: #{vit_forward.6} parent=47 // pred_check_branch
          %346 = sbr.rel (%p344) target = $region56
        $region55: #{vit_forward.6} parent=47 // pred_region
          %347 = dma.done [#allocation6], 16
        $region56: #{vit_forward.6} parent=47 // pred_fallthru
          _
        // Predicated region
        $region57: #{vit_forward.6} parent=47 // pred_check
          %p348 = pneg %p104
        $region58: #{vit_forward.6} parent=47 // pred_check_branch
          %350 = sbr.rel (%p348) target = $region60
        $region59: #{vit_forward.6} parent=47 // pred_region
          %351 = dma.done [#allocation6], 16
        $region60: #{vit_forward.6} parent=47 // pred_fallthru
          _
        // Predicated region
        $region61: #{vit_forward.6} parent=47 // pred_check
          %p352 = pneg %p125
        $region62: #{vit_forward.6} parent=47 // pred_check_branch
          %354 = sbr.rel (%p352) target = $region64
        $region63: #{vit_forward.6} parent=47 // pred_region
          %355 = dma.done [#allocation9], 4096
        $region64: #{vit_forward.6} parent=47 // pred_fallthru
          _
        // Predicated region
        $region65: #{vit_forward.6} parent=47 // pred_check
          %p356 = pneg %p146
        $region66: #{vit_forward.6} parent=47 // pred_check_branch
          %358 = sbr.rel (%p356) target = $region68
        $region67: #{vit_forward.6} parent=47 // pred_region
          %359 = dma.done [#allocation9], 64
        $region68: #{vit_forward.6} parent=47 // pred_fallthru
          _
        // Predicated region
        $region69: #{vit_forward.6} parent=47 // pred_check
          %p360 = pneg %p167
        $region70: #{vit_forward.6} parent=47 // pred_check_branch
          %362 = sbr.rel (%p360) target = $region72
        $region71: #{vit_forward.6} parent=47 // pred_region
          %363 = dma.done [#allocation12], 4096
        $region72: #{vit_forward.6} parent=47 // pred_fallthru
          _
        // Predicated region
        $region73: #{vit_forward.6} parent=47 // pred_check
          %p364 = pneg %p188
        $region74: #{vit_forward.6} parent=47 // pred_check_branch
          %366 = sbr.rel (%p364) target = $region76
        $region75: #{vit_forward.6} parent=47 // pred_region
          %367 = dma.done [#allocation12], 16
        $region76: #{vit_forward.6} parent=47 // pred_fallthru
          _
        %s368 = sand.u32 %s49, 1
        %s369 = scalar_lea.sflag [#allocation3], %s368
        %s370 = sand.u32 %s49, 1
        %s371 = smul.addr %s370, 8
        %s372 = scalar_lea.vmem [#allocation2], %s371
        %p373 = pneg %p62
        %p374 = pneg %p59
        %p375 = pneg %p83
        %p376 = pneg %p80
        %p377 = pneg %p104
        %p378 = pneg %p101
        %p379 = pneg %p125
        %p380 = pneg %p122
        %p381 = pneg %p146
        %p382 = pneg %p143
        %p383 = pneg %p167
        %p384 = pneg %p164
        %p385 = pneg %p188
        %p386 = pneg %p185
        %p387 = pneg %p216
        %p388 = pneg %p213
        %s389 = sand.u32 %s203, 1
        %s390 = scalar_lea.sflag [#allocation4], %s389
        %s391 = sand.u32 %s203, 1
        %s392 = smul.addr %s391, 8
        %s393 = scalar_lea.vmem [#allocation14], %s392
        %s394 = smul.u32 2, %s32
        %s395 = smul.u32 2, %s32
        %v397 = vld [vmem:[%s339] sm:$0xf]
        %v398 = vld [vmem:[%s339 + $0x4] sm:$0xf]
        %v399 = vunpack.c.l.bf16 %v397
        %v400 = vunpack.c.l.bf16 %v398
        %v401 = vld [vmem:[#allocation5] sm:$0x1]
        %v402 = vld [vmem:[#allocation7] sm:$0x1]
        %403 = vadd.xlane.f32.xlu0 %v399
        %v404 = vpop.xlane.xlu0 %403
        %405 = vadd.xlane.f32.xlu0 %v400
        %v406 = vpop.xlane.xlu0 %405
        %v407 = vrcp.pop 128.0
        %v408 = vmul.f32 %v404, %v407
        %v409 = vmul.f32 %v406, %v407
        %v410 = vmul.f32 %v399, %v399
        %v411 = vmul.f32 %v400, %v400
        %412 = vadd.xlane.f32.xlu0 %v410
        %v413 = vpop.xlane.xlu0 %412
        %414 = vadd.xlane.f32.xlu0 %v411
        %v415 = vpop.xlane.xlu0 %414
        %v416 = vmul.f32 %v413, %v407
        %v417 = vmul.f32 %v415, %v407
        %v418 = vmul.f32 %v408, %v408
        %v419 = vmul.f32 %v409, %v409
        %v420 = vsub.f32 %v416, %v418
        %v421 = vsub.f32 %v417, %v419
        %v422 = vmax.f32 %v420, 0.0
        %v423 = vmax.f32 %v421, 0.0
        %v424 = vsub.f32 %v399, %v408
        %v425 = vsub.f32 %v400, %v409
        %v426 = vadd.f32 %v422, 1e-06
        %v427 = vadd.f32 %v423, 1e-06
        %v428 = vrsqrt.pop %v426
        %v429 = vrsqrt.pop %v427
        %v430 = vmul.f32 %v424, %v428
        %v431 = vmul.f32 %v425, %v429
        %v432 = vunpack.c.l.bf16 %v401
        %v433 = vlaneseq
        %v434 = vshrl.u32 %v433, 7
        %v435 = vsub.s32 0, %v434
        %v436 = vrot.slane %v432, %v435
        %v437 = vmul.f32 %v430, %v436
        %v438 = vmul.f32 %v431, %v436
        %v439 = vunpack.c.l.bf16 %v402
        %v440 = vlaneseq
        %v441 = vshrl.u32 %v440, 7
        %v442 = vsub.s32 0, %v441
        %v443 = vrot.slane %v439, %v442
        %v444 = vadd.f32 %v437, %v443
        %v445 = vadd.f32 %v438, %v443
        %v446 = vpack.c.bf16 %v445, %v444
        %v447 = vld [vmem:[#allocation8] sm:$0xff]
        %v448 = vld [vmem:[#allocation8 + $0x8] sm:$0xff]
        %v449 = vld [vmem:[#allocation8 + $0x10] sm:$0xff]
        %v450 = vld [vmem:[#allocation8 + $0x18] sm:$0xff]
        %v451 = vld [vmem:[#allocation8 + $0x20] sm:$0xff]
        %v452 = vld [vmem:[#allocation8 + $0x28] sm:$0xff]
        %v453 = vld [vmem:[#allocation8 + $0x30] sm:$0xff]
        %v454 = vld [vmem:[#allocation8 + $0x38] sm:$0xff]
        %v455 = vld [vmem:[#allocation8 + $0x40] sm:$0xff]
        %v456 = vld [vmem:[#allocation8 + $0x48] sm:$0xff]
        %v457 = vld [vmem:[#allocation8 + $0x50] sm:$0xff]
        %v458 = vld [vmem:[#allocation8 + $0x58] sm:$0xff]
        %v459 = vld [vmem:[#allocation8 + $0x60] sm:$0xff]
        %v460 = vld [vmem:[#allocation8 + $0x68] sm:$0xff]
        %v461 = vld [vmem:[#allocation8 + $0x70] sm:$0xff]
        %v462 = vld [vmem:[#allocation8 + $0x78] sm:$0xff]
        %v463 = vld [vmem:[#allocation8 + $0x80] sm:$0xff]
        %v464 = vld [vmem:[#allocation8 + $0x88] sm:$0xff]
        %v465 = vld [vmem:[#allocation8 + $0x90] sm:$0xff]
        %v466 = vld [vmem:[#allocation8 + $0x98] sm:$0xff]
        %v467 = vld [vmem:[#allocation8 + $0xa0] sm:$0xff]
        %v468 = vld [vmem:[#allocation8 + $0xa8] sm:$0xff]
        %v469 = vld [vmem:[#allocation8 + $0xb0] sm:$0xff]
        %v470 = vld [vmem:[#allocation8 + $0xb8] sm:$0xff]
        %v471 = vld [vmem:[#allocation8 + $0xc0] sm:$0xff]
        %v472 = vld [vmem:[#allocation8 + $0xc8] sm:$0xff]
        %v473 = vld [vmem:[#allocation8 + $0xd0] sm:$0xff]
        %v474 = vld [vmem:[#allocation8 + $0xd8] sm:$0xff]
        %v475 = vld [vmem:[#allocation8 + $0xe0] sm:$0xff]
        %v476 = vld [vmem:[#allocation8 + $0xe8] sm:$0xff]
        %v477 = vld [vmem:[#allocation8 + $0xf0] sm:$0xff]
        %v478 = vld [vmem:[#allocation8 + $0xf8] sm:$0xff]
        %v479 = vld [vmem:[#allocation10] sm:$0xf]
        %v480 = vunpack.c.l.bf16 %v479
        %v482 = vlaneseq
        %v483 = vshrl.u32 %v482, 7
        %v484 = vsub.s32 0, %v483
        %v485 = vrot.slane %v480, %v484
        %v486 = vlaneseq
        %v487 = vshrl.u32 %v486, 7
        %v488 = vsub.s32 2, %v487
        %v489 = vrot.slane %v480, %v488
        %v490 = vlaneseq
        %v491 = vshrl.u32 %v490, 7
        %v492 = vsub.s32 4, %v491
        %v493 = vrot.slane %v480, %v492
        %v494 = vlaneseq
        %v495 = vshrl.u32 %v494, 7
        %v496 = vsub.s32 6, %v495
        %v497 = vrot.slane %v480, %v496
        %v502 = vlaneseq
        %v503 = vshrl.u32 %v502, 7
        %v504 = vsub.s32 0, %v503
        %v505 = vrot.slane %v485, %v504
        %v506 = vlaneseq
        %v507 = vshrl.u32 %v506, 7
        %v508 = vsub.s32 0, %v507
        %v509 = vrot.slane %v489, %v508
        %v510 = vlaneseq
        %v511 = vshrl.u32 %v510, 7
        %v512 = vsub.s32 0, %v511
        %v513 = vrot.slane %v493, %v512
        %v514 = vlaneseq
        %v515 = vshrl.u32 %v514, 7
        %v516 = vsub.s32 0, %v515
        %v517 = vrot.slane %v497, %v516
        %v550 = vunpack.c.l.b16 %v447
        %v551 = vunpack.c.h.b16 %v447
        %v552 = vunpack.c.l.b16 %v448
        %v553 = vunpack.c.h.b16 %v448
        %v554 = vunpack.c.l.b16 %v449
        %v555 = vunpack.c.h.b16 %v449
        %v556 = vunpack.c.l.b16 %v450
        %v557 = vunpack.c.h.b16 %v450
        %v558 = vunpack.c.l.b16 %v451
        %v559 = vunpack.c.h.b16 %v451
        %v560 = vunpack.c.l.b16 %v452
        %v561 = vunpack.c.h.b16 %v452
        %v562 = vunpack.c.l.b16 %v453
        %v563 = vunpack.c.h.b16 %v453
        %v564 = vunpack.c.l.b16 %v454
        %v565 = vunpack.c.h.b16 %v454
        %v566 = vunpack.c.l.b16 %v455
        %v567 = vunpack.c.h.b16 %v455
        %v568 = vunpack.c.l.b16 %v456
        %v569 = vunpack.c.h.b16 %v456
        %v570 = vunpack.c.l.b16 %v457
        %v571 = vunpack.c.h.b16 %v457
        %v572 = vunpack.c.l.b16 %v458
        %v573 = vunpack.c.h.b16 %v458
        %v574 = vunpack.c.l.b16 %v459
        %v575 = vunpack.c.h.b16 %v459
        %v576 = vunpack.c.l.b16 %v460
        %v577 = vunpack.c.h.b16 %v460
        %v578 = vunpack.c.l.b16 %v461
        %v579 = vunpack.c.h.b16 %v461
        %v580 = vunpack.c.l.b16 %v462
        %v581 = vunpack.c.h.b16 %v462
        %v582 = vunpack.c.l.b16 %v463
        %v583 = vunpack.c.h.b16 %v463
        %v584 = vunpack.c.l.b16 %v464
        %v585 = vunpack.c.h.b16 %v464
        %v586 = vunpack.c.l.b16 %v465
        %v587 = vunpack.c.h.b16 %v465
        %v588 = vunpack.c.l.b16 %v466
        %v589 = vunpack.c.h.b16 %v466
        %v590 = vunpack.c.l.b16 %v467
        %v591 = vunpack.c.h.b16 %v467
        %v592 = vunpack.c.l.b16 %v468
        %v593 = vunpack.c.h.b16 %v468
        %v594 = vunpack.c.l.b16 %v469
        %v595 = vunpack.c.h.b16 %v469
        %v596 = vunpack.c.l.b16 %v470
        %v597 = vunpack.c.h.b16 %v470
        %v598 = vunpack.c.l.b16 %v471
        %v599 = vunpack.c.h.b16 %v471
        %v600 = vunpack.c.l.b16 %v472
        %v601 = vunpack.c.h.b16 %v472
        %v602 = vunpack.c.l.b16 %v473
        %v603 = vunpack.c.h.b16 %v473
        %v604 = vunpack.c.l.b16 %v474
        %v605 = vunpack.c.h.b16 %v474
        %v606 = vunpack.c.l.b16 %v475
        %v607 = vunpack.c.h.b16 %v475
        %v608 = vunpack.c.l.b16 %v476
        %v609 = vunpack.c.h.b16 %v476
        %v610 = vunpack.c.l.b16 %v477
        %v611 = vunpack.c.h.b16 %v477
        %v612 = vunpack.c.l.b16 %v478
        %v613 = vunpack.c.h.b16 %v478
        %v614 = vpack.c.b16 %v554, %v550
        %v615 = vpack.c.b16 %v555, %v551
        %v616 = vpack.c.b16 %v556, %v552
        %v617 = vpack.c.b16 %v557, %v553
        %v618 = vpack.c.b16 %v562, %v558
        %v619 = vpack.c.b16 %v563, %v559
        %v620 = vpack.c.b16 %v564, %v560
        %v621 = vpack.c.b16 %v565, %v561
        %v622 = vpack.c.b16 %v570, %v566
        %v623 = vpack.c.b16 %v571, %v567
        %v624 = vpack.c.b16 %v572, %v568
        %v625 = vpack.c.b16 %v573, %v569
        %v626 = vpack.c.b16 %v578, %v574
        %v627 = vpack.c.b16 %v579, %v575
        %v628 = vpack.c.b16 %v580, %v576
        %v629 = vpack.c.b16 %v581, %v577
        %v630 = vpack.c.b16 %v586, %v582
        %v631 = vpack.c.b16 %v587, %v583
        %v632 = vpack.c.b16 %v588, %v584
        %v633 = vpack.c.b16 %v589, %v585
        %v634 = vpack.c.b16 %v594, %v590
        %v635 = vpack.c.b16 %v595, %v591
        %v636 = vpack.c.b16 %v596, %v592
        %v637 = vpack.c.b16 %v597, %v593
        %v638 = vpack.c.b16 %v602, %v598
        %v639 = vpack.c.b16 %v603, %v599
        %v640 = vpack.c.b16 %v604, %v600
        %v641 = vpack.c.b16 %v605, %v601
        %v642 = vpack.c.b16 %v610, %v606
        %v643 = vpack.c.b16 %v611, %v607
        %v644 = vpack.c.b16 %v612, %v608
        %v645 = vpack.c.b16 %v613, %v609
        %678 = vmatprep.subr.bf16.mxu0 %v615
        %679 = vmatpush1.bf16.msra.mxu0 %v614
        %680 = vmatprep.subr.bf16.mxu0 %v619
        %681 = vmatpush1.bf16.msra.mxu0 %v618
        %682 = vmatprep.subr.bf16.mxu0 %v623
        %683 = vmatpush1.bf16.msra.mxu0 %v622
        %684 = vmatprep.subr.bf16.mxu0 %v627
        %685 = vmatpush1.bf16.msra.mxu0 %v626
        %686 = vmatprep.subr.bf16.mxu0 %v631
        %687 = vmatpush1.bf16.msra.mxu0 %v630
        %688 = vmatprep.subr.bf16.mxu0 %v635
        %689 = vmatpush1.bf16.msra.mxu0 %v634
        %690 = vmatprep.subr.bf16.mxu0 %v639
        %691 = vmatpush1.bf16.msra.mxu0 %v638
        %692 = vmatprep.subr.bf16.mxu0 %v643
        %693 = vmatpush1.bf16.msra.mxu0 %v642
        %694 = vmatprep.subr.bf16.mxu0 0
        %695 = vmatpush1.bf16.msra.mxu0 0
        %696 = vmatprep.subr.bf16.mxu0 0
        %697 = vmatpush1.bf16.msra.mxu0 0
        %698 = vmatprep.subr.bf16.mxu0 0
        %699 = vmatpush1.bf16.msra.mxu0 0
        %700 = vmatprep.subr.bf16.mxu0 0
        %701 = vmatpush1.bf16.msra.mxu0 0
        %702 = vmatprep.subr.bf16.mxu0 0
        %703 = vmatpush1.bf16.msra.mxu0 0
        %704 = vmatprep.subr.bf16.mxu0 0
        %705 = vmatpush1.bf16.msra.mxu0 0
        %706 = vmatprep.subr.bf16.mxu0 0
        %707 = vmatpush1.bf16.msra.mxu0 0
        %708 = vmatprep.subr.bf16.mxu0 0
        %709 = vmatpush1.bf16.msra.mxu0 0
        %710 = vmatprep.mubr.bf16.mxu0 0
        %711 = vmatmul.mubr.bf16.gmra.mrb[0].mxu0 %v446
        %v712 = vpop.f32.mrb[0].mxu0
        %v713 = vadd.f32 %v505, %v712
        %v714 = vpop.f32.mrb[0].mxu0
        %v715 = vadd.f32 %v509, %v714
        %v716 = vpop.f32.mrb[0].mxu0
        %v717 = vadd.f32 %v505, %v716
        %v718 = vpop.f32.mrb[0].mxu0
        %v719 = vadd.f32 %v509, %v718
        %720 = vdwg.mxu0
        %721 = vmatprep.subr.bf16.mxu0 %v617
        %722 = vmatpush1.bf16.msra.mxu0 %v616
        %723 = vmatprep.subr.bf16.mxu0 %v621
        %724 = vmatpush1.bf16.msra.mxu0 %v620
        %725 = vmatprep.subr.bf16.mxu0 %v625
        %726 = vmatpush1.bf16.msra.mxu0 %v624
        %727 = vmatprep.subr.bf16.mxu0 %v629
        %728 = vmatpush1.bf16.msra.mxu0 %v628
        %729 = vmatprep.subr.bf16.mxu0 %v633
        %730 = vmatpush1.bf16.msra.mxu0 %v632
        %731 = vmatprep.subr.bf16.mxu0 %v637
        %732 = vmatpush1.bf16.msra.mxu0 %v636
        %733 = vmatprep.subr.bf16.mxu0 %v641
        %734 = vmatpush1.bf16.msra.mxu0 %v640
        %735 = vmatprep.subr.bf16.mxu0 %v645
        %736 = vmatpush1.bf16.msra.mxu0 %v644
        %737 = vmatprep.subr.bf16.mxu0 0
        %738 = vmatpush1.bf16.msra.mxu0 0
        %739 = vmatprep.subr.bf16.mxu0 0
        %740 = vmatpush1.bf16.msra.mxu0 0
        %741 = vmatprep.subr.bf16.mxu0 0
        %742 = vmatpush1.bf16.msra.mxu0 0
        %743 = vmatprep.subr.bf16.mxu0 0
        %744 = vmatpush1.bf16.msra.mxu0 0
        %745 = vmatprep.subr.bf16.mxu0 0
        %746 = vmatpush1.bf16.msra.mxu0 0
        %747 = vmatprep.subr.bf16.mxu0 0
        %748 = vmatpush1.bf16.msra.mxu0 0
        %749 = vmatprep.subr.bf16.mxu0 0
        %750 = vmatpush1.bf16.msra.mxu0 0
        %751 = vmatprep.subr.bf16.mxu0 0
        %752 = vmatpush1.bf16.msra.mxu0 0
        %753 = vmatprep.mubr.bf16.mxu0 0
        %754 = vmatmul.mubr.bf16.gmra.mrb[0].mxu0 %v446
        %v755 = vpop.f32.mrb[0].mxu0
        %v756 = vadd.f32 %v513, %v755
        %v757 = vpop.f32.mrb[0].mxu0
        %v758 = vadd.f32 %v517, %v757
        %v759 = vpop.f32.mrb[0].mxu0
        %v760 = vadd.f32 %v513, %v759
        %v761 = vpop.f32.mrb[0].mxu0
        %v762 = vadd.f32 %v517, %v761
        %763 = vdwg.mxu0
        %v764 = vmul.f32 %v713, %v713
        %v765 = vmul.f32 %v715, %v715
        %v766 = vmul.f32 %v756, %v756
        %v767 = vmul.f32 %v758, %v758
        %v768 = vmul.f32 %v717, %v717
        %v769 = vmul.f32 %v719, %v719
        %v770 = vmul.f32 %v760, %v760
        %v771 = vmul.f32 %v762, %v762
        %v772 = vmul.f32 %v713, %v764
        %v773 = vmul.f32 %v715, %v765
        %v774 = vmul.f32 %v756, %v766
        %v775 = vmul.f32 %v758, %v767
        %v776 = vmul.f32 %v717, %v768
        %v777 = vmul.f32 %v719, %v769
        %v778 = vmul.f32 %v760, %v770
        %v779 = vmul.f32 %v762, %v771
        %v780 = vmul.f32 %v772, 0.044715
        %v781 = vmul.f32 %v773, 0.044715
        %v782 = vmul.f32 %v774, 0.044715
        %v783 = vmul.f32 %v775, 0.044715
        %v784 = vmul.f32 %v776, 0.044715
        %v785 = vmul.f32 %v777, 0.044715
        %v786 = vmul.f32 %v778, 0.044715
        %v787 = vmul.f32 %v779, 0.044715
        %v788 = vadd.f32 %v713, %v780
        %v789 = vadd.f32 %v715, %v781
        %v790 = vadd.f32 %v756, %v782
        %v791 = vadd.f32 %v758, %v783
        %v792 = vadd.f32 %v717, %v784
        %v793 = vadd.f32 %v719, %v785
        %v794 = vadd.f32 %v760, %v786
        %v795 = vadd.f32 %v762, %v787
        %v796 = vmul.f32 %v788, 0.7978846
        %v797 = vmul.f32 %v789, 0.7978846
        %v798 = vmul.f32 %v790, 0.7978846
        %v799 = vmul.f32 %v791, 0.7978846
        %v800 = vmul.f32 %v792, 0.7978846
        %v801 = vmul.f32 %v793, 0.7978846
        %v802 = vmul.f32 %v794, 0.7978846
        %v803 = vmul.f32 %v795, 0.7978846
        %v804 = vtanh.pop %v796
        %v805 = vtanh.pop %v797
        %v806 = vtanh.pop %v798
        %v807 = vtanh.pop %v799
        %v808 = vtanh.pop %v800
        %v809 = vtanh.pop %v801
        %v810 = vtanh.pop %v802
        %v811 = vtanh.pop %v803
        %v812 = vadd.f32 %v804, 1.0
        %v813 = vadd.f32 %v805, 1.0
        %v814 = vadd.f32 %v806, 1.0
        %v815 = vadd.f32 %v807, 1.0
        %v816 = vadd.f32 %v808, 1.0
        %v817 = vadd.f32 %v809, 1.0
        %v818 = vadd.f32 %v810, 1.0
        %v819 = vadd.f32 %v811, 1.0
        %v820 = vmul.f32 %v812, 0.5
        %v821 = vmul.f32 %v813, 0.5
        %v822 = vmul.f32 %v814, 0.5
        %v823 = vmul.f32 %v815, 0.5
        %v824 = vmul.f32 %v816, 0.5
        %v825 = vmul.f32 %v817, 0.5
        %v826 = vmul.f32 %v818, 0.5
        %v827 = vmul.f32 %v819, 0.5
        %v828 = vmul.f32 %v713, %v820
        %v829 = vmul.f32 %v715, %v821
        %v830 = vmul.f32 %v756, %v822
        %v831 = vmul.f32 %v758, %v823
        %v832 = vmul.f32 %v717, %v824
        %v833 = vmul.f32 %v719, %v825
        %v834 = vmul.f32 %v760, %v826
        %v835 = vmul.f32 %v762, %v827
        %v836 = vpack.c.bf16 %v832, %v828
        %v837 = vpack.c.bf16 %v833, %v829
        %v838 = vpack.c.bf16 %v834, %v830
        %v839 = vpack.c.bf16 %v835, %v831
        %v840 = vld [vmem:[#allocation11] sm:$0xf]
        %v841 = vld [vmem:[#allocation11 + $0x4] sm:$0xf]
        %v842 = vld [vmem:[#allocation11 + $0x8] sm:$0xf]
        %v843 = vld [vmem:[#allocation11 + $0xc] sm:$0xf]
        %v844 = vld [vmem:[#allocation11 + $0x10] sm:$0xf]
        %v845 = vld [vmem:[#allocation11 + $0x14] sm:$0xf]
        %v846 = vld [vmem:[#allocation11 + $0x18] sm:$0xf]
        %v847 = vld [vmem:[#allocation11 + $0x1c] sm:$0xf]
        %v848 = vld [vmem:[#allocation11 + $0x20] sm:$0xf]
        %v849 = vld [vmem:[#allocation11 + $0x24] sm:$0xf]
        %v850 = vld [vmem:[#allocation11 + $0x28] sm:$0xf]
        %v851 = vld [vmem:[#allocation11 + $0x2c] sm:$0xf]
        %v852 = vld [vmem:[#allocation11 + $0x30] sm:$0xf]
        %v853 = vld [vmem:[#allocation11 + $0x34] sm:$0xf]
        %v854 = vld [vmem:[#allocation11 + $0x38] sm:$0xf]
        %v855 = vld [vmem:[#allocation11 + $0x3c] sm:$0xf]
        %v856 = vld [vmem:[#allocation11 + $0x40] sm:$0xf]
        %v857 = vld [vmem:[#allocation11 + $0x44] sm:$0xf]
        %v858 = vld [vmem:[#allocation11 + $0x48] sm:$0xf]
        %v859 = vld [vmem:[#allocation11 + $0x4c] sm:$0xf]
        %v860 = vld [vmem:[#allocation11 + $0x50] sm:$0xf]
        %v861 = vld [vmem:[#allocation11 + $0x54] sm:$0xf]
        %v862 = vld [vmem:[#allocation11 + $0x58] sm:$0xf]
        %v863 = vld [vmem:[#allocation11 + $0x5c] sm:$0xf]
        %v864 = vld [vmem:[#allocation11 + $0x60] sm:$0xf]
        %v865 = vld [vmem:[#allocation11 + $0x64] sm:$0xf]
        %v866 = vld [vmem:[#allocation11 + $0x68] sm:$0xf]
        %v867 = vld [vmem:[#allocation11 + $0x6c] sm:$0xf]
        %v868 = vld [vmem:[#allocation11 + $0x70] sm:$0xf]
        %v869 = vld [vmem:[#allocation11 + $0x74] sm:$0xf]
        %v870 = vld [vmem:[#allocation11 + $0x78] sm:$0xf]
        %v871 = vld [vmem:[#allocation11 + $0x7c] sm:$0xf]
        %v872 = vld [vmem:[#allocation11 + $0x80] sm:$0xf]
        %v873 = vld [vmem:[#allocation11 + $0x84] sm:$0xf]
        %v874 = vld [vmem:[#allocation11 + $0x88] sm:$0xf]
        %v875 = vld [vmem:[#allocation11 + $0x8c] sm:$0xf]
        %v876 = vld [vmem:[#allocation11 + $0x90] sm:$0xf]
        %v877 = vld [vmem:[#allocation11 + $0x94] sm:$0xf]
        %v878 = vld [vmem:[#allocation11 + $0x98] sm:$0xf]
        %v879 = vld [vmem:[#allocation11 + $0x9c] sm:$0xf]
        %v880 = vld [vmem:[#allocation11 + $0xa0] sm:$0xf]
        %v881 = vld [vmem:[#allocation11 + $0xa4] sm:$0xf]
        %v882 = vld [vmem:[#allocation11 + $0xa8] sm:$0xf]
        %v883 = vld [vmem:[#allocation11 + $0xac] sm:$0xf]
        %v884 = vld [vmem:[#allocation11 + $0xb0] sm:$0xf]
        %v885 = vld [vmem:[#allocation11 + $0xb4] sm:$0xf]
        %v886 = vld [vmem:[#allocation11 + $0xb8] sm:$0xf]
        %v887 = vld [vmem:[#allocation11 + $0xbc] sm:$0xf]
        %v888 = vld [vmem:[#allocation11 + $0xc0] sm:$0xf]
        %v889 = vld [vmem:[#allocation11 + $0xc4] sm:$0xf]
        %v890 = vld [vmem:[#allocation11 + $0xc8] sm:$0xf]
        %v891 = vld [vmem:[#allocation11 + $0xcc] sm:$0xf]
        %v892 = vld [vmem:[#allocation11 + $0xd0] sm:$0xf]
        %v893 = vld [vmem:[#allocation11 + $0xd4] sm:$0xf]
        %v894 = vld [vmem:[#allocation11 + $0xd8] sm:$0xf]
        %v895 = vld [vmem:[#allocation11 + $0xdc] sm:$0xf]
        %v896 = vld [vmem:[#allocation11 + $0xe0] sm:$0xf]
        %v897 = vld [vmem:[#allocation11 + $0xe4] sm:$0xf]
        %v898 = vld [vmem:[#allocation11 + $0xe8] sm:$0xf]
        %v899 = vld [vmem:[#allocation11 + $0xec] sm:$0xf]
        %v900 = vld [vmem:[#allocation11 + $0xf0] sm:$0xf]
        %v901 = vld [vmem:[#allocation11 + $0xf4] sm:$0xf]
        %v902 = vld [vmem:[#allocation11 + $0xf8] sm:$0xf]
        %v903 = vld [vmem:[#allocation11 + $0xfc] sm:$0xf]
        %v904 = vld [vmem:[#allocation13] sm:$0x1]
        %v905 = vunpack.c.l.bf16 %v904
        %v906 = vlaneseq
        %v907 = vshrl.u32 %v906, 7
        %v908 = vsub.s32 0, %v907
        %v909 = vrot.slane %v905, %v908
        %v974 = vunpack.c.l.b16 %v840
        %v975 = vunpack.c.l.b16 %v841
        %v976 = vunpack.c.l.b16 %v842
        %v977 = vunpack.c.l.b16 %v843
        %v978 = vunpack.c.l.b16 %v844
        %v979 = vunpack.c.l.b16 %v845
        %v980 = vunpack.c.l.b16 %v846
        %v981 = vunpack.c.l.b16 %v847
        %v982 = vunpack.c.l.b16 %v848
        %v983 = vunpack.c.l.b16 %v849
        %v984 = vunpack.c.l.b16 %v850
        %v985 = vunpack.c.l.b16 %v851
        %v986 = vunpack.c.l.b16 %v852
        %v987 = vunpack.c.l.b16 %v853
        %v988 = vunpack.c.l.b16 %v854
        %v989 = vunpack.c.l.b16 %v855
        %v990 = vunpack.c.l.b16 %v856
        %v991 = vunpack.c.l.b16 %v857
        %v992 = vunpack.c.l.b16 %v858
        %v993 = vunpack.c.l.b16 %v859
        %v994 = vunpack.c.l.b16 %v860
        %v995 = vunpack.c.l.b16 %v861
        %v996 = vunpack.c.l.b16 %v862
        %v997 = vunpack.c.l.b16 %v863
        %v998 = vunpack.c.l.b16 %v864
        %v999 = vunpack.c.l.b16 %v865
        %v1000 = vunpack.c.l.b16 %v866
        %v1001 = vunpack.c.l.b16 %v867
        %v1002 = vunpack.c.l.b16 %v868
        %v1003 = vunpack.c.l.b16 %v869
        %v1004 = vunpack.c.l.b16 %v870
        %v1005 = vunpack.c.l.b16 %v871
        %v1006 = vunpack.c.l.b16 %v872
        %v1007 = vunpack.c.l.b16 %v873
        %v1008 = vunpack.c.l.b16 %v874
        %v1009 = vunpack.c.l.b16 %v875
        %v1010 = vunpack.c.l.b16 %v876
        %v1011 = vunpack.c.l.b16 %v877
        %v1012 = vunpack.c.l.b16 %v878
        %v1013 = vunpack.c.l.b16 %v879
        %v1014 = vunpack.c.l.b16 %v880
        %v1015 = vunpack.c.l.b16 %v881
        %v1016 = vunpack.c.l.b16 %v882
        %v1017 = vunpack.c.l.b16 %v883
        %v1018 = vunpack.c.l.b16 %v884
        %v1019 = vunpack.c.l.b16 %v885
        %v1020 = vunpack.c.l.b16 %v886
        %v1021 = vunpack.c.l.b16 %v887
        %v1022 = vunpack.c.l.b16 %v888
        %v1023 = vunpack.c.l.b16 %v889
        %v1024 = vunpack.c.l.b16 %v890
        %v1025 = vunpack.c.l.b16 %v891
        %v1026 = vunpack.c.l.b16 %v892
        %v1027 = vunpack.c.l.b16 %v893
        %v1028 = vunpack.c.l.b16 %v894
        %v1029 = vunpack.c.l.b16 %v895
        %v1030 = vunpack.c.l.b16 %v896
        %v1031 = vunpack.c.l.b16 %v897
        %v1032 = vunpack.c.l.b16 %v898
        %v1033 = vunpack.c.l.b16 %v899
        %v1034 = vunpack.c.l.b16 %v900
        %v1035 = vunpack.c.l.b16 %v901
        %v1036 = vunpack.c.l.b16 %v902
        %v1037 = vunpack.c.l.b16 %v903
        %v1038 = vpack.c.b16 %v975, %v974
        %v1039 = vpack.c.b16 %v977, %v976
        %v1040 = vpack.c.b16 %v979, %v978
        %v1041 = vpack.c.b16 %v981, %v980
        %v1042 = vpack.c.b16 %v983, %v982
        %v1043 = vpack.c.b16 %v985, %v984
        %v1044 = vpack.c.b16 %v987, %v986
        %v1045 = vpack.c.b16 %v989, %v988
        %v1046 = vpack.c.b16 %v991, %v990
        %v1047 = vpack.c.b16 %v993, %v992
        %v1048 = vpack.c.b16 %v995, %v994
        %v1049 = vpack.c.b16 %v997, %v996
        %v1050 = vpack.c.b16 %v999, %v998
        %v1051 = vpack.c.b16 %v1001, %v1000
        %v1052 = vpack.c.b16 %v1003, %v1002
        %v1053 = vpack.c.b16 %v1005, %v1004
        %v1054 = vpack.c.b16 %v1007, %v1006
        %v1055 = vpack.c.b16 %v1009, %v1008
        %v1056 = vpack.c.b16 %v1011, %v1010
        %v1057 = vpack.c.b16 %v1013, %v1012
        %v1058 = vpack.c.b16 %v1015, %v1014
        %v1059 = vpack.c.b16 %v1017, %v1016
        %v1060 = vpack.c.b16 %v1019, %v1018
        %v1061 = vpack.c.b16 %v1021, %v1020
        %v1062 = vpack.c.b16 %v1023, %v1022
        %v1063 = vpack.c.b16 %v1025, %v1024
        %v1064 = vpack.c.b16 %v1027, %v1026
        %v1065 = vpack.c.b16 %v1029, %v1028
        %v1066 = vpack.c.b16 %v1031, %v1030
        %v1067 = vpack.c.b16 %v1033, %v1032
        %v1068 = vpack.c.b16 %v1035, %v1034
        %v1069 = vpack.c.b16 %v1037, %v1036
        %1102 = vmatprep.subr.bf16.mxu0 0
        %1103 = vmatpush1.bf16.msra.mxu0 %v1038
        %1104 = vmatprep.subr.bf16.mxu0 0
        %1105 = vmatpush1.bf16.msra.mxu0 %v1039
        %1106 = vmatprep.subr.bf16.mxu0 0
        %1107 = vmatpush1.bf16.msra.mxu0 %v1040
        %1108 = vmatprep.subr.bf16.mxu0 0
        %1109 = vmatpush1.bf16.msra.mxu0 %v1041
        %1110 = vmatprep.subr.bf16.mxu0 0
        %1111 = vmatpush1.bf16.msra.mxu0 %v1042
        %1112 = vmatprep.subr.bf16.mxu0 0
        %1113 = vmatpush1.bf16.msra.mxu0 %v1043
        %1114 = vmatprep.subr.bf16.mxu0 0
        %1115 = vmatpush1.bf16.msra.mxu0 %v1044
        %1116 = vmatprep.subr.bf16.mxu0 0
        %1117 = vmatpush1.bf16.msra.mxu0 %v1045
        %1118 = vmatprep.subr.bf16.mxu0 0
        %1119 = vmatpush1.bf16.msra.mxu0 %v1046
        %1120 = vmatprep.subr.bf16.mxu0 0
        %1121 = vmatpush1.bf16.msra.mxu0 %v1047
        %1122 = vmatprep.subr.bf16.mxu0 0
        %1123 = vmatpush1.bf16.msra.mxu0 %v1048
        %1124 = vmatprep.subr.bf16.mxu0 0
        %1125 = vmatpush1.bf16.msra.mxu0 %v1049
        %1126 = vmatprep.subr.bf16.mxu0 0
        %1127 = vmatpush1.bf16.msra.mxu0 %v1050
        %1128 = vmatprep.subr.bf16.mxu0 0
        %1129 = vmatpush1.bf16.msra.mxu0 %v1051
        %1130 = vmatprep.subr.bf16.mxu0 0
        %1131 = vmatpush1.bf16.msra.mxu0 %v1052
        %1132 = vmatprep.subr.bf16.mxu0 0
        %1133 = vmatpush1.bf16.msra.mxu0 %v1053
        %1134 = vmatprep.mubr.bf16.mxu0 %v837
        %1135 = vmatmul.mubr.bf16.gmra.mrb[0].mxu0 %v836
        %v1136 = vpop.f32.mrb[0].mxu0
        %v1137 = vadd.f32 %v909, %v1136
        %v1138 = vpop.f32.mrb[0].mxu0
        %v1139 = vpop.f32.mrb[0].mxu0
        %v1140 = vadd.f32 %v909, %v1139
        %v1141 = vpop.f32.mrb[0].mxu0
        %1142 = vdwg.mxu0
        %1143 = vmatprep.subr.bf16.mxu0 0
        %1144 = vmatpush1.bf16.msra.mxu0 %v1054
        %1145 = vmatprep.subr.bf16.mxu0 0
        %1146 = vmatpush1.bf16.msra.mxu0 %v1055
        %1147 = vmatprep.subr.bf16.mxu0 0
        %1148 = vmatpush1.bf16.msra.mxu0 %v1056
        %1149 = vmatprep.subr.bf16.mxu0 0
        %1150 = vmatpush1.bf16.msra.mxu0 %v1057
        %1151 = vmatprep.subr.bf16.mxu0 0
        %1152 = vmatpush1.bf16.msra.mxu0 %v1058
        %1153 = vmatprep.subr.bf16.mxu0 0
        %1154 = vmatpush1.bf16.msra.mxu0 %v1059
        %1155 = vmatprep.subr.bf16.mxu0 0
        %1156 = vmatpush1.bf16.msra.mxu0 %v1060
        %1157 = vmatprep.subr.bf16.mxu0 0
        %1158 = vmatpush1.bf16.msra.mxu0 %v1061
        %1159 = vmatprep.subr.bf16.mxu0 0
        %1160 = vmatpush1.bf16.msra.mxu0 %v1062
        %1161 = vmatprep.subr.bf16.mxu0 0
        %1162 = vmatpush1.bf16.msra.mxu0 %v1063
        %1163 = vmatprep.subr.bf16.mxu0 0
        %1164 = vmatpush1.bf16.msra.mxu0 %v1064
        %1165 = vmatprep.subr.bf16.mxu0 0
        %1166 = vmatpush1.bf16.msra.mxu0 %v1065
        %1167 = vmatprep.subr.bf16.mxu0 0
        %1168 = vmatpush1.bf16.msra.mxu0 %v1066
        %1169 = vmatprep.subr.bf16.mxu0 0
        %1170 = vmatpush1.bf16.msra.mxu0 %v1067
        %1171 = vmatprep.subr.bf16.mxu0 0
        %1172 = vmatpush1.bf16.msra.mxu0 %v1068
        %1173 = vmatprep.subr.bf16.mxu0 0
        %1174 = vmatpush1.bf16.msra.mxu0 %v1069
        %1175 = vmatprep.mubr.bf16.mxu0 %v839
        %1176 = vmatmul.mubr.bf16.gmra.mrb[0].mxu0 %v838
        %v1177 = vpop.f32.mrb[0].mxu0
        %v1178 = vadd.f32 %v1137, %v1177
        %v1179 = vpop.f32.mrb[0].mxu0
        %v1180 = vpop.f32.mrb[0].mxu0
        %v1181 = vadd.f32 %v1140, %v1180
        %v1182 = vpop.f32.mrb[0].mxu0
        %1183 = vdwg.mxu0
        %v1184 = vadd.f32 %v399, %v1178
        %v1185 = vadd.f32 %v400, %v1181
        %v1186 = vpack.c.bf16 %v1185, %v1184
        %v1188 = vunpack.c.l.b16 %v1186
        %v1189 = vunpack.c.h.b16 %v1186
        %v1190 = vpack.c.b16 %v1188, %v1188
        %v1191 = vpack.c.b16 %v1189, %v1189
        %1194 = vst [vmem:[%s393] sm:$0xf] %v1190
        %1195 = vst [vmem:[%s393 + $0x4] sm:$0xf] %v1191
        %s1196 = sand.u32 %s203, 1
        %s1197 = scalar_lea.sflag [#allocation4], %s1196
        %s1198 = sand.u32 %s203, 1
        %s1199 = smul.addr %s1198, 8
        %s1200 = scalar_lea.vmem [#allocation14], %s1199
        // Predicated region
        $region77: #{vit_forward.6} parent=47 // pred_check
          %p1201 = pneg %p213
        $region78: #{vit_forward.6} parent=47 // pred_check_branch
          %1203 = sbr.rel (%p1201) target = $region80
        $region79: #{vit_forward.6} parent=47 // pred_region
          %s1204 = smul.u32 2, %s32
          %s1206 = ssub.s32 128, 128
          %1207 = vsyncadd %s1197, %s1206
          %s1208 = smul.addr %s31, 2
          %s1209 = sadd.s32 %s1204, %s1208
          %s1210 = smul.addr %s1209, 64
          %s1211 = scalar_lea.hbm %s7, %s1210
          %s1212 = sshll.u32 %s1200, 4
          %s1213 = int_to_ptr.vmem [resolvable:$true] %s1212
          %1218 = dma.vmem_to_hbm [thread:$0]  %s1213, 128, %s1211, %s1197, 64, 64, 4
        $region80: #{vit_forward.6} parent=47 // pred_fallthru
          _
      $region48: #{vit_forward.6} parent=5 // pred_fallthru
        _
      %p1219 = scmp.le.s32.totalorder 2, %s22
      // Predicated region
      $region81: #{vit_forward.6} parent=5 // pred_check
        %p1220 = pneg %p1219
      $region82: #{vit_forward.6} parent=5 // pred_check_branch
        %1222 = sbr.rel (%p1220) target = $region84
      $region83: #{vit_forward.6} parent=5 // pred_region
        %s1223 = ssub.s32 %s22, 2
        // Predicated region
        $region85: #{vit_forward.6} parent=83 // pred_check
          %p1224 = pneg %p219
        $region86: #{vit_forward.6} parent=83 // pred_check_branch
          %1226 = sbr.rel (%p1224) target = $region88
        $region87: #{vit_forward.6} parent=83 // pred_region
          %s1227 = sand.u32 %s204, 1
          %s1228 = scalar_lea.sflag [#allocation4], %s1227
          %s1229 = sand.u32 %s204, 1
          %s1230 = smul.addr %s1229, 8
          %s1231 = scalar_lea.vmem [#allocation14], %s1230
          %1232 = dma.done %s1228, 128
        $region88: #{vit_forward.6} parent=83 // pred_fallthru
          _
      $region84: #{vit_forward.6} parent=5 // pred_fallthru
        _
    $region6: #{vit_forward.6} parent=1 // loop_footer
      %s26 = sadd.s32 1, %s22
    $region7: #{vit_forward.6} parent=1 // loop_footer_branch
      %21 = sbr.rel target = $region3
    $region8: #{vit_forward.6} parent=1 // loop_exit
      _
    %1233 = vsyncpa [#allocation3], 1
    %s1234 = scalar_lea.sflag [#allocation3], 1
    %1235 = vsyncpa %s1234, 1
    %1236 = vsyncpa [#allocation6], 1
    %1237 = vsyncpa [#allocation9], 1
    %1238 = vsyncpa [#allocation12], 1
    %1239 = vsyncpa [#allocation4], 1
    %s1240 = scalar_lea.sflag [#allocation4], 1
    %1241 = vsyncpa %s1240, 1

</llo_original>
